<compile_context>
chip_gen: v6e
topology: v6e:2x2x1
jax: 0.10.0
libtpu: 0.0.40
codegen_flags: <defaults>
</compile_context>

<pallas_src>
import jax
import jax.numpy as jnp
from jax.experimental import pallas as pl
from jax.experimental.pallas import tpu as pltpu

# ---- mini-BERT config (small shapes consistent with the forward pass) ----
VOCAB = 100
MAX_POS = 16
TYPE_VOCAB = 2
HIDDEN = 32
HEADS = 4
HEAD_DIM = HIDDEN // HEADS
FFN = 64
LAYERS = 2
EPS = 1e-12  # BERT LayerNorm eps


# --------------------------- in-kernel helpers -----------------------------

def _layer_norm(h, g, b):
    mu = jnp.mean(h, axis=-1, keepdims=True)
    d = h - mu
    var = jnp.mean(d * d, axis=-1, keepdims=True)
    return d * jax.lax.rsqrt(var + EPS) * g + b


def _gelu(h):
    # TODO(synk): HF BERT uses erf-based GELU; tanh approximation used here
    # (tanh lowers to the EUP; erf lowering in Mosaic is not guaranteed).
    c = 0.7978845608028654  # sqrt(2/pi)
    return 0.5 * h * (1.0 + jnp.tanh(c * (h + 0.044715 * h * h * h)))


# ----------------------------- fused kernel --------------------------------

def _make_encoder_kernel(B, S):
    scale = 1.0 / (HEAD_DIM ** 0.5)

    def kernel(emb_ref, eg_ref, eb_ref,
               w_qkv_ref, b_qkv_ref, w_ao_ref, b_ao_ref,
               ln1_g_ref, ln1_b_ref,
               w_ffn1_ref, b_ffn1_ref, w_ffn2_ref, b_ffn2_ref,
               ln2_g_ref, ln2_b_ref,
               out_ref):
        # Embedding LayerNorm (no residual -> no useless zeros array / DMA).
        x = _layer_norm(emb_ref[...], eg_ref[...], eb_ref[...])   # (B*S, H)

        # Statically-unrolled layer loop; all weights are already in VMEM.
        for l in range(LAYERS):
            # ---- fused Q|K|V projection: one MXU call, lane width 3*H ----
            qkv = (
                jnp.dot(x, w_qkv_ref[l], preferred_element_type=jnp.float32)
                + b_qkv_ref[l]
            )                                                     # (B*S, 3H)
            # Fold the 1/sqrt(d) scale into Q once (cheaper than scaling every
            # per-head (B,S,S) score matrix).
            q = qkv[:, 0 * HIDDEN:1 * HIDDEN] * scale
            k = qkv[:, 1 * HIDDEN:2 * HIDDEN]
            v = qkv[:, 2 * HIDDEN:3 * HIDDEN]

            # ---- multi-head self-attention, head split/merge in-kernel ----
            ctx_parts = []
            for h in range(HEADS):
                cs = slice(h * HEAD_DIM, (h + 1) * HEAD_DIM)
                qh = q[:, cs].reshape(B, S, HEAD_DIM)
                kh = k[:, cs].reshape(B, S, HEAD_DIM)
                vh = v[:, cs].reshape(B, S, HEAD_DIM)
                s = jnp.einsum("bqd,bkd->bqk", qh, kh,
                               preferred_element_type=jnp.float32)
                m = jnp.max(s, axis=-1, keepdims=True)
                p = jnp.exp(s - m)
                # softmax divide moved to the EUP slot via approx reciprocal
                p = p * pl.reciprocal(jnp.sum(p, axis=-1, keepdims=True),
                                      approx=True)
                ch = jnp.einsum("bqk,bkd->bqd", p, vh,
                                preferred_element_type=jnp.float32)
                ctx_parts.append(ch.reshape(B * S, HEAD_DIM))
            ctx = jnp.concatenate(ctx_parts, axis=-1)             # (B*S, H)

            # ---- attention output projection + residual LayerNorm ----
            attn_out = (
                jnp.dot(ctx, w_ao_ref[l], preferred_element_type=jnp.float32)
                + b_ao_ref[l]
            )
            x = _layer_norm(attn_out + x, ln1_g_ref[l], ln1_b_ref[l])

            # ---- GELU FFN + residual LayerNorm ----
            h1 = _gelu(
                jnp.dot(x, w_ffn1_ref[l], preferred_element_type=jnp.float32)
                + b_ffn1_ref[l]
            )
            ffn_out = (
                jnp.dot(h1, w_ffn2_ref[l], preferred_element_type=jnp.float32)
                + b_ffn2_ref[l]
            )
            x = _layer_norm(ffn_out + x, ln2_g_ref[l], ln2_b_ref[l])

        # ---- fused mean-pool: last_hidden_states.mean(dim=1) ----
        out_ref[...] = jnp.mean(x.reshape(B, S, HIDDEN), axis=1)  # (B, H)

    return kernel


# ------------------------------- parameters --------------------------------

def init_params(key):
    # TODO(synk): pretrained bert-base-multilingual-cased weights cannot be
    # loaded here; deterministic random init (std=0.02) is used instead.
    std = 0.02
    keys = iter(jax.random.split(key, 7))

    def nrm(shape):
        return std * jax.random.normal(next(keys), shape, jnp.float32)

    return {
        "word_emb": nrm((VOCAB, HIDDEN)),
        "pos_emb": nrm((MAX_POS, HIDDEN)),
        "type_emb": nrm((TYPE_VOCAB, HIDDEN)),
        "emb_ln_g": jnp.ones((1, HIDDEN), jnp.float32),
        "emb_ln_b": jnp.zeros((1, HIDDEN), jnp.float32),
        # Per-layer weights stacked along a leading LAYERS axis so the whole
        # stack is a single VMEM-resident array indexed per layer in-kernel.
        "w_qkv": nrm((LAYERS, HIDDEN, 3 * HIDDEN)),   # wq|wk|wv fused
        "b_qkv": jnp.zeros((LAYERS, 1, 3 * HIDDEN), jnp.float32),
        "w_ao": nrm((LAYERS, HIDDEN, HIDDEN)),
        "b_ao": jnp.zeros((LAYERS, 1, HIDDEN), jnp.float32),
        "ln1_g": jnp.ones((LAYERS, 1, HIDDEN), jnp.float32),
        "ln1_b": jnp.zeros((LAYERS, 1, HIDDEN), jnp.float32),
        "w_ffn1": nrm((LAYERS, HIDDEN, FFN)),
        "b_ffn1": jnp.zeros((LAYERS, 1, FFN), jnp.float32),
        "w_ffn2": nrm((LAYERS, FFN, HIDDEN)),
        "b_ffn2": jnp.zeros((LAYERS, 1, HIDDEN), jnp.float32),
        "ln2_g": jnp.ones((LAYERS, 1, HIDDEN), jnp.float32),
        "ln2_b": jnp.zeros((LAYERS, 1, HIDDEN), jnp.float32),
    }


# -------------------------------- forward ----------------------------------

def encoder_bert_forward(params, q_ids):
    """q_ids: (B, S) int32 token ids  ->  (B, HIDDEN) mean-pooled embeddings."""
    B, S = q_ids.shape

    # Embedding gather stays as JAX glue (token_type_ids = 0).
    emb = (
        params["word_emb"][q_ids]
        + params["pos_emb"][:S][None, :, :]
        + params["type_emb"][0][None, None, :]
    )
    emb = emb.reshape(B * S, HIDDEN).astype(jnp.float32)

    # Single fused pallas_call: whole encoder, weights + activations in VMEM.
    # TODO(synk): at real bert-base sizes (H=768, S=512, large B) this would
    # need a tiled grid/BlockSpec (parallel M-tiles, arbitrary K) + a larger
    # explicit vmem_limit_bytes instead of whole-array blocks.
    return pl.pallas_call(
        _make_encoder_kernel(B, S),
        out_shape=jax.ShapeDtypeStruct((B, HIDDEN), jnp.float32),
        compiler_params=pltpu.CompilerParams(vmem_limit_bytes=16 << 20),
    )(
        emb,
        params["emb_ln_g"], params["emb_ln_b"],
        params["w_qkv"], params["b_qkv"],
        params["w_ao"], params["b_ao"],
        params["ln1_g"], params["ln1_b"],
        params["w_ffn1"], params["b_ffn1"],
        params["w_ffn2"], params["b_ffn2"],
        params["ln2_g"], params["ln2_b"],
    )


# --------------------------------- main -------------------------------------

if __name__ == "__main__":
    key = jax.random.PRNGKey(0)
    k_params, k_ids = jax.random.split(key)

    params = init_params(k_params)

    B, S = 2, 8
    questions = jax.random.randint(k_ids, (B, S), 0, VOCAB, dtype=jnp.int32)

    fwd = jax.jit(encoder_bert_forward)
    q_emb = jax.block_until_ready(fwd(params, questions))

    assert q_emb.shape == (B, HIDDEN), q_emb.shape
    assert q_emb.dtype == jnp.float32
    assert bool(jnp.all(jnp.isfinite(q_emb)))
    print("KERNEL_OK")
</pallas_src>

<mosaic_0001>
module attributes {stable_mosaic.version = 11 : i64} {
  func.func @kernel(%arg0: memref<16x32xf32, #tpu.memory_space<vmem>>, %arg1: memref<1x32xf32, #tpu.memory_space<vmem>>, %arg2: memref<1x32xf32, #tpu.memory_space<vmem>>, %arg3: memref<2x32x96xf32, #tpu.memory_space<vmem>>, %arg4: memref<2x1x96xf32, #tpu.memory_space<vmem>>, %arg5: memref<2x32x32xf32, #tpu.memory_space<vmem>>, %arg6: memref<2x1x32xf32, #tpu.memory_space<vmem>>, %arg7: memref<2x1x32xf32, #tpu.memory_space<vmem>>, %arg8: memref<2x1x32xf32, #tpu.memory_space<vmem>>, %arg9: memref<2x32x64xf32, #tpu.memory_space<vmem>>, %arg10: memref<2x1x64xf32, #tpu.memory_space<vmem>>, %arg11: memref<2x64x32xf32, #tpu.memory_space<vmem>>, %arg12: memref<2x1x32xf32, #tpu.memory_space<vmem>>, %arg13: memref<2x1x32xf32, #tpu.memory_space<vmem>>, %arg14: memref<2x1x32xf32, #tpu.memory_space<vmem>>, %arg15: memref<2x32xf32, #tpu.memory_space<vmem>>) attributes {dimension_semantics = [], scalar_prefetch = 0 : i64, scratch_operands = 0 : i64, tpu.core_type = #tpu.core_type<tc>} {
    %c0 = arith.constant 0 : index
    %c0_0 = arith.constant 0 : index
    %0 = vector.load %arg0[%c0, %c0_0] : memref<16x32xf32, #tpu.memory_space<vmem>>, vector<16x32xf32>
    %c0_1 = arith.constant 0 : index
    %c0_2 = arith.constant 0 : index
    %1 = vector.load %arg1[%c0_1, %c0_2] : memref<1x32xf32, #tpu.memory_space<vmem>>, vector<1x32xf32>
    %c0_3 = arith.constant 0 : index
    %c0_4 = arith.constant 0 : index
    %2 = vector.load %arg2[%c0_3, %c0_4] : memref<1x32xf32, #tpu.memory_space<vmem>>, vector<1x32xf32>
    %cst = arith.constant dense<0.000000e+00> : vector<16xf32>
    %3 = vector.multi_reduction <add>, %0, %cst [1] : vector<16x32xf32> to vector<16xf32>
    %4 = vector.shape_cast %3 : vector<16xf32> to vector<16x1xf32>
    %cst_5 = arith.constant 3.200000e+01 : f32
    %5 = vector.broadcast %cst_5 : f32 to vector<16x1xf32>
    %6 = arith.divf %4, %5 : vector<16x1xf32>
    %7 = vector.broadcast %6 : vector<16x1xf32> to vector<16x32xf32>
    %8 = arith.subf %0, %7 : vector<16x32xf32>
    %9 = arith.mulf %8, %8 : vector<16x32xf32>
    %cst_6 = arith.constant dense<0.000000e+00> : vector<16xf32>
    %10 = vector.multi_reduction <add>, %9, %cst_6 [1] : vector<16x32xf32> to vector<16xf32>
    %11 = vector.shape_cast %10 : vector<16xf32> to vector<16x1xf32>
    %cst_7 = arith.constant 3.200000e+01 : f32
    %12 = vector.broadcast %cst_7 : f32 to vector<16x1xf32>
    %13 = arith.divf %11, %12 : vector<16x1xf32>
    %cst_8 = arith.constant 9.99999996E-13 : f32
    %14 = vector.broadcast %cst_8 : f32 to vector<16x1xf32>
    %15 = arith.addf %13, %14 : vector<16x1xf32>
    %16 = math.rsqrt %15 : vector<16x1xf32>
    %17 = vector.broadcast %16 : vector<16x1xf32> to vector<16x32xf32>
    %18 = arith.mulf %8, %17 : vector<16x32xf32>
    %19 = vector.broadcast %1 : vector<1x32xf32> to vector<16x32xf32>
    %20 = arith.mulf %18, %19 : vector<16x32xf32>
    %21 = vector.broadcast %2 : vector<1x32xf32> to vector<16x32xf32>
    %22 = arith.addf %20, %21 : vector<16x32xf32>
    %c0_9 = arith.constant 0 : index
    %c0_10 = arith.constant 0 : index
    %c0_11 = arith.constant 0 : index
    %23 = vector.load %arg3[%c0_9, %c0_10, %c0_11] : memref<2x32x96xf32, #tpu.memory_space<vmem>>, vector<1x32x96xf32>
    %24 = vector.shape_cast %23 : vector<1x32x96xf32> to vector<32x96xf32>
    %cst_12 = arith.constant dense<0.000000e+00> : vector<16x96xf32>
    %25 = tpu.matmul %22, %24, %cst_12 {dimension_numbers = #tpu.dot_dimension_numbers<[1], [0], [0], [1], [0, 0, 1, 1], [], []>} : vector<16x32xf32>, vector<32x96xf32>, vector<16x96xf32> -> vector<16x96xf32>
    %c0_13 = arith.constant 0 : index
    %c0_14 = arith.constant 0 : index
    %c0_15 = arith.constant 0 : index
    %26 = vector.load %arg4[%c0_13, %c0_14, %c0_15] : memref<2x1x96xf32, #tpu.memory_space<vmem>>, vector<1x1x96xf32>
    %27 = vector.shape_cast %26 : vector<1x1x96xf32> to vector<1x96xf32>
    %28 = vector.broadcast %27 : vector<1x96xf32> to vector<16x96xf32>
    %29 = arith.addf %25, %28 : vector<16x96xf32>
    %30 = vector.extract_strided_slice %29 {offsets = [0, 0], sizes = [16, 32], strides = [1, 1]} : vector<16x96xf32> to vector<16x32xf32>
    %cst_16 = arith.constant 0.353553385 : f32
    %31 = vector.broadcast %cst_16 : f32 to vector<16x32xf32>
    %32 = arith.mulf %30, %31 : vector<16x32xf32>
    %33 = vector.extract_strided_slice %29 {offsets = [0, 32], sizes = [16, 32], strides = [1, 1]} : vector<16x96xf32> to vector<16x32xf32>
    %34 = vector.extract_strided_slice %29 {offsets = [0, 64], sizes = [16, 32], strides = [1, 1]} : vector<16x96xf32> to vector<16x32xf32>
    %35 = vector.extract_strided_slice %32 {offsets = [0, 0], sizes = [16, 8], strides = [1, 1]} : vector<16x32xf32> to vector<16x8xf32>
    %36 = vector.shape_cast %35 : vector<16x8xf32> to vector<2x8x8xf32>
    %37 = vector.extract_strided_slice %33 {offsets = [0, 0], sizes = [16, 8], strides = [1, 1]} : vector<16x32xf32> to vector<16x8xf32>
    %38 = vector.shape_cast %37 : vector<16x8xf32> to vector<2x8x8xf32>
    %39 = vector.extract_strided_slice %34 {offsets = [0, 0], sizes = [16, 8], strides = [1, 1]} : vector<16x32xf32> to vector<16x8xf32>
    %40 = vector.shape_cast %39 : vector<16x8xf32> to vector<2x8x8xf32>
    "tpu.trace_start"() <{level = 10 : i32, message = "bqd,bkd->bqk"}> : () -> ()
    %cst_17 = arith.constant dense<0.000000e+00> : vector<2x8x8xf32>
    %41 = tpu.matmul %36, %38, %cst_17 {dimension_numbers = #tpu.dot_dimension_numbers<[2], [2], [1], [1], [0, 0, 0, 1, 1, 1], [0], [0]>} : vector<2x8x8xf32>, vector<2x8x8xf32>, vector<2x8x8xf32> -> vector<2x8x8xf32>
    "tpu.trace_stop"() : () -> ()
    %cst_18 = arith.constant dense<0xFF800000> : vector<2x8xf32>
    %42 = vector.multi_reduction <maximumf>, %41, %cst_18 [2] : vector<2x8x8xf32> to vector<2x8xf32>
    %43 = vector.shape_cast %42 : vector<2x8xf32> to vector<2x8x1xf32>
    %44 = vector.broadcast %43 : vector<2x8x1xf32> to vector<2x8x8xf32>
    %45 = arith.subf %41, %44 : vector<2x8x8xf32>
    %46 = math.exp %45 : vector<2x8x8xf32>
    %cst_19 = arith.constant dense<0.000000e+00> : vector<2x8xf32>
    %47 = vector.multi_reduction <add>, %46, %cst_19 [2] : vector<2x8x8xf32> to vector<2x8xf32>
    %48 = vector.shape_cast %47 : vector<2x8xf32> to vector<2x8x1xf32>
    %49 = tpu.reciprocal %48 {approx = true} : vector<2x8x1xf32> -> vector<2x8x1xf32>
    %50 = vector.broadcast %49 : vector<2x8x1xf32> to vector<2x8x8xf32>
    %51 = arith.mulf %46, %50 : vector<2x8x8xf32>
    "tpu.trace_start"() <{level = 10 : i32, message = "bqk,bkd->bqd"}> : () -> ()
    %cst_20 = arith.constant dense<0.000000e+00> : vector<2x8x8xf32>
    %52 = tpu.matmul %51, %40, %cst_20 {dimension_numbers = #tpu.dot_dimension_numbers<[2], [1], [1], [2], [0, 0, 0, 1, 1, 2], [0], [0]>} : vector<2x8x8xf32>, vector<2x8x8xf32>, vector<2x8x8xf32> -> vector<2x8x8xf32>
    "tpu.trace_stop"() : () -> ()
    %53 = vector.shape_cast %52 : vector<2x8x8xf32> to vector<16x8xf32>
    %54 = vector.extract_strided_slice %32 {offsets = [0, 8], sizes = [16, 8], strides = [1, 1]} : vector<16x32xf32> to vector<16x8xf32>
    %55 = vector.shape_cast %54 : vector<16x8xf32> to vector<2x8x8xf32>
    %56 = vector.extract_strided_slice %33 {offsets = [0, 8], sizes = [16, 8], strides = [1, 1]} : vector<16x32xf32> to vector<16x8xf32>
    %57 = vector.shape_cast %56 : vector<16x8xf32> to vector<2x8x8xf32>
    %58 = vector.extract_strided_slice %34 {offsets = [0, 8], sizes = [16, 8], strides = [1, 1]} : vector<16x32xf32> to vector<16x8xf32>
    %59 = vector.shape_cast %58 : vector<16x8xf32> to vector<2x8x8xf32>
    "tpu.trace_start"() <{level = 10 : i32, message = "bqd,bkd->bqk"}> : () -> ()
    %cst_21 = arith.constant dense<0.000000e+00> : vector<2x8x8xf32>
    %60 = tpu.matmul %55, %57, %cst_21 {dimension_numbers = #tpu.dot_dimension_numbers<[2], [2], [1], [1], [0, 0, 0, 1, 1, 1], [0], [0]>} : vector<2x8x8xf32>, vector<2x8x8xf32>, vector<2x8x8xf32> -> vector<2x8x8xf32>
    "tpu.trace_stop"() : () -> ()
    %cst_22 = arith.constant dense<0xFF800000> : vector<2x8xf32>
    %61 = vector.multi_reduction <maximumf>, %60, %cst_22 [2] : vector<2x8x8xf32> to vector<2x8xf32>
    %62 = vector.shape_cast %61 : vector<2x8xf32> to vector<2x8x1xf32>
    %63 = vector.broadcast %62 : vector<2x8x1xf32> to vector<2x8x8xf32>
    %64 = arith.subf %60, %63 : vector<2x8x8xf32>
    %65 = math.exp %64 : vector<2x8x8xf32>
    %cst_23 = arith.constant dense<0.000000e+00> : vector<2x8xf32>
    %66 = vector.multi_reduction <add>, %65, %cst_23 [2] : vector<2x8x8xf32> to vector<2x8xf32>
    %67 = vector.shape_cast %66 : vector<2x8xf32> to vector<2x8x1xf32>
    %68 = tpu.reciprocal %67 {approx = true} : vector<2x8x1xf32> -> vector<2x8x1xf32>
    %69 = vector.broadcast %68 : vector<2x8x1xf32> to vector<2x8x8xf32>
    %70 = arith.mulf %65, %69 : vector<2x8x8xf32>
    "tpu.trace_start"() <{level = 10 : i32, message = "bqk,bkd->bqd"}> : () -> ()
    %cst_24 = arith.constant dense<0.000000e+00> : vector<2x8x8xf32>
    %71 = tpu.matmul %70, %59, %cst_24 {dimension_numbers = #tpu.dot_dimension_numbers<[2], [1], [1], [2], [0, 0, 0, 1, 1, 2], [0], [0]>} : vector<2x8x8xf32>, vector<2x8x8xf32>, vector<2x8x8xf32> -> vector<2x8x8xf32>
    "tpu.trace_stop"() : () -> ()
    %72 = vector.shape_cast %71 : vector<2x8x8xf32> to vector<16x8xf32>
    %73 = vector.extract_strided_slice %32 {offsets = [0, 16], sizes = [16, 8], strides = [1, 1]} : vector<16x32xf32> to vector<16x8xf32>
    %74 = vector.shape_cast %73 : vector<16x8xf32> to vector<2x8x8xf32>
    %75 = vector.extract_strided_slice %33 {offsets = [0, 16], sizes = [16, 8], strides = [1, 1]} : vector<16x32xf32> to vector<16x8xf32>
    %76 = vector.shape_cast %75 : vector<16x8xf32> to vector<2x8x8xf32>
    %77 = vector.extract_strided_slice %34 {offsets = [0, 16], sizes = [16, 8], strides = [1, 1]} : vector<16x32xf32> to vector<16x8xf32>
    %78 = vector.shape_cast %77 : vector<16x8xf32> to vector<2x8x8xf32>
    "tpu.trace_start"() <{level = 10 : i32, message = "bqd,bkd->bqk"}> : () -> ()
    %cst_25 = arith.constant dense<0.000000e+00> : vector<2x8x8xf32>
    %79 = tpu.matmul %74, %76, %cst_25 {dimension_numbers = #tpu.dot_dimension_numbers<[2], [2], [1], [1], [0, 0, 0, 1, 1, 1], [0], [0]>} : vector<2x8x8xf32>, vector<2x8x8xf32>, vector<2x8x8xf32> -> vector<2x8x8xf32>
    "tpu.trace_stop"() : () -> ()
    %cst_26 = arith.constant dense<0xFF800000> : vector<2x8xf32>
    %80 = vector.multi_reduction <maximumf>, %79, %cst_26 [2] : vector<2x8x8xf32> to vector<2x8xf32>
    %81 = vector.shape_cast %80 : vector<2x8xf32> to vector<2x8x1xf32>
    %82 = vector.broadcast %81 : vector<2x8x1xf32> to vector<2x8x8xf32>
    %83 = arith.subf %79, %82 : vector<2x8x8xf32>
    %84 = math.exp %83 : vector<2x8x8xf32>
    %cst_27 = arith.constant dense<0.000000e+00> : vector<2x8xf32>
    %85 = vector.multi_reduction <add>, %84, %cst_27 [2] : vector<2x8x8xf32> to vector<2x8xf32>
    %86 = vector.shape_cast %85 : vector<2x8xf32> to vector<2x8x1xf32>
    %87 = tpu.reciprocal %86 {approx = true} : vector<2x8x1xf32> -> vector<2x8x1xf32>
    %88 = vector.broadcast %87 : vector<2x8x1xf32> to vector<2x8x8xf32>
    %89 = arith.mulf %84, %88 : vector<2x8x8xf32>
    "tpu.trace_start"() <{level = 10 : i32, message = "bqk,bkd->bqd"}> : () -> ()
    %cst_28 = arith.constant dense<0.000000e+00> : vector<2x8x8xf32>
    %90 = tpu.matmul %89, %78, %cst_28 {dimension_numbers = #tpu.dot_dimension_numbers<[2], [1], [1], [2], [0, 0, 0, 1, 1, 2], [0], [0]>} : vector<2x8x8xf32>, vector<2x8x8xf32>, vector<2x8x8xf32> -> vector<2x8x8xf32>
    "tpu.trace_stop"() : () -> ()
    %91 = vector.shape_cast %90 : vector<2x8x8xf32> to vector<16x8xf32>
    %92 = vector.extract_strided_slice %32 {offsets = [0, 24], sizes = [16, 8], strides = [1, 1]} : vector<16x32xf32> to vector<16x8xf32>
    %93 = vector.shape_cast %92 : vector<16x8xf32> to vector<2x8x8xf32>
    %94 = vector.extract_strided_slice %33 {offsets = [0, 24], sizes = [16, 8], strides = [1, 1]} : vector<16x32xf32> to vector<16x8xf32>
    %95 = vector.shape_cast %94 : vector<16x8xf32> to vector<2x8x8xf32>
    %96 = vector.extract_strided_slice %34 {offsets = [0, 24], sizes = [16, 8], strides = [1, 1]} : vector<16x32xf32> to vector<16x8xf32>
    %97 = vector.shape_cast %96 : vector<16x8xf32> to vector<2x8x8xf32>
    "tpu.trace_start"() <{level = 10 : i32, message = "bqd,bkd->bqk"}> : () -> ()
    %cst_29 = arith.constant dense<0.000000e+00> : vector<2x8x8xf32>
    %98 = tpu.matmul %93, %95, %cst_29 {dimension_numbers = #tpu.dot_dimension_numbers<[2], [2], [1], [1], [0, 0, 0, 1, 1, 1], [0], [0]>} : vector<2x8x8xf32>, vector<2x8x8xf32>, vector<2x8x8xf32> -> vector<2x8x8xf32>
    "tpu.trace_stop"() : () -> ()
    %cst_30 = arith.constant dense<0xFF800000> : vector<2x8xf32>
    %99 = vector.multi_reduction <maximumf>, %98, %cst_30 [2] : vector<2x8x8xf32> to vector<2x8xf32>
    %100 = vector.shape_cast %99 : vector<2x8xf32> to vector<2x8x1xf32>
    %101 = vector.broadcast %100 : vector<2x8x1xf32> to vector<2x8x8xf32>
    %102 = arith.subf %98, %101 : vector<2x8x8xf32>
    %103 = math.exp %102 : vector<2x8x8xf32>
    %cst_31 = arith.constant dense<0.000000e+00> : vector<2x8xf32>
    %104 = vector.multi_reduction <add>, %103, %cst_31 [2] : vector<2x8x8xf32> to vector<2x8xf32>
    %105 = vector.shape_cast %104 : vector<2x8xf32> to vector<2x8x1xf32>
    %106 = tpu.reciprocal %105 {approx = true} : vector<2x8x1xf32> -> vector<2x8x1xf32>
    %107 = vector.broadcast %106 : vector<2x8x1xf32> to vector<2x8x8xf32>
    %108 = arith.mulf %103, %107 : vector<2x8x8xf32>
    "tpu.trace_start"() <{level = 10 : i32, message = "bqk,bkd->bqd"}> : () -> ()
    %cst_32 = arith.constant dense<0.000000e+00> : vector<2x8x8xf32>
    %109 = tpu.matmul %108, %97, %cst_32 {dimension_numbers = #tpu.dot_dimension_numbers<[2], [1], [1], [2], [0, 0, 0, 1, 1, 2], [0], [0]>} : vector<2x8x8xf32>, vector<2x8x8xf32>, vector<2x8x8xf32> -> vector<2x8x8xf32>
    "tpu.trace_stop"() : () -> ()
    %110 = vector.shape_cast %109 : vector<2x8x8xf32> to vector<16x8xf32>
    %111 = tpu.concatenate %53, %72, %91, %110 in 1 : vector<16x8xf32>, vector<16x8xf32>, vector<16x8xf32>, vector<16x8xf32> -> vector<16x32xf32>
    %c0_33 = arith.constant 0 : index
    %c0_34 = arith.constant 0 : index
    %c0_35 = arith.constant 0 : index
    %112 = vector.load %arg5[%c0_33, %c0_34, %c0_35] : memref<2x32x32xf32, #tpu.memory_space<vmem>>, vector<1x32x32xf32>
    %113 = vector.shape_cast %112 : vector<1x32x32xf32> to vector<32x32xf32>
    %cst_36 = arith.constant dense<0.000000e+00> : vector<16x32xf32>
    %114 = tpu.matmul %111, %113, %cst_36 {dimension_numbers = #tpu.dot_dimension_numbers<[1], [0], [0], [1], [0, 0, 1, 1], [], []>} : vector<16x32xf32>, vector<32x32xf32>, vector<16x32xf32> -> vector<16x32xf32>
    %c0_37 = arith.constant 0 : index
    %c0_38 = arith.constant 0 : index
    %c0_39 = arith.constant 0 : index
    %115 = vector.load %arg6[%c0_37, %c0_38, %c0_39] : memref<2x1x32xf32, #tpu.memory_space<vmem>>, vector<1x1x32xf32>
    %116 = vector.shape_cast %115 : vector<1x1x32xf32> to vector<1x32xf32>
    %117 = vector.broadcast %116 : vector<1x32xf32> to vector<16x32xf32>
    %118 = arith.addf %114, %117 : vector<16x32xf32>
    %119 = arith.addf %118, %22 : vector<16x32xf32>
    %c0_40 = arith.constant 0 : index
    %c0_41 = arith.constant 0 : index
    %c0_42 = arith.constant 0 : index
    %120 = vector.load %arg7[%c0_40, %c0_41, %c0_42] : memref<2x1x32xf32, #tpu.memory_space<vmem>>, vector<1x1x32xf32>
    %121 = vector.shape_cast %120 : vector<1x1x32xf32> to vector<1x32xf32>
    %c0_43 = arith.constant 0 : index
    %c0_44 = arith.constant 0 : index
    %c0_45 = arith.constant 0 : index
    %122 = vector.load %arg8[%c0_43, %c0_44, %c0_45] : memref<2x1x32xf32, #tpu.memory_space<vmem>>, vector<1x1x32xf32>
    %123 = vector.shape_cast %122 : vector<1x1x32xf32> to vector<1x32xf32>
    %cst_46 = arith.constant dense<0.000000e+00> : vector<16xf32>
    %124 = vector.multi_reduction <add>, %119, %cst_46 [1] : vector<16x32xf32> to vector<16xf32>
    %125 = vector.shape_cast %124 : vector<16xf32> to vector<16x1xf32>
    %cst_47 = arith.constant 3.200000e+01 : f32
    %126 = vector.broadcast %cst_47 : f32 to vector<16x1xf32>
    %127 = arith.divf %125, %126 : vector<16x1xf32>
    %128 = vector.broadcast %127 : vector<16x1xf32> to vector<16x32xf32>
    %129 = arith.subf %119, %128 : vector<16x32xf32>
    %130 = arith.mulf %129, %129 : vector<16x32xf32>
    %cst_48 = arith.constant dense<0.000000e+00> : vector<16xf32>
    %131 = vector.multi_reduction <add>, %130, %cst_48 [1] : vector<16x32xf32> to vector<16xf32>
    %132 = vector.shape_cast %131 : vector<16xf32> to vector<16x1xf32>
    %cst_49 = arith.constant 3.200000e+01 : f32
    %133 = vector.broadcast %cst_49 : f32 to vector<16x1xf32>
    %134 = arith.divf %132, %133 : vector<16x1xf32>
    %cst_50 = arith.constant 9.99999996E-13 : f32
    %135 = vector.broadcast %cst_50 : f32 to vector<16x1xf32>
    %136 = arith.addf %134, %135 : vector<16x1xf32>
    %137 = math.rsqrt %136 : vector<16x1xf32>
    %138 = vector.broadcast %137 : vector<16x1xf32> to vector<16x32xf32>
    %139 = arith.mulf %129, %138 : vector<16x32xf32>
    %140 = vector.broadcast %121 : vector<1x32xf32> to vector<16x32xf32>
    %141 = arith.mulf %139, %140 : vector<16x32xf32>
    %142 = vector.broadcast %123 : vector<1x32xf32> to vector<16x32xf32>
    %143 = arith.addf %141, %142 : vector<16x32xf32>
    %c0_51 = arith.constant 0 : index
    %c0_52 = arith.constant 0 : index
    %c0_53 = arith.constant 0 : index
    %144 = vector.load %arg9[%c0_51, %c0_52, %c0_53] : memref<2x32x64xf32, #tpu.memory_space<vmem>>, vector<1x32x64xf32>
    %145 = vector.shape_cast %144 : vector<1x32x64xf32> to vector<32x64xf32>
    %cst_54 = arith.constant dense<0.000000e+00> : vector<16x64xf32>
    %146 = tpu.matmul %143, %145, %cst_54 {dimension_numbers = #tpu.dot_dimension_numbers<[1], [0], [0], [1], [0, 0, 1, 1], [], []>} : vector<16x32xf32>, vector<32x64xf32>, vector<16x64xf32> -> vector<16x64xf32>
    %c0_55 = arith.constant 0 : index
    %c0_56 = arith.constant 0 : index
    %c0_57 = arith.constant 0 : index
    %147 = vector.load %arg10[%c0_55, %c0_56, %c0_57] : memref<2x1x64xf32, #tpu.memory_space<vmem>>, vector<1x1x64xf32>
    %148 = vector.shape_cast %147 : vector<1x1x64xf32> to vector<1x64xf32>
    %149 = vector.broadcast %148 : vector<1x64xf32> to vector<16x64xf32>
    %150 = arith.addf %146, %149 : vector<16x64xf32>
    %cst_58 = arith.constant 5.000000e-01 : f32
    %151 = vector.broadcast %cst_58 : f32 to vector<16x64xf32>
    %152 = arith.mulf %151, %150 : vector<16x64xf32>
    %cst_59 = arith.constant 4.471500e-02 : f32
    %153 = vector.broadcast %cst_59 : f32 to vector<16x64xf32>
    %154 = arith.mulf %153, %150 : vector<16x64xf32>
    %155 = arith.mulf %154, %150 : vector<16x64xf32>
    %156 = arith.mulf %155, %150 : vector<16x64xf32>
    %157 = arith.addf %150, %156 : vector<16x64xf32>
    %cst_60 = arith.constant 0.797884583 : f32
    %158 = vector.broadcast %cst_60 : f32 to vector<16x64xf32>
    %159 = arith.mulf %158, %157 : vector<16x64xf32>
    %160 = math.tanh %159 : vector<16x64xf32>
    %cst_61 = arith.constant 1.000000e+00 : f32
    %161 = vector.broadcast %cst_61 : f32 to vector<16x64xf32>
    %162 = arith.addf %161, %160 : vector<16x64xf32>
    %163 = arith.mulf %152, %162 : vector<16x64xf32>
    %c0_62 = arith.constant 0 : index
    %c0_63 = arith.constant 0 : index
    %c0_64 = arith.constant 0 : index
    %164 = vector.load %arg11[%c0_62, %c0_63, %c0_64] : memref<2x64x32xf32, #tpu.memory_space<vmem>>, vector<1x64x32xf32>
    %165 = vector.shape_cast %164 : vector<1x64x32xf32> to vector<64x32xf32>
    %cst_65 = arith.constant dense<0.000000e+00> : vector<16x32xf32>
    %166 = tpu.matmul %163, %165, %cst_65 {dimension_numbers = #tpu.dot_dimension_numbers<[1], [0], [0], [1], [0, 0, 1, 1], [], []>} : vector<16x64xf32>, vector<64x32xf32>, vector<16x32xf32> -> vector<16x32xf32>
    %c0_66 = arith.constant 0 : index
    %c0_67 = arith.constant 0 : index
    %c0_68 = arith.constant 0 : index
    %167 = vector.load %arg12[%c0_66, %c0_67, %c0_68] : memref<2x1x32xf32, #tpu.memory_space<vmem>>, vector<1x1x32xf32>
    %168 = vector.shape_cast %167 : vector<1x1x32xf32> to vector<1x32xf32>
    %169 = vector.broadcast %168 : vector<1x32xf32> to vector<16x32xf32>
    %170 = arith.addf %166, %169 : vector<16x32xf32>
    %171 = arith.addf %170, %143 : vector<16x32xf32>
    %c0_69 = arith.constant 0 : index
    %c0_70 = arith.constant 0 : index
    %c0_71 = arith.constant 0 : index
    %172 = vector.load %arg13[%c0_69, %c0_70, %c0_71] : memref<2x1x32xf32, #tpu.memory_space<vmem>>, vector<1x1x32xf32>
    %173 = vector.shape_cast %172 : vector<1x1x32xf32> to vector<1x32xf32>
    %c0_72 = arith.constant 0 : index
    %c0_73 = arith.constant 0 : index
    %c0_74 = arith.constant 0 : index
    %174 = vector.load %arg14[%c0_72, %c0_73, %c0_74] : memref<2x1x32xf32, #tpu.memory_space<vmem>>, vector<1x1x32xf32>
    %175 = vector.shape_cast %174 : vector<1x1x32xf32> to vector<1x32xf32>
    %cst_75 = arith.constant dense<0.000000e+00> : vector<16xf32>
    %176 = vector.multi_reduction <add>, %171, %cst_75 [1] : vector<16x32xf32> to vector<16xf32>
    %177 = vector.shape_cast %176 : vector<16xf32> to vector<16x1xf32>
    %cst_76 = arith.constant 3.200000e+01 : f32
    %178 = vector.broadcast %cst_76 : f32 to vector<16x1xf32>
    %179 = arith.divf %177, %178 : vector<16x1xf32>
    %180 = vector.broadcast %179 : vector<16x1xf32> to vector<16x32xf32>
    %181 = arith.subf %171, %180 : vector<16x32xf32>
    %182 = arith.mulf %181, %181 : vector<16x32xf32>
    %cst_77 = arith.constant dense<0.000000e+00> : vector<16xf32>
    %183 = vector.multi_reduction <add>, %182, %cst_77 [1] : vector<16x32xf32> to vector<16xf32>
    %184 = vector.shape_cast %183 : vector<16xf32> to vector<16x1xf32>
    %cst_78 = arith.constant 3.200000e+01 : f32
    %185 = vector.broadcast %cst_78 : f32 to vector<16x1xf32>
    %186 = arith.divf %184, %185 : vector<16x1xf32>
    %cst_79 = arith.constant 9.99999996E-13 : f32
    %187 = vector.broadcast %cst_79 : f32 to vector<16x1xf32>
    %188 = arith.addf %186, %187 : vector<16x1xf32>
    %189 = math.rsqrt %188 : vector<16x1xf32>
    %190 = vector.broadcast %189 : vector<16x1xf32> to vector<16x32xf32>
    %191 = arith.mulf %181, %190 : vector<16x32xf32>
    %192 = vector.broadcast %173 : vector<1x32xf32> to vector<16x32xf32>
    %193 = arith.mulf %191, %192 : vector<16x32xf32>
    %194 = vector.broadcast %175 : vector<1x32xf32> to vector<16x32xf32>
    %195 = arith.addf %193, %194 : vector<16x32xf32>
    %c1 = arith.constant 1 : index
    %c0_80 = arith.constant 0 : index
    %c0_81 = arith.constant 0 : index
    %196 = vector.load %arg3[%c1, %c0_80, %c0_81] : memref<2x32x96xf32, #tpu.memory_space<vmem>>, vector<1x32x96xf32>
    %197 = vector.shape_cast %196 : vector<1x32x96xf32> to vector<32x96xf32>
    %cst_82 = arith.constant dense<0.000000e+00> : vector<16x96xf32>
    %198 = tpu.matmul %195, %197, %cst_82 {dimension_numbers = #tpu.dot_dimension_numbers<[1], [0], [0], [1], [0, 0, 1, 1], [], []>} : vector<16x32xf32>, vector<32x96xf32>, vector<16x96xf32> -> vector<16x96xf32>
    %c1_83 = arith.constant 1 : index
    %c0_84 = arith.constant 0 : index
    %c0_85 = arith.constant 0 : index
    %199 = vector.load %arg4[%c1_83, %c0_84, %c0_85] : memref<2x1x96xf32, #tpu.memory_space<vmem>>, vector<1x1x96xf32>
    %200 = vector.shape_cast %199 : vector<1x1x96xf32> to vector<1x96xf32>
    %201 = vector.broadcast %200 : vector<1x96xf32> to vector<16x96xf32>
    %202 = arith.addf %198, %201 : vector<16x96xf32>
    %203 = vector.extract_strided_slice %202 {offsets = [0, 0], sizes = [16, 32], strides = [1, 1]} : vector<16x96xf32> to vector<16x32xf32>
    %cst_86 = arith.constant 0.353553385 : f32
    %204 = vector.broadcast %cst_86 : f32 to vector<16x32xf32>
    %205 = arith.mulf %203, %204 : vector<16x32xf32>
    %206 = vector.extract_strided_slice %202 {offsets = [0, 32], sizes = [16, 32], strides = [1, 1]} : vector<16x96xf32> to vector<16x32xf32>
    %207 = vector.extract_strided_slice %202 {offsets = [0, 64], sizes = [16, 32], strides = [1, 1]} : vector<16x96xf32> to vector<16x32xf32>
    %208 = vector.extract_strided_slice %205 {offsets = [0, 0], sizes = [16, 8], strides = [1, 1]} : vector<16x32xf32> to vector<16x8xf32>
    %209 = vector.shape_cast %208 : vector<16x8xf32> to vector<2x8x8xf32>
    %210 = vector.extract_strided_slice %206 {offsets = [0, 0], sizes = [16, 8], strides = [1, 1]} : vector<16x32xf32> to vector<16x8xf32>
    %211 = vector.shape_cast %210 : vector<16x8xf32> to vector<2x8x8xf32>
    %212 = vector.extract_strided_slice %207 {offsets = [0, 0], sizes = [16, 8], strides = [1, 1]} : vector<16x32xf32> to vector<16x8xf32>
    %213 = vector.shape_cast %212 : vector<16x8xf32> to vector<2x8x8xf32>
    "tpu.trace_start"() <{level = 10 : i32, message = "bqd,bkd->bqk"}> : () -> ()
    %cst_87 = arith.constant dense<0.000000e+00> : vector<2x8x8xf32>
    %214 = tpu.matmul %209, %211, %cst_87 {dimension_numbers = #tpu.dot_dimension_numbers<[2], [2], [1], [1], [0, 0, 0, 1, 1, 1], [0], [0]>} : vector<2x8x8xf32>, vector<2x8x8xf32>, vector<2x8x8xf32> -> vector<2x8x8xf32>
    "tpu.trace_stop"() : () -> ()
    %cst_88 = arith.constant dense<0xFF800000> : vector<2x8xf32>
    %215 = vector.multi_reduction <maximumf>, %214, %cst_88 [2] : vector<2x8x8xf32> to vector<2x8xf32>
    %216 = vector.shape_cast %215 : vector<2x8xf32> to vector<2x8x1xf32>
    %217 = vector.broadcast %216 : vector<2x8x1xf32> to vector<2x8x8xf32>
    %218 = arith.subf %214, %217 : vector<2x8x8xf32>
    %219 = math.exp %218 : vector<2x8x8xf32>
    %cst_89 = arith.constant dense<0.000000e+00> : vector<2x8xf32>
    %220 = vector.multi_reduction <add>, %219, %cst_89 [2] : vector<2x8x8xf32> to vector<2x8xf32>
    %221 = vector.shape_cast %220 : vector<2x8xf32> to vector<2x8x1xf32>
    %222 = tpu.reciprocal %221 {approx = true} : vector<2x8x1xf32> -> vector<2x8x1xf32>
    %223 = vector.broadcast %222 : vector<2x8x1xf32> to vector<2x8x8xf32>
    %224 = arith.mulf %219, %223 : vector<2x8x8xf32>
    "tpu.trace_start"() <{level = 10 : i32, message = "bqk,bkd->bqd"}> : () -> ()
    %cst_90 = arith.constant dense<0.000000e+00> : vector<2x8x8xf32>
    %225 = tpu.matmul %224, %213, %cst_90 {dimension_numbers = #tpu.dot_dimension_numbers<[2], [1], [1], [2], [0, 0, 0, 1, 1, 2], [0], [0]>} : vector<2x8x8xf32>, vector<2x8x8xf32>, vector<2x8x8xf32> -> vector<2x8x8xf32>
    "tpu.trace_stop"() : () -> ()
    %226 = vector.shape_cast %225 : vector<2x8x8xf32> to vector<16x8xf32>
    %227 = vector.extract_strided_slice %205 {offsets = [0, 8], sizes = [16, 8], strides = [1, 1]} : vector<16x32xf32> to vector<16x8xf32>
    %228 = vector.shape_cast %227 : vector<16x8xf32> to vector<2x8x8xf32>
    %229 = vector.extract_strided_slice %206 {offsets = [0, 8], sizes = [16, 8], strides = [1, 1]} : vector<16x32xf32> to vector<16x8xf32>
    %230 = vector.shape_cast %229 : vector<16x8xf32> to vector<2x8x8xf32>
    %231 = vector.extract_strided_slice %207 {offsets = [0, 8], sizes = [16, 8], strides = [1, 1]} : vector<16x32xf32> to vector<16x8xf32>
    %232 = vector.shape_cast %231 : vector<16x8xf32> to vector<2x8x8xf32>
    "tpu.trace_start"() <{level = 10 : i32, message = "bqd,bkd->bqk"}> : () -> ()
    %cst_91 = arith.constant dense<0.000000e+00> : vector<2x8x8xf32>
    %233 = tpu.matmul %228, %230, %cst_91 {dimension_numbers = #tpu.dot_dimension_numbers<[2], [2], [1], [1], [0, 0, 0, 1, 1, 1], [0], [0]>} : vector<2x8x8xf32>, vector<2x8x8xf32>, vector<2x8x8xf32> -> vector<2x8x8xf32>
    "tpu.trace_stop"() : () -> ()
    %cst_92 = arith.constant dense<0xFF800000> : vector<2x8xf32>
    %234 = vector.multi_reduction <maximumf>, %233, %cst_92 [2] : vector<2x8x8xf32> to vector<2x8xf32>
    %235 = vector.shape_cast %234 : vector<2x8xf32> to vector<2x8x1xf32>
    %236 = vector.broadcast %235 : vector<2x8x1xf32> to vector<2x8x8xf32>
    %237 = arith.subf %233, %236 : vector<2x8x8xf32>
    %238 = math.exp %237 : vector<2x8x8xf32>
    %cst_93 = arith.constant dense<0.000000e+00> : vector<2x8xf32>
    %239 = vector.multi_reduction <add>, %238, %cst_93 [2] : vector<2x8x8xf32> to vector<2x8xf32>
    %240 = vector.shape_cast %239 : vector<2x8xf32> to vector<2x8x1xf32>
    %241 = tpu.reciprocal %240 {approx = true} : vector<2x8x1xf32> -> vector<2x8x1xf32>
    %242 = vector.broadcast %241 : vector<2x8x1xf32> to vector<2x8x8xf32>
    %243 = arith.mulf %238, %242 : vector<2x8x8xf32>
    "tpu.trace_start"() <{level = 10 : i32, message = "bqk,bkd->bqd"}> : () -> ()
    %cst_94 = arith.constant dense<0.000000e+00> : vector<2x8x8xf32>
    %244 = tpu.matmul %243, %232, %cst_94 {dimension_numbers = #tpu.dot_dimension_numbers<[2], [1], [1], [2], [0, 0, 0, 1, 1, 2], [0], [0]>} : vector<2x8x8xf32>, vector<2x8x8xf32>, vector<2x8x8xf32> -> vector<2x8x8xf32>
    "tpu.trace_stop"() : () -> ()
    %245 = vector.shape_cast %244 : vector<2x8x8xf32> to vector<16x8xf32>
    %246 = vector.extract_strided_slice %205 {offsets = [0, 16], sizes = [16, 8], strides = [1, 1]} : vector<16x32xf32> to vector<16x8xf32>
    %247 = vector.shape_cast %246 : vector<16x8xf32> to vector<2x8x8xf32>
    %248 = vector.extract_strided_slice %206 {offsets = [0, 16], sizes = [16, 8], strides = [1, 1]} : vector<16x32xf32> to vector<16x8xf32>
    %249 = vector.shape_cast %248 : vector<16x8xf32> to vector<2x8x8xf32>
    %250 = vector.extract_strided_slice %207 {offsets = [0, 16], sizes = [16, 8], strides = [1, 1]} : vector<16x32xf32> to vector<16x8xf32>
    %251 = vector.shape_cast %250 : vector<16x8xf32> to vector<2x8x8xf32>
    "tpu.trace_start"() <{level = 10 : i32, message = "bqd,bkd->bqk"}> : () -> ()
    %cst_95 = arith.constant dense<0.000000e+00> : vector<2x8x8xf32>
    %252 = tpu.matmul %247, %249, %cst_95 {dimension_numbers = #tpu.dot_dimension_numbers<[2], [2], [1], [1], [0, 0, 0, 1, 1, 1], [0], [0]>} : vector<2x8x8xf32>, vector<2x8x8xf32>, vector<2x8x8xf32> -> vector<2x8x8xf32>
    "tpu.trace_stop"() : () -> ()
    %cst_96 = arith.constant dense<0xFF800000> : vector<2x8xf32>
    %253 = vector.multi_reduction <maximumf>, %252, %cst_96 [2] : vector<2x8x8xf32> to vector<2x8xf32>
    %254 = vector.shape_cast %253 : vector<2x8xf32> to vector<2x8x1xf32>
    %255 = vector.broadcast %254 : vector<2x8x1xf32> to vector<2x8x8xf32>
    %256 = arith.subf %252, %255 : vector<2x8x8xf32>
    %257 = math.exp %256 : vector<2x8x8xf32>
    %cst_97 = arith.constant dense<0.000000e+00> : vector<2x8xf32>
    %258 = vector.multi_reduction <add>, %257, %cst_97 [2] : vector<2x8x8xf32> to vector<2x8xf32>
    %259 = vector.shape_cast %258 : vector<2x8xf32> to vector<2x8x1xf32>
    %260 = tpu.reciprocal %259 {approx = true} : vector<2x8x1xf32> -> vector<2x8x1xf32>
    %261 = vector.broadcast %260 : vector<2x8x1xf32> to vector<2x8x8xf32>
    %262 = arith.mulf %257, %261 : vector<2x8x8xf32>
    "tpu.trace_start"() <{level = 10 : i32, message = "bqk,bkd->bqd"}> : () -> ()
    %cst_98 = arith.constant dense<0.000000e+00> : vector<2x8x8xf32>
    %263 = tpu.matmul %262, %251, %cst_98 {dimension_numbers = #tpu.dot_dimension_numbers<[2], [1], [1], [2], [0, 0, 0, 1, 1, 2], [0], [0]>} : vector<2x8x8xf32>, vector<2x8x8xf32>, vector<2x8x8xf32> -> vector<2x8x8xf32>
    "tpu.trace_stop"() : () -> ()
    %264 = vector.shape_cast %263 : vector<2x8x8xf32> to vector<16x8xf32>
    %265 = vector.extract_strided_slice %205 {offsets = [0, 24], sizes = [16, 8], strides = [1, 1]} : vector<16x32xf32> to vector<16x8xf32>
    %266 = vector.shape_cast %265 : vector<16x8xf32> to vector<2x8x8xf32>
    %267 = vector.extract_strided_slice %206 {offsets = [0, 24], sizes = [16, 8], strides = [1, 1]} : vector<16x32xf32> to vector<16x8xf32>
    %268 = vector.shape_cast %267 : vector<16x8xf32> to vector<2x8x8xf32>
    %269 = vector.extract_strided_slice %207 {offsets = [0, 24], sizes = [16, 8], strides = [1, 1]} : vector<16x32xf32> to vector<16x8xf32>
    %270 = vector.shape_cast %269 : vector<16x8xf32> to vector<2x8x8xf32>
    "tpu.trace_start"() <{level = 10 : i32, message = "bqd,bkd->bqk"}> : () -> ()
    %cst_99 = arith.constant dense<0.000000e+00> : vector<2x8x8xf32>
    %271 = tpu.matmul %266, %268, %cst_99 {dimension_numbers = #tpu.dot_dimension_numbers<[2], [2], [1], [1], [0, 0, 0, 1, 1, 1], [0], [0]>} : vector<2x8x8xf32>, vector<2x8x8xf32>, vector<2x8x8xf32> -> vector<2x8x8xf32>
    "tpu.trace_stop"() : () -> ()
    %cst_100 = arith.constant dense<0xFF800000> : vector<2x8xf32>
    %272 = vector.multi_reduction <maximumf>, %271, %cst_100 [2] : vector<2x8x8xf32> to vector<2x8xf32>
    %273 = vector.shape_cast %272 : vector<2x8xf32> to vector<2x8x1xf32>
    %274 = vector.broadcast %273 : vector<2x8x1xf32> to vector<2x8x8xf32>
    %275 = arith.subf %271, %274 : vector<2x8x8xf32>
    %276 = math.exp %275 : vector<2x8x8xf32>
    %cst_101 = arith.constant dense<0.000000e+00> : vector<2x8xf32>
    %277 = vector.multi_reduction <add>, %276, %cst_101 [2] : vector<2x8x8xf32> to vector<2x8xf32>
    %278 = vector.shape_cast %277 : vector<2x8xf32> to vector<2x8x1xf32>
    %279 = tpu.reciprocal %278 {approx = true} : vector<2x8x1xf32> -> vector<2x8x1xf32>
    %280 = vector.broadcast %279 : vector<2x8x1xf32> to vector<2x8x8xf32>
    %281 = arith.mulf %276, %280 : vector<2x8x8xf32>
    "tpu.trace_start"() <{level = 10 : i32, message = "bqk,bkd->bqd"}> : () -> ()
    %cst_102 = arith.constant dense<0.000000e+00> : vector<2x8x8xf32>
    %282 = tpu.matmul %281, %270, %cst_102 {dimension_numbers = #tpu.dot_dimension_numbers<[2], [1], [1], [2], [0, 0, 0, 1, 1, 2], [0], [0]>} : vector<2x8x8xf32>, vector<2x8x8xf32>, vector<2x8x8xf32> -> vector<2x8x8xf32>
    "tpu.trace_stop"() : () -> ()
    %283 = vector.shape_cast %282 : vector<2x8x8xf32> to vector<16x8xf32>
    %284 = tpu.concatenate %226, %245, %264, %283 in 1 : vector<16x8xf32>, vector<16x8xf32>, vector<16x8xf32>, vector<16x8xf32> -> vector<16x32xf32>
    %c1_103 = arith.constant 1 : index
    %c0_104 = arith.constant 0 : index
    %c0_105 = arith.constant 0 : index
    %285 = vector.load %arg5[%c1_103, %c0_104, %c0_105] : memref<2x32x32xf32, #tpu.memory_space<vmem>>, vector<1x32x32xf32>
    %286 = vector.shape_cast %285 : vector<1x32x32xf32> to vector<32x32xf32>
    %cst_106 = arith.constant dense<0.000000e+00> : vector<16x32xf32>
    %287 = tpu.matmul %284, %286, %cst_106 {dimension_numbers = #tpu.dot_dimension_numbers<[1], [0], [0], [1], [0, 0, 1, 1], [], []>} : vector<16x32xf32>, vector<32x32xf32>, vector<16x32xf32> -> vector<16x32xf32>
    %c1_107 = arith.constant 1 : index
    %c0_108 = arith.constant 0 : index
    %c0_109 = arith.constant 0 : index
    %288 = vector.load %arg6[%c1_107, %c0_108, %c0_109] : memref<2x1x32xf32, #tpu.memory_space<vmem>>, vector<1x1x32xf32>
    %289 = vector.shape_cast %288 : vector<1x1x32xf32> to vector<1x32xf32>
    %290 = vector.broadcast %289 : vector<1x32xf32> to vector<16x32xf32>
    %291 = arith.addf %287, %290 : vector<16x32xf32>
    %292 = arith.addf %291, %195 : vector<16x32xf32>
    %c1_110 = arith.constant 1 : index
    %c0_111 = arith.constant 0 : index
    %c0_112 = arith.constant 0 : index
    %293 = vector.load %arg7[%c1_110, %c0_111, %c0_112] : memref<2x1x32xf32, #tpu.memory_space<vmem>>, vector<1x1x32xf32>
    %294 = vector.shape_cast %293 : vector<1x1x32xf32> to vector<1x32xf32>
    %c1_113 = arith.constant 1 : index
    %c0_114 = arith.constant 0 : index
    %c0_115 = arith.constant 0 : index
    %295 = vector.load %arg8[%c1_113, %c0_114, %c0_115] : memref<2x1x32xf32, #tpu.memory_space<vmem>>, vector<1x1x32xf32>
    %296 = vector.shape_cast %295 : vector<1x1x32xf32> to vector<1x32xf32>
    %cst_116 = arith.constant dense<0.000000e+00> : vector<16xf32>
    %297 = vector.multi_reduction <add>, %292, %cst_116 [1] : vector<16x32xf32> to vector<16xf32>
    %298 = vector.shape_cast %297 : vector<16xf32> to vector<16x1xf32>
    %cst_117 = arith.constant 3.200000e+01 : f32
    %299 = vector.broadcast %cst_117 : f32 to vector<16x1xf32>
    %300 = arith.divf %298, %299 : vector<16x1xf32>
    %301 = vector.broadcast %300 : vector<16x1xf32> to vector<16x32xf32>
    %302 = arith.subf %292, %301 : vector<16x32xf32>
    %303 = arith.mulf %302, %302 : vector<16x32xf32>
    %cst_118 = arith.constant dense<0.000000e+00> : vector<16xf32>
    %304 = vector.multi_reduction <add>, %303, %cst_118 [1] : vector<16x32xf32> to vector<16xf32>
    %305 = vector.shape_cast %304 : vector<16xf32> to vector<16x1xf32>
    %cst_119 = arith.constant 3.200000e+01 : f32
    %306 = vector.broadcast %cst_119 : f32 to vector<16x1xf32>
    %307 = arith.divf %305, %306 : vector<16x1xf32>
    %cst_120 = arith.constant 9.99999996E-13 : f32
    %308 = vector.broadcast %cst_120 : f32 to vector<16x1xf32>
    %309 = arith.addf %307, %308 : vector<16x1xf32>
    %310 = math.rsqrt %309 : vector<16x1xf32>
    %311 = vector.broadcast %310 : vector<16x1xf32> to vector<16x32xf32>
    %312 = arith.mulf %302, %311 : vector<16x32xf32>
    %313 = vector.broadcast %294 : vector<1x32xf32> to vector<16x32xf32>
    %314 = arith.mulf %312, %313 : vector<16x32xf32>
    %315 = vector.broadcast %296 : vector<1x32xf32> to vector<16x32xf32>
    %316 = arith.addf %314, %315 : vector<16x32xf32>
    %c1_121 = arith.constant 1 : index
    %c0_122 = arith.constant 0 : index
    %c0_123 = arith.constant 0 : index
    %317 = vector.load %arg9[%c1_121, %c0_122, %c0_123] : memref<2x32x64xf32, #tpu.memory_space<vmem>>, vector<1x32x64xf32>
    %318 = vector.shape_cast %317 : vector<1x32x64xf32> to vector<32x64xf32>
    %cst_124 = arith.constant dense<0.000000e+00> : vector<16x64xf32>
    %319 = tpu.matmul %316, %318, %cst_124 {dimension_numbers = #tpu.dot_dimension_numbers<[1], [0], [0], [1], [0, 0, 1, 1], [], []>} : vector<16x32xf32>, vector<32x64xf32>, vector<16x64xf32> -> vector<16x64xf32>
    %c1_125 = arith.constant 1 : index
    %c0_126 = arith.constant 0 : index
    %c0_127 = arith.constant 0 : index
    %320 = vector.load %arg10[%c1_125, %c0_126, %c0_127] : memref<2x1x64xf32, #tpu.memory_space<vmem>>, vector<1x1x64xf32>
    %321 = vector.shape_cast %320 : vector<1x1x64xf32> to vector<1x64xf32>
    %322 = vector.broadcast %321 : vector<1x64xf32> to vector<16x64xf32>
    %323 = arith.addf %319, %322 : vector<16x64xf32>
    %cst_128 = arith.constant 5.000000e-01 : f32
    %324 = vector.broadcast %cst_128 : f32 to vector<16x64xf32>
    %325 = arith.mulf %324, %323 : vector<16x64xf32>
    %cst_129 = arith.constant 4.471500e-02 : f32
    %326 = vector.broadcast %cst_129 : f32 to vector<16x64xf32>
    %327 = arith.mulf %326, %323 : vector<16x64xf32>
    %328 = arith.mulf %327, %323 : vector<16x64xf32>
    %329 = arith.mulf %328, %323 : vector<16x64xf32>
    %330 = arith.addf %323, %329 : vector<16x64xf32>
    %cst_130 = arith.constant 0.797884583 : f32
    %331 = vector.broadcast %cst_130 : f32 to vector<16x64xf32>
    %332 = arith.mulf %331, %330 : vector<16x64xf32>
    %333 = math.tanh %332 : vector<16x64xf32>
    %cst_131 = arith.constant 1.000000e+00 : f32
    %334 = vector.broadcast %cst_131 : f32 to vector<16x64xf32>
    %335 = arith.addf %334, %333 : vector<16x64xf32>
    %336 = arith.mulf %325, %335 : vector<16x64xf32>
    %c1_132 = arith.constant 1 : index
    %c0_133 = arith.constant 0 : index
    %c0_134 = arith.constant 0 : index
    %337 = vector.load %arg11[%c1_132, %c0_133, %c0_134] : memref<2x64x32xf32, #tpu.memory_space<vmem>>, vector<1x64x32xf32>
    %338 = vector.shape_cast %337 : vector<1x64x32xf32> to vector<64x32xf32>
    %cst_135 = arith.constant dense<0.000000e+00> : vector<16x32xf32>
    %339 = tpu.matmul %336, %338, %cst_135 {dimension_numbers = #tpu.dot_dimension_numbers<[1], [0], [0], [1], [0, 0, 1, 1], [], []>} : vector<16x64xf32>, vector<64x32xf32>, vector<16x32xf32> -> vector<16x32xf32>
    %c1_136 = arith.constant 1 : index
    %c0_137 = arith.constant 0 : index
    %c0_138 = arith.constant 0 : index
    %340 = vector.load %arg12[%c1_136, %c0_137, %c0_138] : memref<2x1x32xf32, #tpu.memory_space<vmem>>, vector<1x1x32xf32>
    %341 = vector.shape_cast %340 : vector<1x1x32xf32> to vector<1x32xf32>
    %342 = vector.broadcast %341 : vector<1x32xf32> to vector<16x32xf32>
    %343 = arith.addf %339, %342 : vector<16x32xf32>
    %344 = arith.addf %343, %316 : vector<16x32xf32>
    %c1_139 = arith.constant 1 : index
    %c0_140 = arith.constant 0 : index
    %c0_141 = arith.constant 0 : index
    %345 = vector.load %arg13[%c1_139, %c0_140, %c0_141] : memref<2x1x32xf32, #tpu.memory_space<vmem>>, vector<1x1x32xf32>
    %346 = vector.shape_cast %345 : vector<1x1x32xf32> to vector<1x32xf32>
    %c1_142 = arith.constant 1 : index
    %c0_143 = arith.constant 0 : index
    %c0_144 = arith.constant 0 : index
    %347 = vector.load %arg14[%c1_142, %c0_143, %c0_144] : memref<2x1x32xf32, #tpu.memory_space<vmem>>, vector<1x1x32xf32>
    %348 = vector.shape_cast %347 : vector<1x1x32xf32> to vector<1x32xf32>
    %cst_145 = arith.constant dense<0.000000e+00> : vector<16xf32>
    %349 = vector.multi_reduction <add>, %344, %cst_145 [1] : vector<16x32xf32> to vector<16xf32>
    %350 = vector.shape_cast %349 : vector<16xf32> to vector<16x1xf32>
    %cst_146 = arith.constant 3.200000e+01 : f32
    %351 = vector.broadcast %cst_146 : f32 to vector<16x1xf32>
    %352 = arith.divf %350, %351 : vector<16x1xf32>
    %353 = vector.broadcast %352 : vector<16x1xf32> to vector<16x32xf32>
    %354 = arith.subf %344, %353 : vector<16x32xf32>
    %355 = arith.mulf %354, %354 : vector<16x32xf32>
    %cst_147 = arith.constant dense<0.000000e+00> : vector<16xf32>
    %356 = vector.multi_reduction <add>, %355, %cst_147 [1] : vector<16x32xf32> to vector<16xf32>
    %357 = vector.shape_cast %356 : vector<16xf32> to vector<16x1xf32>
    %cst_148 = arith.constant 3.200000e+01 : f32
    %358 = vector.broadcast %cst_148 : f32 to vector<16x1xf32>
    %359 = arith.divf %357, %358 : vector<16x1xf32>
    %cst_149 = arith.constant 9.99999996E-13 : f32
    %360 = vector.broadcast %cst_149 : f32 to vector<16x1xf32>
    %361 = arith.addf %359, %360 : vector<16x1xf32>
    %362 = math.rsqrt %361 : vector<16x1xf32>
    %363 = vector.broadcast %362 : vector<16x1xf32> to vector<16x32xf32>
    %364 = arith.mulf %354, %363 : vector<16x32xf32>
    %365 = vector.broadcast %346 : vector<1x32xf32> to vector<16x32xf32>
    %366 = arith.mulf %364, %365 : vector<16x32xf32>
    %367 = vector.broadcast %348 : vector<1x32xf32> to vector<16x32xf32>
    %368 = arith.addf %366, %367 : vector<16x32xf32>
    %369 = vector.shape_cast %368 : vector<16x32xf32> to vector<2x8x32xf32>
    %cst_150 = arith.constant dense<0.000000e+00> : vector<2x32xf32>
    %370 = vector.multi_reduction <add>, %369, %cst_150 [1] : vector<2x8x32xf32> to vector<2x32xf32>
    %cst_151 = arith.constant 8.000000e+00 : f32
    %371 = vector.broadcast %cst_151 : f32 to vector<2x32xf32>
    %372 = arith.divf %370, %371 : vector<2x32xf32>
    %c0_152 = arith.constant 0 : index
    %c0_153 = arith.constant 0 : index
    %373 = vector.load %arg15[%c0_152, %c0_153] : memref<2x32xf32, #tpu.memory_space<vmem>>, vector<2x32xf32>
    tpu.vector_store %arg15[%c0_152, %c0_153], %372 {strides = array<i32>} : memref<2x32xf32, #tpu.memory_space<vmem>>, vector<2x32xf32>,
    return
  }
}

</mosaic_0001>

<llo_original>
// kernel: encoder_bert_forward.1
$region0: #{encoder_bert_forward.1}
  #allocation0 [shape = 'u32[]', space=smem, size = 0x4, offset = 0x4, fixed_abs, tag = 'smem constant byte address 0x4 - core index']
  #allocation1 [shape = 'u32[144,128]{1,0:T(1,128)}', space=vmem, size = 0x12000, scoped, tag = 'internal scratch']
  %s0 = inlined_call_operand.vmem [shape: f32[16,32], index: 0, kind: input, shape index: {}]
  %s1 = inlined_call_operand.vmem [shape: f32[1,32], index: 1, kind: input, shape index: {}]
  %s2 = inlined_call_operand.vmem [shape: f32[1,32], index: 2, kind: input, shape index: {}]
  %s3 = inlined_call_operand.vmem [shape: f32[2,32,96], index: 3, kind: input, shape index: {}]
  %s4 = inlined_call_operand.vmem [shape: f32[2,1,96], index: 4, kind: input, shape index: {}]
  %s5 = inlined_call_operand.vmem [shape: f32[2,32,32], index: 5, kind: input, shape index: {}]
  %s6 = inlined_call_operand.vmem [shape: f32[2,1,32], index: 6, kind: input, shape index: {}]
  %s7 = inlined_call_operand.vmem [shape: f32[2,1,32], index: 7, kind: input, shape index: {}]
  %s8 = inlined_call_operand.vmem [shape: f32[2,1,32], index: 8, kind: input, shape index: {}]
  %s9 = inlined_call_operand.vmem [shape: f32[2,32,64], index: 9, kind: input, shape index: {}]
  %s10 = inlined_call_operand.vmem [shape: f32[2,1,64], index: 10, kind: input, shape index: {}]
  %s11 = inlined_call_operand.vmem [shape: f32[2,64,32], index: 11, kind: input, shape index: {}]
  %s12 = inlined_call_operand.vmem [shape: f32[2,1,32], index: 12, kind: input, shape index: {}]
  %s13 = inlined_call_operand.vmem [shape: f32[2,1,32], index: 13, kind: input, shape index: {}]
  %s14 = inlined_call_operand.vmem [shape: f32[2,1,32], index: 14, kind: input, shape index: {}]
  %s15 = inlined_call_operand.hbm [shape: f32[2,32], index: 15, kind: output, shape index: {}]
  %s16 = sld [smem:[#allocation0]]
  $region70: #{encoder_bert_forward.1} parent=0
    _
  %s18 = ssub.s32 1, %s16
  %s19 = scalar_select 0, %s18, %s16
  $region1: #{encoder_bert_forward.1} parent=0
    #allocation2 [shape = 'u8[1024]{0}', space=vmem, size = 0x400, scoped, tag = 'output window, operand 0, single buffered']
    #allocation3 [shape = 's32[1]{0}', space=sflag, size = 0x4, scoped, tag = 'scoped memory for encoder_bert_forward.1']
    %20 = vsyncpa [#allocation3], 0
    // Predicated region
    $region2: #{encoder_bert_forward.1} parent=1 // pred_check
      _
    $region3: #{encoder_bert_forward.1} parent=1 // pred_check_branch
      %22 = sbr.rel (0) target = $region5
    $region4: #{encoder_bert_forward.1} parent=1 // pred_region
      _
    $region5: #{encoder_bert_forward.1} parent=1 // pred_fallthru
      _
    // Predicated region
    $region6: #{encoder_bert_forward.1} parent=1 // pred_check
      _
    $region7: #{encoder_bert_forward.1} parent=1 // pred_check_branch
      %24 = sbr.rel (0) target = $region9
    $region8: #{encoder_bert_forward.1} parent=1 // pred_region
      _
    $region9: #{encoder_bert_forward.1} parent=1 // pred_fallthru
      _
    // Predicated region
    $region10: #{encoder_bert_forward.1} parent=1 // pred_check
      _
    $region11: #{encoder_bert_forward.1} parent=1 // pred_check_branch
      %26 = sbr.rel (0) target = $region13
    $region12: #{encoder_bert_forward.1} parent=1 // pred_region
      _
    $region13: #{encoder_bert_forward.1} parent=1 // pred_fallthru
      _
    // Predicated region
    $region14: #{encoder_bert_forward.1} parent=1 // pred_check
      _
    $region15: #{encoder_bert_forward.1} parent=1 // pred_check_branch
      %28 = sbr.rel (0) target = $region17
    $region16: #{encoder_bert_forward.1} parent=1 // pred_region
      _
    $region17: #{encoder_bert_forward.1} parent=1 // pred_fallthru
      _
    // Predicated region
    $region18: #{encoder_bert_forward.1} parent=1 // pred_check
      _
    $region19: #{encoder_bert_forward.1} parent=1 // pred_check_branch
      %30 = sbr.rel (0) target = $region21
    $region20: #{encoder_bert_forward.1} parent=1 // pred_region
      _
    $region21: #{encoder_bert_forward.1} parent=1 // pred_fallthru
      _
    // Predicated region
    $region22: #{encoder_bert_forward.1} parent=1 // pred_check
      _
    $region23: #{encoder_bert_forward.1} parent=1 // pred_check_branch
      %32 = sbr.rel (0) target = $region25
    $region24: #{encoder_bert_forward.1} parent=1 // pred_region
      _
    $region25: #{encoder_bert_forward.1} parent=1 // pred_fallthru
      _
    // Predicated region
    $region26: #{encoder_bert_forward.1} parent=1 // pred_check
      _
    $region27: #{encoder_bert_forward.1} parent=1 // pred_check_branch
      %34 = sbr.rel (0) target = $region29
    $region28: #{encoder_bert_forward.1} parent=1 // pred_region
      _
    $region29: #{encoder_bert_forward.1} parent=1 // pred_fallthru
      _
    // Predicated region
    $region30: #{encoder_bert_forward.1} parent=1 // pred_check
      _
    $region31: #{encoder_bert_forward.1} parent=1 // pred_check_branch
      %36 = sbr.rel (0) target = $region33
    $region32: #{encoder_bert_forward.1} parent=1 // pred_region
      _
    $region33: #{encoder_bert_forward.1} parent=1 // pred_fallthru
      _
    // Predicated region
    $region34: #{encoder_bert_forward.1} parent=1 // pred_check
      _
    $region35: #{encoder_bert_forward.1} parent=1 // pred_check_branch
      %38 = sbr.rel (0) target = $region37
    $region36: #{encoder_bert_forward.1} parent=1 // pred_region
      _
    $region37: #{encoder_bert_forward.1} parent=1 // pred_fallthru
      _
    // Predicated region
    $region38: #{encoder_bert_forward.1} parent=1 // pred_check
      _
    $region39: #{encoder_bert_forward.1} parent=1 // pred_check_branch
      %40 = sbr.rel (0) target = $region41
    $region40: #{encoder_bert_forward.1} parent=1 // pred_region
      _
    $region41: #{encoder_bert_forward.1} parent=1 // pred_fallthru
      _
    // Predicated region
    $region42: #{encoder_bert_forward.1} parent=1 // pred_check
      _
    $region43: #{encoder_bert_forward.1} parent=1 // pred_check_branch
      %42 = sbr.rel (0) target = $region45
    $region44: #{encoder_bert_forward.1} parent=1 // pred_region
      _
    $region45: #{encoder_bert_forward.1} parent=1 // pred_fallthru
      _
    // Predicated region
    $region46: #{encoder_bert_forward.1} parent=1 // pred_check
      _
    $region47: #{encoder_bert_forward.1} parent=1 // pred_check_branch
      %44 = sbr.rel (0) target = $region49
    $region48: #{encoder_bert_forward.1} parent=1 // pred_region
      _
    $region49: #{encoder_bert_forward.1} parent=1 // pred_fallthru
      _
    // Predicated region
    $region50: #{encoder_bert_forward.1} parent=1 // pred_check
      _
    $region51: #{encoder_bert_forward.1} parent=1 // pred_check_branch
      %46 = sbr.rel (0) target = $region53
    $region52: #{encoder_bert_forward.1} parent=1 // pred_region
      _
    $region53: #{encoder_bert_forward.1} parent=1 // pred_fallthru
      _
    // Predicated region
    $region54: #{encoder_bert_forward.1} parent=1 // pred_check
      _
    $region55: #{encoder_bert_forward.1} parent=1 // pred_check_branch
      %48 = sbr.rel (0) target = $region57
    $region56: #{encoder_bert_forward.1} parent=1 // pred_region
      _
    $region57: #{encoder_bert_forward.1} parent=1 // pred_fallthru
      _
    // Predicated region
    $region58: #{encoder_bert_forward.1} parent=1 // pred_check
      _
    $region59: #{encoder_bert_forward.1} parent=1 // pred_check_branch
      %50 = sbr.rel (0) target = $region61
    $region60: #{encoder_bert_forward.1} parent=1 // pred_region
      _
    $region61: #{encoder_bert_forward.1} parent=1 // pred_fallthru
      _
    %v51 = vld [vmem:[%s0] sm:$0xff]
    %v52 = vld [vmem:[%s0 + $0x8] sm:$0xff]
    %v53 = vld [vmem:[%s1] sm:$0x1]
    %v54 = vld [vmem:[%s2] sm:$0x1]
    %vm55 = vcmask 261120
    %v56 = vsel %vm55, %v51, 0.0
    %57 = vadd.xlane.f32.xlu0 %v56
    %v58 = vpop.xlane.xlu0 %57
    %v59 = vsel %vm55, %v52, 0.0
    %60 = vadd.xlane.f32.xlu0 %v59
    %v61 = vpop.xlane.xlu0 %60
    %v62 = vrcp.pop 32.0
    %v63 = vmul.f32 %v58, %v62
    %v64 = vmul.f32 %v61, %v62
    %v65 = vsub.f32 %v51, %v63
    %v66 = vsub.f32 %v52, %v64
    %v67 = vmul.f32 %v65, %v65
    %v68 = vmul.f32 %v66, %v66
    %v69 = vsel %vm55, %v67, 0.0
    %70 = vadd.xlane.f32.xlu0 %v69
    %v71 = vpop.xlane.xlu0 %70
    %v72 = vsel %vm55, %v68, 0.0
    %73 = vadd.xlane.f32.xlu0 %v72
    %v74 = vpop.xlane.xlu0 %73
    %v75 = vmul.f32 %v71, %v62
    %v76 = vmul.f32 %v74, %v62
    %v77 = vadd.f32 %v75, 1e-12
    %v78 = vadd.f32 %v76, 1e-12
    %v79 = vrsqrt.pop %v77
    %v80 = vrsqrt.pop %v78
    %v81 = vmul.f32 %v65, %v79
    %v82 = vmul.f32 %v66, %v80
    %v84 = vlaneseq
    %v85 = vshrl.u32 %v84, 7
    %v86 = vsub.s32 0, %v85
    %v87 = vrot.slane %v53, %v86
    %v89 = vmul.f32 %v81, %v87
    %v90 = vmul.f32 %v82, %v87
    %v92 = vlaneseq
    %v93 = vshrl.u32 %v92, 7
    %v94 = vsub.s32 0, %v93
    %v95 = vrot.slane %v54, %v94
    %v97 = vadd.f32 %v89, %v95
    %v98 = vadd.f32 %v90, %v95
    %v99 = vld [vmem:[%s3] sm:$0xff]
    %v100 = vld [vmem:[%s3 + $0x8] sm:$0xff]
    %v101 = vld [vmem:[%s3 + $0x10] sm:$0xff]
    %v102 = vld [vmem:[%s3 + $0x18] sm:$0xff]
    %v103 = vld [vmem:[%s4] sm:$0x1]
    %v105 = vlaneseq
    %v106 = vshrl.u32 %v105, 7
    %v107 = vsub.s32 0, %v106
    %v108 = vrot.slane %v103, %v107
    %v111 = vsel %vm55, %v97, 0
    %v114 = vsel %vm55, %v98, 0
    %116 = vmatprep.subr.mxu0 0.0
    %117 = vmatpush1.msra.mxu0 0.0
    %118 = vmatprep.subr.mxu0 0.0
    %119 = vmatpush1.msra.mxu0 0.0
    %120 = vmatprep.subr.mxu0 0.0
    %121 = vmatpush1.msra.mxu0 0.0
    %122 = vmatprep.subr.mxu0 0.0
    %123 = vmatpush1.msra.mxu0 0.0
    %124 = vmatprep.subr.mxu0 0.0
    %125 = vmatpush1.msra.mxu0 0.0
    %126 = vmatprep.subr.mxu0 0.0
    %127 = vmatpush1.msra.mxu0 0.0
    %128 = vmatprep.subr.mxu0 0.0
    %129 = vmatpush1.msra.mxu0 0.0
    %130 = vmatprep.subr.mxu0 0.0
    %131 = vmatpush1.msra.mxu0 0.0
    %132 = vmatprep.subr.mxu0 0.0
    %133 = vmatpush1.msra.mxu0 0.0
    %134 = vmatprep.subr.mxu0 0.0
    %135 = vmatpush1.msra.mxu0 0.0
    %136 = vmatprep.subr.mxu0 0.0
    %137 = vmatpush1.msra.mxu0 0.0
    %138 = vmatprep.subr.mxu0 0.0
    %139 = vmatpush1.msra.mxu0 0.0
    %140 = vmatprep.subr.mxu0 0.0
    %141 = vmatpush1.msra.mxu0 %v102
    %142 = vmatprep.subr.mxu0 0.0
    %143 = vmatpush1.msra.mxu0 %v101
    %144 = vmatprep.subr.mxu0 0.0
    %145 = vmatpush1.msra.mxu0 %v100
    %146 = vmatprep.subr.mxu0 0.0
    %147 = vmatpush1.msra.mxu0 %v99
    %148 = vmatprep.subr.mxu0 0.0
    %149 = vmatpush2.msra.mxu0 0.0
    %150 = vmatprep.subr.mxu0 0.0
    %151 = vmatpush2.msra.mxu0 0.0
    %152 = vmatprep.subr.mxu0 0.0
    %153 = vmatpush2.msra.mxu0 0.0
    %154 = vmatprep.subr.mxu0 0.0
    %155 = vmatpush2.msra.mxu0 0.0
    %156 = vmatprep.subr.mxu0 0.0
    %157 = vmatpush2.msra.mxu0 0.0
    %158 = vmatprep.subr.mxu0 0.0
    %159 = vmatpush2.msra.mxu0 0.0
    %160 = vmatprep.subr.mxu0 0.0
    %161 = vmatpush2.msra.mxu0 0.0
    %162 = vmatprep.subr.mxu0 0.0
    %163 = vmatpush2.msra.mxu0 0.0
    %164 = vmatprep.subr.mxu0 0.0
    %165 = vmatpush2.msra.mxu0 0.0
    %166 = vmatprep.subr.mxu0 0.0
    %167 = vmatpush2.msra.mxu0 0.0
    %168 = vmatprep.subr.mxu0 0.0
    %169 = vmatpush2.msra.mxu0 0.0
    %170 = vmatprep.subr.mxu0 0.0
    %171 = vmatpush2.msra.mxu0 0.0
    %172 = vmatprep.subr.mxu0 0.0
    %173 = vmatpush2.msra.mxu0 0.0
    %174 = vmatprep.subr.mxu0 0.0
    %175 = vmatpush2.msra.mxu0 0.0
    %176 = vmatprep.subr.mxu0 0.0
    %177 = vmatpush2.msra.mxu0 0.0
    %178 = vmatprep.subr.mxu0 0.0
    %179 = vmatpush2.msra.mxu0 0.0
    %180 = vmatprep.mubr.f32.mxu0 0.0
    %181 = vmatmul.mubr.f32.gmra.mxu0 %v111
    %v182 = vpop.f32.mrf.mxu0
    %v183 = vadd.f32 %v108, %v182
    %v184 = vpop.f32.mrf.mxu0
    %185 = vmatprep.mubr.f32.mxu0 0.0
    %186 = vmatmul.mubr.f32.gmra.mxu0 %v114
    %v187 = vpop.f32.mrf.mxu0
    %v188 = vadd.f32 %v108, %v187
    %v189 = vpop.f32.mrf.mxu0
    %190 = vdwg.mxu0
    %v191 = vmul.f32 %v183, 0.35355338
    %v192 = vmul.f32 %v188, 0.35355338
    %194 = vrot.lane.b32.xlu0 %v183, 96
    %v195 = vpop.permute.xlu0 %194
    %vm196 = vcmask 64512
    %v198 = vsel %vm196, %v191, 0
    %v200 = vsel %vm196, %v195, 0
    %202 = vmatprep.subr.mxu0 0.0
    %203 = vmatpush1.xpose.msra.mxu0 0.0
    %204 = vmatprep.subr.mxu0 0.0
    %205 = vmatpush1.xpose.msra.mxu0 0.0
    %206 = vmatprep.subr.mxu0 0.0
    %207 = vmatpush1.xpose.msra.mxu0 0.0
    %208 = vmatprep.subr.mxu0 0.0
    %209 = vmatpush1.xpose.msra.mxu0 0.0
    %210 = vmatprep.subr.mxu0 0.0
    %211 = vmatpush1.xpose.msra.mxu0 0.0
    %212 = vmatprep.subr.mxu0 0.0
    %213 = vmatpush1.xpose.msra.mxu0 0.0
    %214 = vmatprep.subr.mxu0 0.0
    %215 = vmatpush1.xpose.msra.mxu0 0.0
    %216 = vmatprep.subr.mxu0 0.0
    %217 = vmatpush1.xpose.msra.mxu0 0.0
    %218 = vmatprep.subr.mxu0 0.0
    %219 = vmatpush1.xpose.msra.mxu0 0.0
    %220 = vmatprep.subr.mxu0 0.0
    %221 = vmatpush1.xpose.msra.mxu0 0.0
    %222 = vmatprep.subr.mxu0 0.0
    %223 = vmatpush1.xpose.msra.mxu0 0.0
    %224 = vmatprep.subr.mxu0 0.0
    %225 = vmatpush1.xpose.msra.mxu0 0.0
    %226 = vmatprep.subr.mxu0 0.0
    %227 = vmatpush1.xpose.msra.mxu0 0.0
    %228 = vmatprep.subr.mxu0 0.0
    %229 = vmatpush1.xpose.msra.mxu0 0.0
    %230 = vmatprep.subr.mxu0 0.0
    %231 = vmatpush1.xpose.msra.mxu0 0.0
    %232 = vmatprep.subr.mxu0 0.0
    %233 = vmatpush1.xpose.msra.mxu0 %v200
    %234 = vmatprep.subr.mxu0 0.0
    %235 = vmatpush2.xpose.msra.mxu0 0.0
    %236 = vmatprep.subr.mxu0 0.0
    %237 = vmatpush2.xpose.msra.mxu0 0.0
    %238 = vmatprep.subr.mxu0 0.0
    %239 = vmatpush2.xpose.msra.mxu0 0.0
    %240 = vmatprep.subr.mxu0 0.0
    %241 = vmatpush2.xpose.msra.mxu0 0.0
    %242 = vmatprep.subr.mxu0 0.0
    %243 = vmatpush2.xpose.msra.mxu0 0.0
    %244 = vmatprep.subr.mxu0 0.0
    %245 = vmatpush2.xpose.msra.mxu0 0.0
    %246 = vmatprep.subr.mxu0 0.0
    %247 = vmatpush2.xpose.msra.mxu0 0.0
    %248 = vmatprep.subr.mxu0 0.0
    %249 = vmatpush2.xpose.msra.mxu0 0.0
    %250 = vmatprep.subr.mxu0 0.0
    %251 = vmatpush2.xpose.msra.mxu0 0.0
    %252 = vmatprep.subr.mxu0 0.0
    %253 = vmatpush2.xpose.msra.mxu0 0.0
    %254 = vmatprep.subr.mxu0 0.0
    %255 = vmatpush2.xpose.msra.mxu0 0.0
    %256 = vmatprep.subr.mxu0 0.0
    %257 = vmatpush2.xpose.msra.mxu0 0.0
    %258 = vmatprep.subr.mxu0 0.0
    %259 = vmatpush2.xpose.msra.mxu0 0.0
    %260 = vmatprep.subr.mxu0 0.0
    %261 = vmatpush2.xpose.msra.mxu0 0.0
    %262 = vmatprep.subr.mxu0 0.0
    %263 = vmatpush2.xpose.msra.mxu0 0.0
    %264 = vmatprep.subr.mxu0 0.0
    %265 = vmatpush2.xpose.msra.mxu0 0.0
    %266 = vmatprep.mubr.f32.mxu0 0.0
    %267 = vmatmul.mubr.f32.gmra.mxu0 %v198
    %v268 = vpop.f32.mrf.mxu0
    %v269 = vadd.f32 0.0, %v268
    %v270 = vpop.f32.mrf.mxu0
    %271 = vdwg.mxu0
    %273 = vrot.lane.b32.xlu0 %v188, 96
    %v274 = vpop.permute.xlu0 %273
    %v276 = vsel %vm196, %v192, 0
    %v278 = vsel %vm196, %v274, 0
    %280 = vmatprep.subr.mxu0 0.0
    %281 = vmatpush1.xpose.msra.mxu0 0.0
    %282 = vmatprep.subr.mxu0 0.0
    %283 = vmatpush1.xpose.msra.mxu0 0.0
    %284 = vmatprep.subr.mxu0 0.0
    %285 = vmatpush1.xpose.msra.mxu0 0.0
    %286 = vmatprep.subr.mxu0 0.0
    %287 = vmatpush1.xpose.msra.mxu0 0.0
    %288 = vmatprep.subr.mxu0 0.0
    %289 = vmatpush1.xpose.msra.mxu0 0.0
    %290 = vmatprep.subr.mxu0 0.0
    %291 = vmatpush1.xpose.msra.mxu0 0.0
    %292 = vmatprep.subr.mxu0 0.0
    %293 = vmatpush1.xpose.msra.mxu0 0.0
    %294 = vmatprep.subr.mxu0 0.0
    %295 = vmatpush1.xpose.msra.mxu0 0.0
    %296 = vmatprep.subr.mxu0 0.0
    %297 = vmatpush1.xpose.msra.mxu0 0.0
    %298 = vmatprep.subr.mxu0 0.0
    %299 = vmatpush1.xpose.msra.mxu0 0.0
    %300 = vmatprep.subr.mxu0 0.0
    %301 = vmatpush1.xpose.msra.mxu0 0.0
    %302 = vmatprep.subr.mxu0 0.0
    %303 = vmatpush1.xpose.msra.mxu0 0.0
    %304 = vmatprep.subr.mxu0 0.0
    %305 = vmatpush1.xpose.msra.mxu0 0.0
    %306 = vmatprep.subr.mxu0 0.0
    %307 = vmatpush1.xpose.msra.mxu0 0.0
    %308 = vmatprep.subr.mxu0 0.0
    %309 = vmatpush1.xpose.msra.mxu0 0.0
    %310 = vmatprep.subr.mxu0 0.0
    %311 = vmatpush1.xpose.msra.mxu0 %v278
    %312 = vmatprep.subr.mxu0 0.0
    %313 = vmatpush2.xpose.msra.mxu0 0.0
    %314 = vmatprep.subr.mxu0 0.0
    %315 = vmatpush2.xpose.msra.mxu0 0.0
    %316 = vmatprep.subr.mxu0 0.0
    %317 = vmatpush2.xpose.msra.mxu0 0.0
    %318 = vmatprep.subr.mxu0 0.0
    %319 = vmatpush2.xpose.msra.mxu0 0.0
    %320 = vmatprep.subr.mxu0 0.0
    %321 = vmatpush2.xpose.msra.mxu0 0.0
    %322 = vmatprep.subr.mxu0 0.0
    %323 = vmatpush2.xpose.msra.mxu0 0.0
    %324 = vmatprep.subr.mxu0 0.0
    %325 = vmatpush2.xpose.msra.mxu0 0.0
    %326 = vmatprep.subr.mxu0 0.0
    %327 = vmatpush2.xpose.msra.mxu0 0.0
    %328 = vmatprep.subr.mxu0 0.0
    %329 = vmatpush2.xpose.msra.mxu0 0.0
    %330 = vmatprep.subr.mxu0 0.0
    %331 = vmatpush2.xpose.msra.mxu0 0.0
    %332 = vmatprep.subr.mxu0 0.0
    %333 = vmatpush2.xpose.msra.mxu0 0.0
    %334 = vmatprep.subr.mxu0 0.0
    %335 = vmatpush2.xpose.msra.mxu0 0.0
    %336 = vmatprep.subr.mxu0 0.0
    %337 = vmatpush2.xpose.msra.mxu0 0.0
    %338 = vmatprep.subr.mxu0 0.0
    %339 = vmatpush2.xpose.msra.mxu0 0.0
    %340 = vmatprep.subr.mxu0 0.0
    %341 = vmatpush2.xpose.msra.mxu0 0.0
    %342 = vmatprep.subr.mxu0 0.0
    %343 = vmatpush2.xpose.msra.mxu0 0.0
    %344 = vmatprep.mubr.f32.mxu0 0.0
    %345 = vmatmul.mubr.f32.gmra.mxu0 %v276
    %v346 = vpop.f32.mrf.mxu0
    %v347 = vadd.f32 0.0, %v346
    %v348 = vpop.f32.mrf.mxu0
    %349 = vdwg.mxu0
    %v350 = vsel %vm196, %v269, -inf
    %351 = vmax.xlane.f32.xlu0 %v350
    %v352 = vpop.xlane.xlu0 %351
    %v353 = vsel %vm196, %v347, -inf
    %354 = vmax.xlane.f32.xlu0 %v353
    %v355 = vpop.xlane.xlu0 %354
    %v356 = vsub.f32 %v269, %v352
    %v357 = vsub.f32 %v347, %v355
    %v358 = vmul.f32 %v356, 1.442695
    %v359 = vpow.pop %v358
    %v360 = vmul.f32 %v357, 1.442695
    %v361 = vpow.pop %v360
    %v362 = vsel %vm196, %v359, 0.0
    %363 = vadd.xlane.f32.xlu0 %v362
    %v364 = vpop.xlane.xlu0 %363
    %v365 = vsel %vm196, %v361, 0.0
    %366 = vadd.xlane.f32.xlu0 %v365
    %v367 = vpop.xlane.xlu0 %366
    %v368 = vrcp.pop %v364
    %v369 = vrcp.pop %v367
    %v370 = vmul.f32 %v359, %v368
    %v371 = vmul.f32 %v361, %v369
    %372 = vrot.lane.b32.xlu0 %v183, 64
    %v373 = vpop.permute.xlu0 %372
    %v376 = vsel %vm196, %v370, 0
    %378 = vmatprep.subr.mxu0 0.0
    %379 = vmatpush1.msra.mxu0 0.0
    %380 = vmatprep.subr.mxu0 0.0
    %381 = vmatpush1.msra.mxu0 0.0
    %382 = vmatprep.subr.mxu0 0.0
    %383 = vmatpush1.msra.mxu0 0.0
    %384 = vmatprep.subr.mxu0 0.0
    %385 = vmatpush1.msra.mxu0 0.0
    %386 = vmatprep.subr.mxu0 0.0
    %387 = vmatpush1.msra.mxu0 0.0
    %388 = vmatprep.subr.mxu0 0.0
    %389 = vmatpush1.msra.mxu0 0.0
    %390 = vmatprep.subr.mxu0 0.0
    %391 = vmatpush1.msra.mxu0 0.0
    %392 = vmatprep.subr.mxu0 0.0
    %393 = vmatpush1.msra.mxu0 0.0
    %394 = vmatprep.subr.mxu0 0.0
    %395 = vmatpush1.msra.mxu0 0.0
    %396 = vmatprep.subr.mxu0 0.0
    %397 = vmatpush1.msra.mxu0 0.0
    %398 = vmatprep.subr.mxu0 0.0
    %399 = vmatpush1.msra.mxu0 0.0
    %400 = vmatprep.subr.mxu0 0.0
    %401 = vmatpush1.msra.mxu0 0.0
    %402 = vmatprep.subr.mxu0 0.0
    %403 = vmatpush1.msra.mxu0 0.0
    %404 = vmatprep.subr.mxu0 0.0
    %405 = vmatpush1.msra.mxu0 0.0
    %406 = vmatprep.subr.mxu0 0.0
    %407 = vmatpush1.msra.mxu0 0.0
    %408 = vmatprep.subr.mxu0 0.0
    %409 = vmatpush1.msra.mxu0 %v373
    %410 = vmatprep.subr.mxu0 0.0
    %411 = vmatpush2.msra.mxu0 0.0
    %412 = vmatprep.subr.mxu0 0.0
    %413 = vmatpush2.msra.mxu0 0.0
    %414 = vmatprep.subr.mxu0 0.0
    %415 = vmatpush2.msra.mxu0 0.0
    %416 = vmatprep.subr.mxu0 0.0
    %417 = vmatpush2.msra.mxu0 0.0
    %418 = vmatprep.subr.mxu0 0.0
    %419 = vmatpush2.msra.mxu0 0.0
    %420 = vmatprep.subr.mxu0 0.0
    %421 = vmatpush2.msra.mxu0 0.0
    %422 = vmatprep.subr.mxu0 0.0
    %423 = vmatpush2.msra.mxu0 0.0
    %424 = vmatprep.subr.mxu0 0.0
    %425 = vmatpush2.msra.mxu0 0.0
    %426 = vmatprep.subr.mxu0 0.0
    %427 = vmatpush2.msra.mxu0 0.0
    %428 = vmatprep.subr.mxu0 0.0
    %429 = vmatpush2.msra.mxu0 0.0
    %430 = vmatprep.subr.mxu0 0.0
    %431 = vmatpush2.msra.mxu0 0.0
    %432 = vmatprep.subr.mxu0 0.0
    %433 = vmatpush2.msra.mxu0 0.0
    %434 = vmatprep.subr.mxu0 0.0
    %435 = vmatpush2.msra.mxu0 0.0
    %436 = vmatprep.subr.mxu0 0.0
    %437 = vmatpush2.msra.mxu0 0.0
    %438 = vmatprep.subr.mxu0 0.0
    %439 = vmatpush2.msra.mxu0 0.0
    %440 = vmatprep.subr.mxu0 0.0
    %441 = vmatpush2.msra.mxu0 0.0
    %442 = vmatprep.mubr.f32.mxu0 0.0
    %443 = vmatmul.mubr.f32.gmra.mxu0 %v376
    %v444 = vpop.f32.mrf.mxu0
    %v445 = vadd.f32 0.0, %v444
    %v446 = vpop.f32.mrf.mxu0
    %447 = vdwg.mxu0
    %448 = vrot.lane.b32.xlu0 %v188, 64
    %v449 = vpop.permute.xlu0 %448
    %v452 = vsel %vm196, %v371, 0
    %454 = vmatprep.subr.mxu0 0.0
    %455 = vmatpush1.msra.mxu0 0.0
    %456 = vmatprep.subr.mxu0 0.0
    %457 = vmatpush1.msra.mxu0 0.0
    %458 = vmatprep.subr.mxu0 0.0
    %459 = vmatpush1.msra.mxu0 0.0
    %460 = vmatprep.subr.mxu0 0.0
    %461 = vmatpush1.msra.mxu0 0.0
    %462 = vmatprep.subr.mxu0 0.0
    %463 = vmatpush1.msra.mxu0 0.0
    %464 = vmatprep.subr.mxu0 0.0
    %465 = vmatpush1.msra.mxu0 0.0
    %466 = vmatprep.subr.mxu0 0.0
    %467 = vmatpush1.msra.mxu0 0.0
    %468 = vmatprep.subr.mxu0 0.0
    %469 = vmatpush1.msra.mxu0 0.0
    %470 = vmatprep.subr.mxu0 0.0
    %471 = vmatpush1.msra.mxu0 0.0
    %472 = vmatprep.subr.mxu0 0.0
    %473 = vmatpush1.msra.mxu0 0.0
    %474 = vmatprep.subr.mxu0 0.0
    %475 = vmatpush1.msra.mxu0 0.0
    %476 = vmatprep.subr.mxu0 0.0
    %477 = vmatpush1.msra.mxu0 0.0
    %478 = vmatprep.subr.mxu0 0.0
    %479 = vmatpush1.msra.mxu0 0.0
    %480 = vmatprep.subr.mxu0 0.0
    %481 = vmatpush1.msra.mxu0 0.0
    %482 = vmatprep.subr.mxu0 0.0
    %483 = vmatpush1.msra.mxu0 0.0
    %484 = vmatprep.subr.mxu0 0.0
    %485 = vmatpush1.msra.mxu0 %v449
    %486 = vmatprep.subr.mxu0 0.0
    %487 = vmatpush2.msra.mxu0 0.0
    %488 = vmatprep.subr.mxu0 0.0
    %489 = vmatpush2.msra.mxu0 0.0
    %490 = vmatprep.subr.mxu0 0.0
    %491 = vmatpush2.msra.mxu0 0.0
    %492 = vmatprep.subr.mxu0 0.0
    %493 = vmatpush2.msra.mxu0 0.0
    %494 = vmatprep.subr.mxu0 0.0
    %495 = vmatpush2.msra.mxu0 0.0
    %496 = vmatprep.subr.mxu0 0.0
    %497 = vmatpush2.msra.mxu0 0.0
    %498 = vmatprep.subr.mxu0 0.0
    %499 = vmatpush2.msra.mxu0 0.0
    %500 = vmatprep.subr.mxu0 0.0
    %501 = vmatpush2.msra.mxu0 0.0
    %502 = vmatprep.subr.mxu0 0.0
    %503 = vmatpush2.msra.mxu0 0.0
    %504 = vmatprep.subr.mxu0 0.0
    %505 = vmatpush2.msra.mxu0 0.0
    %506 = vmatprep.subr.mxu0 0.0
    %507 = vmatpush2.msra.mxu0 0.0
    %508 = vmatprep.subr.mxu0 0.0
    %509 = vmatpush2.msra.mxu0 0.0
    %510 = vmatprep.subr.mxu0 0.0
    %511 = vmatpush2.msra.mxu0 0.0
    %512 = vmatprep.subr.mxu0 0.0
    %513 = vmatpush2.msra.mxu0 0.0
    %514 = vmatprep.subr.mxu0 0.0
    %515 = vmatpush2.msra.mxu0 0.0
    %516 = vmatprep.subr.mxu0 0.0
    %517 = vmatpush2.msra.mxu0 0.0
    %518 = vmatprep.mubr.f32.mxu0 0.0
    %519 = vmatmul.mubr.f32.gmra.mxu0 %v452
    %v520 = vpop.f32.mrf.mxu0
    %v521 = vadd.f32 0.0, %v520
    %v522 = vpop.f32.mrf.mxu0
    %523 = vdwg.mxu0
    %524 = vrot.lane.b32.xlu0 %v191, 120
    %v525 = vpop.permute.xlu0 %524
    %526 = vrot.lane.b32.xlu0 %v183, 88
    %v527 = vpop.permute.xlu0 %526
    %v528 = vsel %vm196, %v525, 0
    %v530 = vsel %vm196, %v527, 0
    %532 = vmatprep.subr.mxu0 0.0
    %533 = vmatpush1.xpose.msra.mxu0 0.0
    %534 = vmatprep.subr.mxu0 0.0
    %535 = vmatpush1.xpose.msra.mxu0 0.0
    %536 = vmatprep.subr.mxu0 0.0
    %537 = vmatpush1.xpose.msra.mxu0 0.0
    %538 = vmatprep.subr.mxu0 0.0
    %539 = vmatpush1.xpose.msra.mxu0 0.0
    %540 = vmatprep.subr.mxu0 0.0
    %541 = vmatpush1.xpose.msra.mxu0 0.0
    %542 = vmatprep.subr.mxu0 0.0
    %543 = vmatpush1.xpose.msra.mxu0 0.0
    %544 = vmatprep.subr.mxu0 0.0
    %545 = vmatpush1.xpose.msra.mxu0 0.0
    %546 = vmatprep.subr.mxu0 0.0
    %547 = vmatpush1.xpose.msra.mxu0 0.0
    %548 = vmatprep.subr.mxu0 0.0
    %549 = vmatpush1.xpose.msra.mxu0 0.0
    %550 = vmatprep.subr.mxu0 0.0
    %551 = vmatpush1.xpose.msra.mxu0 0.0
    %552 = vmatprep.subr.mxu0 0.0
    %553 = vmatpush1.xpose.msra.mxu0 0.0
    %554 = vmatprep.subr.mxu0 0.0
    %555 = vmatpush1.xpose.msra.mxu0 0.0
    %556 = vmatprep.subr.mxu0 0.0
    %557 = vmatpush1.xpose.msra.mxu0 0.0
    %558 = vmatprep.subr.mxu0 0.0
    %559 = vmatpush1.xpose.msra.mxu0 0.0
    %560 = vmatprep.subr.mxu0 0.0
    %561 = vmatpush1.xpose.msra.mxu0 0.0
    %562 = vmatprep.subr.mxu0 0.0
    %563 = vmatpush1.xpose.msra.mxu0 %v530
    %564 = vmatprep.subr.mxu0 0.0
    %565 = vmatpush2.xpose.msra.mxu0 0.0
    %566 = vmatprep.subr.mxu0 0.0
    %567 = vmatpush2.xpose.msra.mxu0 0.0
    %568 = vmatprep.subr.mxu0 0.0
    %569 = vmatpush2.xpose.msra.mxu0 0.0
    %570 = vmatprep.subr.mxu0 0.0
    %571 = vmatpush2.xpose.msra.mxu0 0.0
    %572 = vmatprep.subr.mxu0 0.0
    %573 = vmatpush2.xpose.msra.mxu0 0.0
    %574 = vmatprep.subr.mxu0 0.0
    %575 = vmatpush2.xpose.msra.mxu0 0.0
    %576 = vmatprep.subr.mxu0 0.0
    %577 = vmatpush2.xpose.msra.mxu0 0.0
    %578 = vmatprep.subr.mxu0 0.0
    %579 = vmatpush2.xpose.msra.mxu0 0.0
    %580 = vmatprep.subr.mxu0 0.0
    %581 = vmatpush2.xpose.msra.mxu0 0.0
    %582 = vmatprep.subr.mxu0 0.0
    %583 = vmatpush2.xpose.msra.mxu0 0.0
    %584 = vmatprep.subr.mxu0 0.0
    %585 = vmatpush2.xpose.msra.mxu0 0.0
    %586 = vmatprep.subr.mxu0 0.0
    %587 = vmatpush2.xpose.msra.mxu0 0.0
    %588 = vmatprep.subr.mxu0 0.0
    %589 = vmatpush2.xpose.msra.mxu0 0.0
    %590 = vmatprep.subr.mxu0 0.0
    %591 = vmatpush2.xpose.msra.mxu0 0.0
    %592 = vmatprep.subr.mxu0 0.0
    %593 = vmatpush2.xpose.msra.mxu0 0.0
    %594 = vmatprep.subr.mxu0 0.0
    %595 = vmatpush2.xpose.msra.mxu0 0.0
    %596 = vmatprep.mubr.f32.mxu0 0.0
    %597 = vmatmul.mubr.f32.gmra.mxu0 %v528
    %v598 = vpop.f32.mrf.mxu0
    %v599 = vadd.f32 0.0, %v598
    %v600 = vpop.f32.mrf.mxu0
    %601 = vdwg.mxu0
    %602 = vrot.lane.b32.xlu0 %v192, 120
    %v603 = vpop.permute.xlu0 %602
    %604 = vrot.lane.b32.xlu0 %v188, 88
    %v605 = vpop.permute.xlu0 %604
    %v606 = vsel %vm196, %v603, 0
    %v608 = vsel %vm196, %v605, 0
    %610 = vmatprep.subr.mxu0 0.0
    %611 = vmatpush1.xpose.msra.mxu0 0.0
    %612 = vmatprep.subr.mxu0 0.0
    %613 = vmatpush1.xpose.msra.mxu0 0.0
    %614 = vmatprep.subr.mxu0 0.0
    %615 = vmatpush1.xpose.msra.mxu0 0.0
    %616 = vmatprep.subr.mxu0 0.0
    %617 = vmatpush1.xpose.msra.mxu0 0.0
    %618 = vmatprep.subr.mxu0 0.0
    %619 = vmatpush1.xpose.msra.mxu0 0.0
    %620 = vmatprep.subr.mxu0 0.0
    %621 = vmatpush1.xpose.msra.mxu0 0.0
    %622 = vmatprep.subr.mxu0 0.0
    %623 = vmatpush1.xpose.msra.mxu0 0.0
    %624 = vmatprep.subr.mxu0 0.0
    %625 = vmatpush1.xpose.msra.mxu0 0.0
    %626 = vmatprep.subr.mxu0 0.0
    %627 = vmatpush1.xpose.msra.mxu0 0.0
    %628 = vmatprep.subr.mxu0 0.0
    %629 = vmatpush1.xpose.msra.mxu0 0.0
    %630 = vmatprep.subr.mxu0 0.0
    %631 = vmatpush1.xpose.msra.mxu0 0.0
    %632 = vmatprep.subr.mxu0 0.0
    %633 = vmatpush1.xpose.msra.mxu0 0.0
    %634 = vmatprep.subr.mxu0 0.0
    %635 = vmatpush1.xpose.msra.mxu0 0.0
    %636 = vmatprep.subr.mxu0 0.0
    %637 = vmatpush1.xpose.msra.mxu0 0.0
    %638 = vmatprep.subr.mxu0 0.0
    %639 = vmatpush1.xpose.msra.mxu0 0.0
    %640 = vmatprep.subr.mxu0 0.0
    %641 = vmatpush1.xpose.msra.mxu0 %v608
    %642 = vmatprep.subr.mxu0 0.0
    %643 = vmatpush2.xpose.msra.mxu0 0.0
    %644 = vmatprep.subr.mxu0 0.0
    %645 = vmatpush2.xpose.msra.mxu0 0.0
    %646 = vmatprep.subr.mxu0 0.0
    %647 = vmatpush2.xpose.msra.mxu0 0.0
    %648 = vmatprep.subr.mxu0 0.0
    %649 = vmatpush2.xpose.msra.mxu0 0.0
    %650 = vmatprep.subr.mxu0 0.0
    %651 = vmatpush2.xpose.msra.mxu0 0.0
    %652 = vmatprep.subr.mxu0 0.0
    %653 = vmatpush2.xpose.msra.mxu0 0.0
    %654 = vmatprep.subr.mxu0 0.0
    %655 = vmatpush2.xpose.msra.mxu0 0.0
    %656 = vmatprep.subr.mxu0 0.0
    %657 = vmatpush2.xpose.msra.mxu0 0.0
    %658 = vmatprep.subr.mxu0 0.0
    %659 = vmatpush2.xpose.msra.mxu0 0.0
    %660 = vmatprep.subr.mxu0 0.0
    %661 = vmatpush2.xpose.msra.mxu0 0.0
    %662 = vmatprep.subr.mxu0 0.0
    %663 = vmatpush2.xpose.msra.mxu0 0.0
    %664 = vmatprep.subr.mxu0 0.0
    %665 = vmatpush2.xpose.msra.mxu0 0.0
    %666 = vmatprep.subr.mxu0 0.0
    %667 = vmatpush2.xpose.msra.mxu0 0.0
    %668 = vmatprep.subr.mxu0 0.0
    %669 = vmatpush2.xpose.msra.mxu0 0.0
    %670 = vmatprep.subr.mxu0 0.0
    %671 = vmatpush2.xpose.msra.mxu0 0.0
    %672 = vmatprep.subr.mxu0 0.0
    %673 = vmatpush2.xpose.msra.mxu0 0.0
    %674 = vmatprep.mubr.f32.mxu0 0.0
    %675 = vmatmul.mubr.f32.gmra.mxu0 %v606
    %v676 = vpop.f32.mrf.mxu0
    %v677 = vadd.f32 0.0, %v676
    %v678 = vpop.f32.mrf.mxu0
    %679 = vdwg.mxu0
    %v680 = vsel %vm196, %v599, -inf
    %681 = vmax.xlane.f32.xlu0 %v680
    %v682 = vpop.xlane.xlu0 %681
    %v683 = vsel %vm196, %v677, -inf
    %684 = vmax.xlane.f32.xlu0 %v683
    %v685 = vpop.xlane.xlu0 %684
    %v686 = vsub.f32 %v599, %v682
    %v687 = vsub.f32 %v677, %v685
    %v688 = vmul.f32 %v686, 1.442695
    %v689 = vpow.pop %v688
    %v690 = vmul.f32 %v687, 1.442695
    %v691 = vpow.pop %v690
    %v692 = vsel %vm196, %v689, 0.0
    %693 = vadd.xlane.f32.xlu0 %v692
    %v694 = vpop.xlane.xlu0 %693
    %v695 = vsel %vm196, %v691, 0.0
    %696 = vadd.xlane.f32.xlu0 %v695
    %v697 = vpop.xlane.xlu0 %696
    %v698 = vrcp.pop %v694
    %v699 = vrcp.pop %v697
    %v700 = vmul.f32 %v689, %v698
    %v701 = vmul.f32 %v691, %v699
    %702 = vrot.lane.b32.xlu0 %v183, 56
    %v703 = vpop.permute.xlu0 %702
    %v706 = vsel %vm196, %v700, 0
    %708 = vmatprep.subr.mxu0 0.0
    %709 = vmatpush1.msra.mxu0 0.0
    %710 = vmatprep.subr.mxu0 0.0
    %711 = vmatpush1.msra.mxu0 0.0
    %712 = vmatprep.subr.mxu0 0.0
    %713 = vmatpush1.msra.mxu0 0.0
    %714 = vmatprep.subr.mxu0 0.0
    %715 = vmatpush1.msra.mxu0 0.0
    %716 = vmatprep.subr.mxu0 0.0
    %717 = vmatpush1.msra.mxu0 0.0
    %718 = vmatprep.subr.mxu0 0.0
    %719 = vmatpush1.msra.mxu0 0.0
    %720 = vmatprep.subr.mxu0 0.0
    %721 = vmatpush1.msra.mxu0 0.0
    %722 = vmatprep.subr.mxu0 0.0
    %723 = vmatpush1.msra.mxu0 0.0
    %724 = vmatprep.subr.mxu0 0.0
    %725 = vmatpush1.msra.mxu0 0.0
    %726 = vmatprep.subr.mxu0 0.0
    %727 = vmatpush1.msra.mxu0 0.0
    %728 = vmatprep.subr.mxu0 0.0
    %729 = vmatpush1.msra.mxu0 0.0
    %730 = vmatprep.subr.mxu0 0.0
    %731 = vmatpush1.msra.mxu0 0.0
    %732 = vmatprep.subr.mxu0 0.0
    %733 = vmatpush1.msra.mxu0 0.0
    %734 = vmatprep.subr.mxu0 0.0
    %735 = vmatpush1.msra.mxu0 0.0
    %736 = vmatprep.subr.mxu0 0.0
    %737 = vmatpush1.msra.mxu0 0.0
    %738 = vmatprep.subr.mxu0 0.0
    %739 = vmatpush1.msra.mxu0 %v703
    %740 = vmatprep.subr.mxu0 0.0
    %741 = vmatpush2.msra.mxu0 0.0
    %742 = vmatprep.subr.mxu0 0.0
    %743 = vmatpush2.msra.mxu0 0.0
    %744 = vmatprep.subr.mxu0 0.0
    %745 = vmatpush2.msra.mxu0 0.0
    %746 = vmatprep.subr.mxu0 0.0
    %747 = vmatpush2.msra.mxu0 0.0
    %748 = vmatprep.subr.mxu0 0.0
    %749 = vmatpush2.msra.mxu0 0.0
    %750 = vmatprep.subr.mxu0 0.0
    %751 = vmatpush2.msra.mxu0 0.0
    %752 = vmatprep.subr.mxu0 0.0
    %753 = vmatpush2.msra.mxu0 0.0
    %754 = vmatprep.subr.mxu0 0.0
    %755 = vmatpush2.msra.mxu0 0.0
    %756 = vmatprep.subr.mxu0 0.0
    %757 = vmatpush2.msra.mxu0 0.0
    %758 = vmatprep.subr.mxu0 0.0
    %759 = vmatpush2.msra.mxu0 0.0
    %760 = vmatprep.subr.mxu0 0.0
    %761 = vmatpush2.msra.mxu0 0.0
    %762 = vmatprep.subr.mxu0 0.0
    %763 = vmatpush2.msra.mxu0 0.0
    %764 = vmatprep.subr.mxu0 0.0
    %765 = vmatpush2.msra.mxu0 0.0
    %766 = vmatprep.subr.mxu0 0.0
    %767 = vmatpush2.msra.mxu0 0.0
    %768 = vmatprep.subr.mxu0 0.0
    %769 = vmatpush2.msra.mxu0 0.0
    %770 = vmatprep.subr.mxu0 0.0
    %771 = vmatpush2.msra.mxu0 0.0
    %772 = vmatprep.mubr.f32.mxu0 0.0
    %773 = vmatmul.mubr.f32.gmra.mxu0 %v706
    %v774 = vpop.f32.mrf.mxu0
    %v775 = vadd.f32 0.0, %v774
    %v776 = vpop.f32.mrf.mxu0
    %777 = vdwg.mxu0
    %778 = vrot.lane.b32.xlu0 %v188, 56
    %v779 = vpop.permute.xlu0 %778
    %v782 = vsel %vm196, %v701, 0
    %784 = vmatprep.subr.mxu0 0.0
    %785 = vmatpush1.msra.mxu0 0.0
    %786 = vmatprep.subr.mxu0 0.0
    %787 = vmatpush1.msra.mxu0 0.0
    %788 = vmatprep.subr.mxu0 0.0
    %789 = vmatpush1.msra.mxu0 0.0
    %790 = vmatprep.subr.mxu0 0.0
    %791 = vmatpush1.msra.mxu0 0.0
    %792 = vmatprep.subr.mxu0 0.0
    %793 = vmatpush1.msra.mxu0 0.0
    %794 = vmatprep.subr.mxu0 0.0
    %795 = vmatpush1.msra.mxu0 0.0
    %796 = vmatprep.subr.mxu0 0.0
    %797 = vmatpush1.msra.mxu0 0.0
    %798 = vmatprep.subr.mxu0 0.0
    %799 = vmatpush1.msra.mxu0 0.0
    %800 = vmatprep.subr.mxu0 0.0
    %801 = vmatpush1.msra.mxu0 0.0
    %802 = vmatprep.subr.mxu0 0.0
    %803 = vmatpush1.msra.mxu0 0.0
    %804 = vmatprep.subr.mxu0 0.0
    %805 = vmatpush1.msra.mxu0 0.0
    %806 = vmatprep.subr.mxu0 0.0
    %807 = vmatpush1.msra.mxu0 0.0
    %808 = vmatprep.subr.mxu0 0.0
    %809 = vmatpush1.msra.mxu0 0.0
    %810 = vmatprep.subr.mxu0 0.0
    %811 = vmatpush1.msra.mxu0 0.0
    %812 = vmatprep.subr.mxu0 0.0
    %813 = vmatpush1.msra.mxu0 0.0
    %814 = vmatprep.subr.mxu0 0.0
    %815 = vmatpush1.msra.mxu0 %v779
    %816 = vmatprep.subr.mxu0 0.0
    %817 = vmatpush2.msra.mxu0 0.0
    %818 = vmatprep.subr.mxu0 0.0
    %819 = vmatpush2.msra.mxu0 0.0
    %820 = vmatprep.subr.mxu0 0.0
    %821 = vmatpush2.msra.mxu0 0.0
    %822 = vmatprep.subr.mxu0 0.0
    %823 = vmatpush2.msra.mxu0 0.0
    %824 = vmatprep.subr.mxu0 0.0
    %825 = vmatpush2.msra.mxu0 0.0
    %826 = vmatprep.subr.mxu0 0.0
    %827 = vmatpush2.msra.mxu0 0.0
    %828 = vmatprep.subr.mxu0 0.0
    %829 = vmatpush2.msra.mxu0 0.0
    %830 = vmatprep.subr.mxu0 0.0
    %831 = vmatpush2.msra.mxu0 0.0
    %832 = vmatprep.subr.mxu0 0.0
    %833 = vmatpush2.msra.mxu0 0.0
    %834 = vmatprep.subr.mxu0 0.0
    %835 = vmatpush2.msra.mxu0 0.0
    %836 = vmatprep.subr.mxu0 0.0
    %837 = vmatpush2.msra.mxu0 0.0
    %838 = vmatprep.subr.mxu0 0.0
    %839 = vmatpush2.msra.mxu0 0.0
    %840 = vmatprep.subr.mxu0 0.0
    %841 = vmatpush2.msra.mxu0 0.0
    %842 = vmatprep.subr.mxu0 0.0
    %843 = vmatpush2.msra.mxu0 0.0
    %844 = vmatprep.subr.mxu0 0.0
    %845 = vmatpush2.msra.mxu0 0.0
    %846 = vmatprep.subr.mxu0 0.0
    %847 = vmatpush2.msra.mxu0 0.0
    %848 = vmatprep.mubr.f32.mxu0 0.0
    %849 = vmatmul.mubr.f32.gmra.mxu0 %v782
    %v850 = vpop.f32.mrf.mxu0
    %v851 = vadd.f32 0.0, %v850
    %v852 = vpop.f32.mrf.mxu0
    %853 = vdwg.mxu0
    %854 = vrot.lane.b32.xlu0 %v191, 112
    %v855 = vpop.permute.xlu0 %854
    %856 = vrot.lane.b32.xlu0 %v183, 80
    %v857 = vpop.permute.xlu0 %856
    %v858 = vsel %vm196, %v855, 0
    %v860 = vsel %vm196, %v857, 0
    %862 = vmatprep.subr.mxu0 0.0
    %863 = vmatpush1.xpose.msra.mxu0 0.0
    %864 = vmatprep.subr.mxu0 0.0
    %865 = vmatpush1.xpose.msra.mxu0 0.0
    %866 = vmatprep.subr.mxu0 0.0
    %867 = vmatpush1.xpose.msra.mxu0 0.0
    %868 = vmatprep.subr.mxu0 0.0
    %869 = vmatpush1.xpose.msra.mxu0 0.0
    %870 = vmatprep.subr.mxu0 0.0
    %871 = vmatpush1.xpose.msra.mxu0 0.0
    %872 = vmatprep.subr.mxu0 0.0
    %873 = vmatpush1.xpose.msra.mxu0 0.0
    %874 = vmatprep.subr.mxu0 0.0
    %875 = vmatpush1.xpose.msra.mxu0 0.0
    %876 = vmatprep.subr.mxu0 0.0
    %877 = vmatpush1.xpose.msra.mxu0 0.0
    %878 = vmatprep.subr.mxu0 0.0
    %879 = vmatpush1.xpose.msra.mxu0 0.0
    %880 = vmatprep.subr.mxu0 0.0
    %881 = vmatpush1.xpose.msra.mxu0 0.0
    %882 = vmatprep.subr.mxu0 0.0
    %883 = vmatpush1.xpose.msra.mxu0 0.0
    %884 = vmatprep.subr.mxu0 0.0
    %885 = vmatpush1.xpose.msra.mxu0 0.0
    %886 = vmatprep.subr.mxu0 0.0
    %887 = vmatpush1.xpose.msra.mxu0 0.0
    %888 = vmatprep.subr.mxu0 0.0
    %889 = vmatpush1.xpose.msra.mxu0 0.0
    %890 = vmatprep.subr.mxu0 0.0
    %891 = vmatpush1.xpose.msra.mxu0 0.0
    %892 = vmatprep.subr.mxu0 0.0
    %893 = vmatpush1.xpose.msra.mxu0 %v860
    %894 = vmatprep.subr.mxu0 0.0
    %895 = vmatpush2.xpose.msra.mxu0 0.0
    %896 = vmatprep.subr.mxu0 0.0
    %897 = vmatpush2.xpose.msra.mxu0 0.0
    %898 = vmatprep.subr.mxu0 0.0
    %899 = vmatpush2.xpose.msra.mxu0 0.0
    %900 = vmatprep.subr.mxu0 0.0
    %901 = vmatpush2.xpose.msra.mxu0 0.0
    %902 = vmatprep.subr.mxu0 0.0
    %903 = vmatpush2.xpose.msra.mxu0 0.0
    %904 = vmatprep.subr.mxu0 0.0
    %905 = vmatpush2.xpose.msra.mxu0 0.0
    %906 = vmatprep.subr.mxu0 0.0
    %907 = vmatpush2.xpose.msra.mxu0 0.0
    %908 = vmatprep.subr.mxu0 0.0
    %909 = vmatpush2.xpose.msra.mxu0 0.0
    %910 = vmatprep.subr.mxu0 0.0
    %911 = vmatpush2.xpose.msra.mxu0 0.0
    %912 = vmatprep.subr.mxu0 0.0
    %913 = vmatpush2.xpose.msra.mxu0 0.0
    %914 = vmatprep.subr.mxu0 0.0
    %915 = vmatpush2.xpose.msra.mxu0 0.0
    %916 = vmatprep.subr.mxu0 0.0
    %917 = vmatpush2.xpose.msra.mxu0 0.0
    %918 = vmatprep.subr.mxu0 0.0
    %919 = vmatpush2.xpose.msra.mxu0 0.0
    %920 = vmatprep.subr.mxu0 0.0
    %921 = vmatpush2.xpose.msra.mxu0 0.0
    %922 = vmatprep.subr.mxu0 0.0
    %923 = vmatpush2.xpose.msra.mxu0 0.0
    %924 = vmatprep.subr.mxu0 0.0
    %925 = vmatpush2.xpose.msra.mxu0 0.0
    %926 = vmatprep.mubr.f32.mxu0 0.0
    %927 = vmatmul.mubr.f32.gmra.mxu0 %v858
    %v928 = vpop.f32.mrf.mxu0
    %v929 = vadd.f32 0.0, %v928
    %v930 = vpop.f32.mrf.mxu0
    %931 = vdwg.mxu0
    %932 = vrot.lane.b32.xlu0 %v192, 112
    %v933 = vpop.permute.xlu0 %932
    %934 = vrot.lane.b32.xlu0 %v188, 80
    %v935 = vpop.permute.xlu0 %934
    %v936 = vsel %vm196, %v933, 0
    %v938 = vsel %vm196, %v935, 0
    %940 = vmatprep.subr.mxu0 0.0
    %941 = vmatpush1.xpose.msra.mxu0 0.0
    %942 = vmatprep.subr.mxu0 0.0
    %943 = vmatpush1.xpose.msra.mxu0 0.0
    %944 = vmatprep.subr.mxu0 0.0
    %945 = vmatpush1.xpose.msra.mxu0 0.0
    %946 = vmatprep.subr.mxu0 0.0
    %947 = vmatpush1.xpose.msra.mxu0 0.0
    %948 = vmatprep.subr.mxu0 0.0
    %949 = vmatpush1.xpose.msra.mxu0 0.0
    %950 = vmatprep.subr.mxu0 0.0
    %951 = vmatpush1.xpose.msra.mxu0 0.0
    %952 = vmatprep.subr.mxu0 0.0
    %953 = vmatpush1.xpose.msra.mxu0 0.0
    %954 = vmatprep.subr.mxu0 0.0
    %955 = vmatpush1.xpose.msra.mxu0 0.0
    %956 = vmatprep.subr.mxu0 0.0
    %957 = vmatpush1.xpose.msra.mxu0 0.0
    %958 = vmatprep.subr.mxu0 0.0
    %959 = vmatpush1.xpose.msra.mxu0 0.0
    %960 = vmatprep.subr.mxu0 0.0
    %961 = vmatpush1.xpose.msra.mxu0 0.0
    %962 = vmatprep.subr.mxu0 0.0
    %963 = vmatpush1.xpose.msra.mxu0 0.0
    %964 = vmatprep.subr.mxu0 0.0
    %965 = vmatpush1.xpose.msra.mxu0 0.0
    %966 = vmatprep.subr.mxu0 0.0
    %967 = vmatpush1.xpose.msra.mxu0 0.0
    %968 = vmatprep.subr.mxu0 0.0
    %969 = vmatpush1.xpose.msra.mxu0 0.0
    %970 = vmatprep.subr.mxu0 0.0
    %971 = vmatpush1.xpose.msra.mxu0 %v938
    %972 = vmatprep.subr.mxu0 0.0
    %973 = vmatpush2.xpose.msra.mxu0 0.0
    %974 = vmatprep.subr.mxu0 0.0
    %975 = vmatpush2.xpose.msra.mxu0 0.0
    %976 = vmatprep.subr.mxu0 0.0
    %977 = vmatpush2.xpose.msra.mxu0 0.0
    %978 = vmatprep.subr.mxu0 0.0
    %979 = vmatpush2.xpose.msra.mxu0 0.0
    %980 = vmatprep.subr.mxu0 0.0
    %981 = vmatpush2.xpose.msra.mxu0 0.0
    %982 = vmatprep.subr.mxu0 0.0
    %983 = vmatpush2.xpose.msra.mxu0 0.0
    %984 = vmatprep.subr.mxu0 0.0
    %985 = vmatpush2.xpose.msra.mxu0 0.0
    %986 = vmatprep.subr.mxu0 0.0
    %987 = vmatpush2.xpose.msra.mxu0 0.0
    %988 = vmatprep.subr.mxu0 0.0
    %989 = vmatpush2.xpose.msra.mxu0 0.0
    %990 = vmatprep.subr.mxu0 0.0
    %991 = vmatpush2.xpose.msra.mxu0 0.0
    %992 = vmatprep.subr.mxu0 0.0
    %993 = vmatpush2.xpose.msra.mxu0 0.0
    %994 = vmatprep.subr.mxu0 0.0
    %995 = vmatpush2.xpose.msra.mxu0 0.0
    %996 = vmatprep.subr.mxu0 0.0
    %997 = vmatpush2.xpose.msra.mxu0 0.0
    %998 = vmatprep.subr.mxu0 0.0
    %999 = vmatpush2.xpose.msra.mxu0 0.0
    %1000 = vmatprep.subr.mxu0 0.0
    %1001 = vmatpush2.xpose.msra.mxu0 0.0
    %1002 = vmatprep.subr.mxu0 0.0
    %1003 = vmatpush2.xpose.msra.mxu0 0.0
    %1004 = vmatprep.mubr.f32.mxu0 0.0
    %1005 = vmatmul.mubr.f32.gmra.mxu0 %v936
    %v1006 = vpop.f32.mrf.mxu0
    %v1007 = vadd.f32 0.0, %v1006
    %v1008 = vpop.f32.mrf.mxu0
    %1009 = vdwg.mxu0
    %v1010 = vsel %vm196, %v929, -inf
    %1011 = vmax.xlane.f32.xlu0 %v1010
    %v1012 = vpop.xlane.xlu0 %1011
    %v1013 = vsel %vm196, %v1007, -inf
    %1014 = vmax.xlane.f32.xlu0 %v1013
    %v1015 = vpop.xlane.xlu0 %1014
    %v1016 = vsub.f32 %v929, %v1012
    %v1017 = vsub.f32 %v1007, %v1015
    %v1018 = vmul.f32 %v1016, 1.442695
    %v1019 = vpow.pop %v1018
    %v1020 = vmul.f32 %v1017, 1.442695
    %v1021 = vpow.pop %v1020
    %v1022 = vsel %vm196, %v1019, 0.0
    %1023 = vadd.xlane.f32.xlu0 %v1022
    %v1024 = vpop.xlane.xlu0 %1023
    %v1025 = vsel %vm196, %v1021, 0.0
    %1026 = vadd.xlane.f32.xlu0 %v1025
    %v1027 = vpop.xlane.xlu0 %1026
    %v1028 = vrcp.pop %v1024
    %v1029 = vrcp.pop %v1027
    %v1030 = vmul.f32 %v1019, %v1028
    %v1031 = vmul.f32 %v1021, %v1029
    %1032 = vrot.lane.b32.xlu0 %v183, 48
    %v1033 = vpop.permute.xlu0 %1032
    %v1036 = vsel %vm196, %v1030, 0
    %1038 = vmatprep.subr.mxu0 0.0
    %1039 = vmatpush1.msra.mxu0 0.0
    %1040 = vmatprep.subr.mxu0 0.0
    %1041 = vmatpush1.msra.mxu0 0.0
    %1042 = vmatprep.subr.mxu0 0.0
    %1043 = vmatpush1.msra.mxu0 0.0
    %1044 = vmatprep.subr.mxu0 0.0
    %1045 = vmatpush1.msra.mxu0 0.0
    %1046 = vmatprep.subr.mxu0 0.0
    %1047 = vmatpush1.msra.mxu0 0.0
    %1048 = vmatprep.subr.mxu0 0.0
    %1049 = vmatpush1.msra.mxu0 0.0
    %1050 = vmatprep.subr.mxu0 0.0
    %1051 = vmatpush1.msra.mxu0 0.0
    %1052 = vmatprep.subr.mxu0 0.0
    %1053 = vmatpush1.msra.mxu0 0.0
    %1054 = vmatprep.subr.mxu0 0.0
    %1055 = vmatpush1.msra.mxu0 0.0
    %1056 = vmatprep.subr.mxu0 0.0
    %1057 = vmatpush1.msra.mxu0 0.0
    %1058 = vmatprep.subr.mxu0 0.0
    %1059 = vmatpush1.msra.mxu0 0.0
    %1060 = vmatprep.subr.mxu0 0.0
    %1061 = vmatpush1.msra.mxu0 0.0
    %1062 = vmatprep.subr.mxu0 0.0
    %1063 = vmatpush1.msra.mxu0 0.0
    %1064 = vmatprep.subr.mxu0 0.0
    %1065 = vmatpush1.msra.mxu0 0.0
    %1066 = vmatprep.subr.mxu0 0.0
    %1067 = vmatpush1.msra.mxu0 0.0
    %1068 = vmatprep.subr.mxu0 0.0
    %1069 = vmatpush1.msra.mxu0 %v1033
    %1070 = vmatprep.subr.mxu0 0.0
    %1071 = vmatpush2.msra.mxu0 0.0
    %1072 = vmatprep.subr.mxu0 0.0
    %1073 = vmatpush2.msra.mxu0 0.0
    %1074 = vmatprep.subr.mxu0 0.0
    %1075 = vmatpush2.msra.mxu0 0.0
    %1076 = vmatprep.subr.mxu0 0.0
    %1077 = vmatpush2.msra.mxu0 0.0
    %1078 = vmatprep.subr.mxu0 0.0
    %1079 = vmatpush2.msra.mxu0 0.0
    %1080 = vmatprep.subr.mxu0 0.0
    %1081 = vmatpush2.msra.mxu0 0.0
    %1082 = vmatprep.subr.mxu0 0.0
    %1083 = vmatpush2.msra.mxu0 0.0
    %1084 = vmatprep.subr.mxu0 0.0
    %1085 = vmatpush2.msra.mxu0 0.0
    %1086 = vmatprep.subr.mxu0 0.0
    %1087 = vmatpush2.msra.mxu0 0.0
    %1088 = vmatprep.subr.mxu0 0.0
    %1089 = vmatpush2.msra.mxu0 0.0
    %1090 = vmatprep.subr.mxu0 0.0
    %1091 = vmatpush2.msra.mxu0 0.0
    %1092 = vmatprep.subr.mxu0 0.0
    %1093 = vmatpush2.msra.mxu0 0.0
    %1094 = vmatprep.subr.mxu0 0.0
    %1095 = vmatpush2.msra.mxu0 0.0
    %1096 = vmatprep.subr.mxu0 0.0
    %1097 = vmatpush2.msra.mxu0 0.0
    %1098 = vmatprep.subr.mxu0 0.0
    %1099 = vmatpush2.msra.mxu0 0.0
    %1100 = vmatprep.subr.mxu0 0.0
    %1101 = vmatpush2.msra.mxu0 0.0
    %1102 = vmatprep.mubr.f32.mxu0 0.0
    %1103 = vmatmul.mubr.f32.gmra.mxu0 %v1036
    %v1104 = vpop.f32.mrf.mxu0
    %v1105 = vadd.f32 0.0, %v1104
    %v1106 = vpop.f32.mrf.mxu0
    %1107 = vdwg.mxu0
    %1108 = vrot.lane.b32.xlu0 %v188, 48
    %v1109 = vpop.permute.xlu0 %1108
    %v1112 = vsel %vm196, %v1031, 0
    %1114 = vmatprep.subr.mxu0 0.0
    %1115 = vmatpush1.msra.mxu0 0.0
    %1116 = vmatprep.subr.mxu0 0.0
    %1117 = vmatpush1.msra.mxu0 0.0
    %1118 = vmatprep.subr.mxu0 0.0
    %1119 = vmatpush1.msra.mxu0 0.0
    %1120 = vmatprep.subr.mxu0 0.0
    %1121 = vmatpush1.msra.mxu0 0.0
    %1122 = vmatprep.subr.mxu0 0.0
    %1123 = vmatpush1.msra.mxu0 0.0
    %1124 = vmatprep.subr.mxu0 0.0
    %1125 = vmatpush1.msra.mxu0 0.0
    %1126 = vmatprep.subr.mxu0 0.0
    %1127 = vmatpush1.msra.mxu0 0.0
    %1128 = vmatprep.subr.mxu0 0.0
    %1129 = vmatpush1.msra.mxu0 0.0
    %1130 = vmatprep.subr.mxu0 0.0
    %1131 = vmatpush1.msra.mxu0 0.0
    %1132 = vmatprep.subr.mxu0 0.0
    %1133 = vmatpush1.msra.mxu0 0.0
    %1134 = vmatprep.subr.mxu0 0.0
    %1135 = vmatpush1.msra.mxu0 0.0
    %1136 = vmatprep.subr.mxu0 0.0
    %1137 = vmatpush1.msra.mxu0 0.0
    %1138 = vmatprep.subr.mxu0 0.0
    %1139 = vmatpush1.msra.mxu0 0.0
    %1140 = vmatprep.subr.mxu0 0.0
    %1141 = vmatpush1.msra.mxu0 0.0
    %1142 = vmatprep.subr.mxu0 0.0
    %1143 = vmatpush1.msra.mxu0 0.0
    %1144 = vmatprep.subr.mxu0 0.0
    %1145 = vmatpush1.msra.mxu0 %v1109
    %1146 = vmatprep.subr.mxu0 0.0
    %1147 = vmatpush2.msra.mxu0 0.0
    %1148 = vmatprep.subr.mxu0 0.0
    %1149 = vmatpush2.msra.mxu0 0.0
    %1150 = vmatprep.subr.mxu0 0.0
    %1151 = vmatpush2.msra.mxu0 0.0
    %1152 = vmatprep.subr.mxu0 0.0
    %1153 = vmatpush2.msra.mxu0 0.0
    %1154 = vmatprep.subr.mxu0 0.0
    %1155 = vmatpush2.msra.mxu0 0.0
    %1156 = vmatprep.subr.mxu0 0.0
    %1157 = vmatpush2.msra.mxu0 0.0
    %1158 = vmatprep.subr.mxu0 0.0
    %1159 = vmatpush2.msra.mxu0 0.0
    %1160 = vmatprep.subr.mxu0 0.0
    %1161 = vmatpush2.msra.mxu0 0.0
    %1162 = vmatprep.subr.mxu0 0.0
    %1163 = vmatpush2.msra.mxu0 0.0
    %1164 = vmatprep.subr.mxu0 0.0
    %1165 = vmatpush2.msra.mxu0 0.0
    %1166 = vmatprep.subr.mxu0 0.0
    %1167 = vmatpush2.msra.mxu0 0.0
    %1168 = vmatprep.subr.mxu0 0.0
    %1169 = vmatpush2.msra.mxu0 0.0
    %1170 = vmatprep.subr.mxu0 0.0
    %1171 = vmatpush2.msra.mxu0 0.0
    %1172 = vmatprep.subr.mxu0 0.0
    %1173 = vmatpush2.msra.mxu0 0.0
    %1174 = vmatprep.subr.mxu0 0.0
    %1175 = vmatpush2.msra.mxu0 0.0
    %1176 = vmatprep.subr.mxu0 0.0
    %1177 = vmatpush2.msra.mxu0 0.0
    %1178 = vmatprep.mubr.f32.mxu0 0.0
    %1179 = vmatmul.mubr.f32.gmra.mxu0 %v1112
    %v1180 = vpop.f32.mrf.mxu0
    %v1181 = vadd.f32 0.0, %v1180
    %v1182 = vpop.f32.mrf.mxu0
    %1183 = vdwg.mxu0
    %1184 = vrot.lane.b32.xlu0 %v191, 104
    %v1185 = vpop.permute.xlu0 %1184
    %1186 = vrot.lane.b32.xlu0 %v183, 72
    %v1187 = vpop.permute.xlu0 %1186
    %v1188 = vsel %vm196, %v1185, 0
    %v1190 = vsel %vm196, %v1187, 0
    %1192 = vmatprep.subr.mxu0 0.0
    %1193 = vmatpush1.xpose.msra.mxu0 0.0
    %1194 = vmatprep.subr.mxu0 0.0
    %1195 = vmatpush1.xpose.msra.mxu0 0.0
    %1196 = vmatprep.subr.mxu0 0.0
    %1197 = vmatpush1.xpose.msra.mxu0 0.0
    %1198 = vmatprep.subr.mxu0 0.0
    %1199 = vmatpush1.xpose.msra.mxu0 0.0
    %1200 = vmatprep.subr.mxu0 0.0
    %1201 = vmatpush1.xpose.msra.mxu0 0.0
    %1202 = vmatprep.subr.mxu0 0.0
    %1203 = vmatpush1.xpose.msra.mxu0 0.0
    %1204 = vmatprep.subr.mxu0 0.0
    %1205 = vmatpush1.xpose.msra.mxu0 0.0
    %1206 = vmatprep.subr.mxu0 0.0
    %1207 = vmatpush1.xpose.msra.mxu0 0.0
    %1208 = vmatprep.subr.mxu0 0.0
    %1209 = vmatpush1.xpose.msra.mxu0 0.0
    %1210 = vmatprep.subr.mxu0 0.0
    %1211 = vmatpush1.xpose.msra.mxu0 0.0
    %1212 = vmatprep.subr.mxu0 0.0
    %1213 = vmatpush1.xpose.msra.mxu0 0.0
    %1214 = vmatprep.subr.mxu0 0.0
    %1215 = vmatpush1.xpose.msra.mxu0 0.0
    %1216 = vmatprep.subr.mxu0 0.0
    %1217 = vmatpush1.xpose.msra.mxu0 0.0
    %1218 = vmatprep.subr.mxu0 0.0
    %1219 = vmatpush1.xpose.msra.mxu0 0.0
    %1220 = vmatprep.subr.mxu0 0.0
    %1221 = vmatpush1.xpose.msra.mxu0 0.0
    %1222 = vmatprep.subr.mxu0 0.0
    %1223 = vmatpush1.xpose.msra.mxu0 %v1190
    %1224 = vmatprep.subr.mxu0 0.0
    %1225 = vmatpush2.xpose.msra.mxu0 0.0
    %1226 = vmatprep.subr.mxu0 0.0
    %1227 = vmatpush2.xpose.msra.mxu0 0.0
    %1228 = vmatprep.subr.mxu0 0.0
    %1229 = vmatpush2.xpose.msra.mxu0 0.0
    %1230 = vmatprep.subr.mxu0 0.0
    %1231 = vmatpush2.xpose.msra.mxu0 0.0
    %1232 = vmatprep.subr.mxu0 0.0
    %1233 = vmatpush2.xpose.msra.mxu0 0.0
    %1234 = vmatprep.subr.mxu0 0.0
    %1235 = vmatpush2.xpose.msra.mxu0 0.0
    %1236 = vmatprep.subr.mxu0 0.0
    %1237 = vmatpush2.xpose.msra.mxu0 0.0
    %1238 = vmatprep.subr.mxu0 0.0
    %1239 = vmatpush2.xpose.msra.mxu0 0.0
    %1240 = vmatprep.subr.mxu0 0.0
    %1241 = vmatpush2.xpose.msra.mxu0 0.0
    %1242 = vmatprep.subr.mxu0 0.0
    %1243 = vmatpush2.xpose.msra.mxu0 0.0
    %1244 = vmatprep.subr.mxu0 0.0
    %1245 = vmatpush2.xpose.msra.mxu0 0.0
    %1246 = vmatprep.subr.mxu0 0.0
    %1247 = vmatpush2.xpose.msra.mxu0 0.0
    %1248 = vmatprep.subr.mxu0 0.0
    %1249 = vmatpush2.xpose.msra.mxu0 0.0
    %1250 = vmatprep.subr.mxu0 0.0
    %1251 = vmatpush2.xpose.msra.mxu0 0.0
    %1252 = vmatprep.subr.mxu0 0.0
    %1253 = vmatpush2.xpose.msra.mxu0 0.0
    %1254 = vmatprep.subr.mxu0 0.0
    %1255 = vmatpush2.xpose.msra.mxu0 0.0
    %1256 = vmatprep.mubr.f32.mxu0 0.0
    %1257 = vmatmul.mubr.f32.gmra.mxu0 %v1188
    %v1258 = vpop.f32.mrf.mxu0
    %v1259 = vadd.f32 0.0, %v1258
    %v1260 = vpop.f32.mrf.mxu0
    %1261 = vdwg.mxu0
    %1262 = vrot.lane.b32.xlu0 %v192, 104
    %v1263 = vpop.permute.xlu0 %1262
    %1264 = vrot.lane.b32.xlu0 %v188, 72
    %v1265 = vpop.permute.xlu0 %1264
    %v1266 = vsel %vm196, %v1263, 0
    %v1268 = vsel %vm196, %v1265, 0
    %1270 = vmatprep.subr.mxu0 0.0
    %1271 = vmatpush1.xpose.msra.mxu0 0.0
    %1272 = vmatprep.subr.mxu0 0.0
    %1273 = vmatpush1.xpose.msra.mxu0 0.0
    %1274 = vmatprep.subr.mxu0 0.0
    %1275 = vmatpush1.xpose.msra.mxu0 0.0
    %1276 = vmatprep.subr.mxu0 0.0
    %1277 = vmatpush1.xpose.msra.mxu0 0.0
    %1278 = vmatprep.subr.mxu0 0.0
    %1279 = vmatpush1.xpose.msra.mxu0 0.0
    %1280 = vmatprep.subr.mxu0 0.0
    %1281 = vmatpush1.xpose.msra.mxu0 0.0
    %1282 = vmatprep.subr.mxu0 0.0
    %1283 = vmatpush1.xpose.msra.mxu0 0.0
    %1284 = vmatprep.subr.mxu0 0.0
    %1285 = vmatpush1.xpose.msra.mxu0 0.0
    %1286 = vmatprep.subr.mxu0 0.0
    %1287 = vmatpush1.xpose.msra.mxu0 0.0
    %1288 = vmatprep.subr.mxu0 0.0
    %1289 = vmatpush1.xpose.msra.mxu0 0.0
    %1290 = vmatprep.subr.mxu0 0.0
    %1291 = vmatpush1.xpose.msra.mxu0 0.0
    %1292 = vmatprep.subr.mxu0 0.0
    %1293 = vmatpush1.xpose.msra.mxu0 0.0
    %1294 = vmatprep.subr.mxu0 0.0
    %1295 = vmatpush1.xpose.msra.mxu0 0.0
    %1296 = vmatprep.subr.mxu0 0.0
    %1297 = vmatpush1.xpose.msra.mxu0 0.0
    %1298 = vmatprep.subr.mxu0 0.0
    %1299 = vmatpush1.xpose.msra.mxu0 0.0
    %1300 = vmatprep.subr.mxu0 0.0
    %1301 = vmatpush1.xpose.msra.mxu0 %v1268
    %1302 = vmatprep.subr.mxu0 0.0
    %1303 = vmatpush2.xpose.msra.mxu0 0.0
    %1304 = vmatprep.subr.mxu0 0.0
    %1305 = vmatpush2.xpose.msra.mxu0 0.0
    %1306 = vmatprep.subr.mxu0 0.0
    %1307 = vmatpush2.xpose.msra.mxu0 0.0
    %1308 = vmatprep.subr.mxu0 0.0
    %1309 = vmatpush2.xpose.msra.mxu0 0.0
    %1310 = vmatprep.subr.mxu0 0.0
    %1311 = vmatpush2.xpose.msra.mxu0 0.0
    %1312 = vmatprep.subr.mxu0 0.0
    %1313 = vmatpush2.xpose.msra.mxu0 0.0
    %1314 = vmatprep.subr.mxu0 0.0
    %1315 = vmatpush2.xpose.msra.mxu0 0.0
    %1316 = vmatprep.subr.mxu0 0.0
    %1317 = vmatpush2.xpose.msra.mxu0 0.0
    %1318 = vmatprep.subr.mxu0 0.0
    %1319 = vmatpush2.xpose.msra.mxu0 0.0
    %1320 = vmatprep.subr.mxu0 0.0
    %1321 = vmatpush2.xpose.msra.mxu0 0.0
    %1322 = vmatprep.subr.mxu0 0.0
    %1323 = vmatpush2.xpose.msra.mxu0 0.0
    %1324 = vmatprep.subr.mxu0 0.0
    %1325 = vmatpush2.xpose.msra.mxu0 0.0
    %1326 = vmatprep.subr.mxu0 0.0
    %1327 = vmatpush2.xpose.msra.mxu0 0.0
    %1328 = vmatprep.subr.mxu0 0.0
    %1329 = vmatpush2.xpose.msra.mxu0 0.0
    %1330 = vmatprep.subr.mxu0 0.0
    %1331 = vmatpush2.xpose.msra.mxu0 0.0
    %1332 = vmatprep.subr.mxu0 0.0
    %1333 = vmatpush2.xpose.msra.mxu0 0.0
    %1334 = vmatprep.mubr.f32.mxu0 0.0
    %1335 = vmatmul.mubr.f32.gmra.mxu0 %v1266
    %v1336 = vpop.f32.mrf.mxu0
    %v1337 = vadd.f32 0.0, %v1336
    %v1338 = vpop.f32.mrf.mxu0
    %1339 = vdwg.mxu0
    %v1340 = vsel %vm196, %v1259, -inf
    %1341 = vmax.xlane.f32.xlu0 %v1340
    %v1342 = vpop.xlane.xlu0 %1341
    %v1343 = vsel %vm196, %v1337, -inf
    %1344 = vmax.xlane.f32.xlu0 %v1343
    %v1345 = vpop.xlane.xlu0 %1344
    %v1346 = vsub.f32 %v1259, %v1342
    %v1347 = vsub.f32 %v1337, %v1345
    %v1348 = vmul.f32 %v1346, 1.442695
    %v1349 = vpow.pop %v1348
    %v1350 = vmul.f32 %v1347, 1.442695
    %v1351 = vpow.pop %v1350
    %v1352 = vsel %vm196, %v1349, 0.0
    %1353 = vadd.xlane.f32.xlu0 %v1352
    %v1354 = vpop.xlane.xlu0 %1353
    %v1355 = vsel %vm196, %v1351, 0.0
    %1356 = vadd.xlane.f32.xlu0 %v1355
    %v1357 = vpop.xlane.xlu0 %1356
    %v1358 = vrcp.pop %v1354
    %v1359 = vrcp.pop %v1357
    %v1360 = vmul.f32 %v1349, %v1358
    %v1361 = vmul.f32 %v1351, %v1359
    %1362 = vrot.lane.b32.xlu0 %v183, 40
    %v1363 = vpop.permute.xlu0 %1362
    %v1366 = vsel %vm196, %v1360, 0
    %1368 = vmatprep.subr.mxu0 0.0
    %1369 = vmatpush1.msra.mxu0 0.0
    %1370 = vmatprep.subr.mxu0 0.0
    %1371 = vmatpush1.msra.mxu0 0.0
    %1372 = vmatprep.subr.mxu0 0.0
    %1373 = vmatpush1.msra.mxu0 0.0
    %1374 = vmatprep.subr.mxu0 0.0
    %1375 = vmatpush1.msra.mxu0 0.0
    %1376 = vmatprep.subr.mxu0 0.0
    %1377 = vmatpush1.msra.mxu0 0.0
    %1378 = vmatprep.subr.mxu0 0.0
    %1379 = vmatpush1.msra.mxu0 0.0
    %1380 = vmatprep.subr.mxu0 0.0
    %1381 = vmatpush1.msra.mxu0 0.0
    %1382 = vmatprep.subr.mxu0 0.0
    %1383 = vmatpush1.msra.mxu0 0.0
    %1384 = vmatprep.subr.mxu0 0.0
    %1385 = vmatpush1.msra.mxu0 0.0
    %1386 = vmatprep.subr.mxu0 0.0
    %1387 = vmatpush1.msra.mxu0 0.0
    %1388 = vmatprep.subr.mxu0 0.0
    %1389 = vmatpush1.msra.mxu0 0.0
    %1390 = vmatprep.subr.mxu0 0.0
    %1391 = vmatpush1.msra.mxu0 0.0
    %1392 = vmatprep.subr.mxu0 0.0
    %1393 = vmatpush1.msra.mxu0 0.0
    %1394 = vmatprep.subr.mxu0 0.0
    %1395 = vmatpush1.msra.mxu0 0.0
    %1396 = vmatprep.subr.mxu0 0.0
    %1397 = vmatpush1.msra.mxu0 0.0
    %1398 = vmatprep.subr.mxu0 0.0
    %1399 = vmatpush1.msra.mxu0 %v1363
    %1400 = vmatprep.subr.mxu0 0.0
    %1401 = vmatpush2.msra.mxu0 0.0
    %1402 = vmatprep.subr.mxu0 0.0
    %1403 = vmatpush2.msra.mxu0 0.0
    %1404 = vmatprep.subr.mxu0 0.0
    %1405 = vmatpush2.msra.mxu0 0.0
    %1406 = vmatprep.subr.mxu0 0.0
    %1407 = vmatpush2.msra.mxu0 0.0
    %1408 = vmatprep.subr.mxu0 0.0
    %1409 = vmatpush2.msra.mxu0 0.0
    %1410 = vmatprep.subr.mxu0 0.0
    %1411 = vmatpush2.msra.mxu0 0.0
    %1412 = vmatprep.subr.mxu0 0.0
    %1413 = vmatpush2.msra.mxu0 0.0
    %1414 = vmatprep.subr.mxu0 0.0
    %1415 = vmatpush2.msra.mxu0 0.0
    %1416 = vmatprep.subr.mxu0 0.0
    %1417 = vmatpush2.msra.mxu0 0.0
    %1418 = vmatprep.subr.mxu0 0.0
    %1419 = vmatpush2.msra.mxu0 0.0
    %1420 = vmatprep.subr.mxu0 0.0
    %1421 = vmatpush2.msra.mxu0 0.0
    %1422 = vmatprep.subr.mxu0 0.0
    %1423 = vmatpush2.msra.mxu0 0.0
    %1424 = vmatprep.subr.mxu0 0.0
    %1425 = vmatpush2.msra.mxu0 0.0
    %1426 = vmatprep.subr.mxu0 0.0
    %1427 = vmatpush2.msra.mxu0 0.0
    %1428 = vmatprep.subr.mxu0 0.0
    %1429 = vmatpush2.msra.mxu0 0.0
    %1430 = vmatprep.subr.mxu0 0.0
    %1431 = vmatpush2.msra.mxu0 0.0
    %1432 = vmatprep.mubr.f32.mxu0 0.0
    %1433 = vmatmul.mubr.f32.gmra.mxu0 %v1366
    %v1434 = vpop.f32.mrf.mxu0
    %v1435 = vadd.f32 0.0, %v1434
    %v1436 = vpop.f32.mrf.mxu0
    %1437 = vdwg.mxu0
    %1438 = vrot.lane.b32.xlu0 %v188, 40
    %v1439 = vpop.permute.xlu0 %1438
    %v1442 = vsel %vm196, %v1361, 0
    %1444 = vmatprep.subr.mxu0 0.0
    %1445 = vmatpush1.msra.mxu0 0.0
    %1446 = vmatprep.subr.mxu0 0.0
    %1447 = vmatpush1.msra.mxu0 0.0
    %1448 = vmatprep.subr.mxu0 0.0
    %1449 = vmatpush1.msra.mxu0 0.0
    %1450 = vmatprep.subr.mxu0 0.0
    %1451 = vmatpush1.msra.mxu0 0.0
    %1452 = vmatprep.subr.mxu0 0.0
    %1453 = vmatpush1.msra.mxu0 0.0
    %1454 = vmatprep.subr.mxu0 0.0
    %1455 = vmatpush1.msra.mxu0 0.0
    %1456 = vmatprep.subr.mxu0 0.0
    %1457 = vmatpush1.msra.mxu0 0.0
    %1458 = vmatprep.subr.mxu0 0.0
    %1459 = vmatpush1.msra.mxu0 0.0
    %1460 = vmatprep.subr.mxu0 0.0
    %1461 = vmatpush1.msra.mxu0 0.0
    %1462 = vmatprep.subr.mxu0 0.0
    %1463 = vmatpush1.msra.mxu0 0.0
    %1464 = vmatprep.subr.mxu0 0.0
    %1465 = vmatpush1.msra.mxu0 0.0
    %1466 = vmatprep.subr.mxu0 0.0
    %1467 = vmatpush1.msra.mxu0 0.0
    %1468 = vmatprep.subr.mxu0 0.0
    %1469 = vmatpush1.msra.mxu0 0.0
    %1470 = vmatprep.subr.mxu0 0.0
    %1471 = vmatpush1.msra.mxu0 0.0
    %1472 = vmatprep.subr.mxu0 0.0
    %1473 = vmatpush1.msra.mxu0 0.0
    %1474 = vmatprep.subr.mxu0 0.0
    %1475 = vmatpush1.msra.mxu0 %v1439
    %1476 = vmatprep.subr.mxu0 0.0
    %1477 = vmatpush2.msra.mxu0 0.0
    %1478 = vmatprep.subr.mxu0 0.0
    %1479 = vmatpush2.msra.mxu0 0.0
    %1480 = vmatprep.subr.mxu0 0.0
    %1481 = vmatpush2.msra.mxu0 0.0
    %1482 = vmatprep.subr.mxu0 0.0
    %1483 = vmatpush2.msra.mxu0 0.0
    %1484 = vmatprep.subr.mxu0 0.0
    %1485 = vmatpush2.msra.mxu0 0.0
    %1486 = vmatprep.subr.mxu0 0.0
    %1487 = vmatpush2.msra.mxu0 0.0
    %1488 = vmatprep.subr.mxu0 0.0
    %1489 = vmatpush2.msra.mxu0 0.0
    %1490 = vmatprep.subr.mxu0 0.0
    %1491 = vmatpush2.msra.mxu0 0.0
    %1492 = vmatprep.subr.mxu0 0.0
    %1493 = vmatpush2.msra.mxu0 0.0
    %1494 = vmatprep.subr.mxu0 0.0
    %1495 = vmatpush2.msra.mxu0 0.0
    %1496 = vmatprep.subr.mxu0 0.0
    %1497 = vmatpush2.msra.mxu0 0.0
    %1498 = vmatprep.subr.mxu0 0.0
    %1499 = vmatpush2.msra.mxu0 0.0
    %1500 = vmatprep.subr.mxu0 0.0
    %1501 = vmatpush2.msra.mxu0 0.0
    %1502 = vmatprep.subr.mxu0 0.0
    %1503 = vmatpush2.msra.mxu0 0.0
    %1504 = vmatprep.subr.mxu0 0.0
    %1505 = vmatpush2.msra.mxu0 0.0
    %1506 = vmatprep.subr.mxu0 0.0
    %1507 = vmatpush2.msra.mxu0 0.0
    %1508 = vmatprep.mubr.f32.mxu0 0.0
    %1509 = vmatmul.mubr.f32.gmra.mxu0 %v1442
    %v1510 = vpop.f32.mrf.mxu0
    %v1511 = vadd.f32 0.0, %v1510
    %v1512 = vpop.f32.mrf.mxu0
    %1513 = vdwg.mxu0
    %1516 = vrot.lane.b32.xlu0 %v775, 8
    %v1517 = vpop.permute.xlu0 %1516
    %1518 = vrot.lane.b32.xlu0 %v851, 8
    %v1519 = vpop.permute.xlu0 %1518
    %1524 = vrot.lane.b32.xlu0 %v1105, 16
    %v1525 = vpop.permute.xlu0 %1524
    %1526 = vrot.lane.b32.xlu0 %v1181, 16
    %v1527 = vpop.permute.xlu0 %1526
    %1532 = vrot.lane.b32.xlu0 %v1435, 24
    %v1533 = vpop.permute.xlu0 %1532
    %1534 = vrot.lane.b32.xlu0 %v1511, 24
    %v1535 = vpop.permute.xlu0 %1534
    %v1538 = vsel %vm196, %v445, %v1517
    %v1539 = vsel %vm196, %v521, %v1519
    %vm1540 = vcmask 130048
    %v1541 = vsel %vm1540, %v1538, %v1525
    %v1542 = vsel %vm1540, %v1539, %v1527
    %vm1543 = vcmask 195584
    %v1544 = vsel %vm1543, %v1541, %v1533
    %v1545 = vsel %vm1543, %v1542, %v1535
    %v1546 = vld [vmem:[%s5] sm:$0xff]
    %v1547 = vld [vmem:[%s5 + $0x8] sm:$0xff]
    %v1548 = vld [vmem:[%s5 + $0x10] sm:$0xff]
    %v1549 = vld [vmem:[%s5 + $0x18] sm:$0xff]
    %v1550 = vld [vmem:[%s6] sm:$0x1]
    %v1552 = vlaneseq
    %v1553 = vshrl.u32 %v1552, 7
    %v1554 = vsub.s32 0, %v1553
    %v1555 = vrot.slane %v1550, %v1554
    %v1558 = vsel %vm55, %v1544, 0
    %v1561 = vsel %vm55, %v1545, 0
    %1563 = vmatprep.subr.mxu0 0.0
    %1564 = vmatpush1.msra.mxu0 0.0
    %1565 = vmatprep.subr.mxu0 0.0
    %1566 = vmatpush1.msra.mxu0 0.0
    %1567 = vmatprep.subr.mxu0 0.0
    %1568 = vmatpush1.msra.mxu0 0.0
    %1569 = vmatprep.subr.mxu0 0.0
    %1570 = vmatpush1.msra.mxu0 0.0
    %1571 = vmatprep.subr.mxu0 0.0
    %1572 = vmatpush1.msra.mxu0 0.0
    %1573 = vmatprep.subr.mxu0 0.0
    %1574 = vmatpush1.msra.mxu0 0.0
    %1575 = vmatprep.subr.mxu0 0.0
    %1576 = vmatpush1.msra.mxu0 0.0
    %1577 = vmatprep.subr.mxu0 0.0
    %1578 = vmatpush1.msra.mxu0 0.0
    %1579 = vmatprep.subr.mxu0 0.0
    %1580 = vmatpush1.msra.mxu0 0.0
    %1581 = vmatprep.subr.mxu0 0.0
    %1582 = vmatpush1.msra.mxu0 0.0
    %1583 = vmatprep.subr.mxu0 0.0
    %1584 = vmatpush1.msra.mxu0 0.0
    %1585 = vmatprep.subr.mxu0 0.0
    %1586 = vmatpush1.msra.mxu0 0.0
    %1587 = vmatprep.subr.mxu0 0.0
    %1588 = vmatpush1.msra.mxu0 %v1549
    %1589 = vmatprep.subr.mxu0 0.0
    %1590 = vmatpush1.msra.mxu0 %v1548
    %1591 = vmatprep.subr.mxu0 0.0
    %1592 = vmatpush1.msra.mxu0 %v1547
    %1593 = vmatprep.subr.mxu0 0.0
    %1594 = vmatpush1.msra.mxu0 %v1546
    %1595 = vmatprep.subr.mxu0 0.0
    %1596 = vmatpush2.msra.mxu0 0.0
    %1597 = vmatprep.subr.mxu0 0.0
    %1598 = vmatpush2.msra.mxu0 0.0
    %1599 = vmatprep.subr.mxu0 0.0
    %1600 = vmatpush2.msra.mxu0 0.0
    %1601 = vmatprep.subr.mxu0 0.0
    %1602 = vmatpush2.msra.mxu0 0.0
    %1603 = vmatprep.subr.mxu0 0.0
    %1604 = vmatpush2.msra.mxu0 0.0
    %1605 = vmatprep.subr.mxu0 0.0
    %1606 = vmatpush2.msra.mxu0 0.0
    %1607 = vmatprep.subr.mxu0 0.0
    %1608 = vmatpush2.msra.mxu0 0.0
    %1609 = vmatprep.subr.mxu0 0.0
    %1610 = vmatpush2.msra.mxu0 0.0
    %1611 = vmatprep.subr.mxu0 0.0
    %1612 = vmatpush2.msra.mxu0 0.0
    %1613 = vmatprep.subr.mxu0 0.0
    %1614 = vmatpush2.msra.mxu0 0.0
    %1615 = vmatprep.subr.mxu0 0.0
    %1616 = vmatpush2.msra.mxu0 0.0
    %1617 = vmatprep.subr.mxu0 0.0
    %1618 = vmatpush2.msra.mxu0 0.0
    %1619 = vmatprep.subr.mxu0 0.0
    %1620 = vmatpush2.msra.mxu0 0.0
    %1621 = vmatprep.subr.mxu0 0.0
    %1622 = vmatpush2.msra.mxu0 0.0
    %1623 = vmatprep.subr.mxu0 0.0
    %1624 = vmatpush2.msra.mxu0 0.0
    %1625 = vmatprep.subr.mxu0 0.0
    %1626 = vmatpush2.msra.mxu0 0.0
    %1627 = vmatprep.mubr.f32.mxu0 0.0
    %1628 = vmatmul.mubr.f32.gmra.mxu0 %v1558
    %v1629 = vpop.f32.mrf.mxu0
    %v1630 = vadd.f32 %v1555, %v1629
    %v1631 = vpop.f32.mrf.mxu0
    %1632 = vmatprep.mubr.f32.mxu0 0.0
    %1633 = vmatmul.mubr.f32.gmra.mxu0 %v1561
    %v1634 = vpop.f32.mrf.mxu0
    %v1635 = vadd.f32 %v1555, %v1634
    %v1636 = vpop.f32.mrf.mxu0
    %1637 = vdwg.mxu0
    %v1638 = vadd.f32 %v1630, %v97
    %v1639 = vadd.f32 %v1635, %v98
    %v1640 = vld [vmem:[%s7] sm:$0x1]
    %v1641 = vld [vmem:[%s8] sm:$0x1]
    %v1642 = vsel %vm55, %v1638, 0.0
    %1643 = vadd.xlane.f32.xlu0 %v1642
    %v1644 = vpop.xlane.xlu0 %1643
    %v1645 = vsel %vm55, %v1639, 0.0
    %1646 = vadd.xlane.f32.xlu0 %v1645
    %v1647 = vpop.xlane.xlu0 %1646
    %v1648 = vmul.f32 %v1644, %v62
    %v1649 = vmul.f32 %v1647, %v62
    %v1650 = vsub.f32 %v1638, %v1648
    %v1651 = vsub.f32 %v1639, %v1649
    %v1652 = vmul.f32 %v1650, %v1650
    %v1653 = vmul.f32 %v1651, %v1651
    %v1654 = vsel %vm55, %v1652, 0.0
    %1655 = vadd.xlane.f32.xlu0 %v1654
    %v1656 = vpop.xlane.xlu0 %1655
    %v1657 = vsel %vm55, %v1653, 0.0
    %1658 = vadd.xlane.f32.xlu0 %v1657
    %v1659 = vpop.xlane.xlu0 %1658
    %v1660 = vmul.f32 %v1656, %v62
    %v1661 = vmul.f32 %v1659, %v62
    %v1662 = vadd.f32 %v1660, 1e-12
    %v1663 = vadd.f32 %v1661, 1e-12
    %v1664 = vrsqrt.pop %v1662
    %v1665 = vrsqrt.pop %v1663
    %v1666 = vmul.f32 %v1650, %v1664
    %v1667 = vmul.f32 %v1651, %v1665
    %v1669 = vlaneseq
    %v1670 = vshrl.u32 %v1669, 7
    %v1671 = vsub.s32 0, %v1670
    %v1672 = vrot.slane %v1640, %v1671
    %v1674 = vmul.f32 %v1666, %v1672
    %v1675 = vmul.f32 %v1667, %v1672
    %v1677 = vlaneseq
    %v1678 = vshrl.u32 %v1677, 7
    %v1679 = vsub.s32 0, %v1678
    %v1680 = vrot.slane %v1641, %v1679
    %v1682 = vadd.f32 %v1674, %v1680
    %v1683 = vadd.f32 %v1675, %v1680
    %v1684 = vld [vmem:[%s9] sm:$0xff]
    %v1685 = vld [vmem:[%s9 + $0x8] sm:$0xff]
    %v1686 = vld [vmem:[%s9 + $0x10] sm:$0xff]
    %v1687 = vld [vmem:[%s9 + $0x18] sm:$0xff]
    %v1688 = vld [vmem:[%s10] sm:$0x1]
    %v1690 = vlaneseq
    %v1691 = vshrl.u32 %v1690, 7
    %v1692 = vsub.s32 0, %v1691
    %v1693 = vrot.slane %v1688, %v1692
    %v1696 = vsel %vm55, %v1682, 0
    %v1699 = vsel %vm55, %v1683, 0
    %1701 = vmatprep.subr.mxu0 0.0
    %1702 = vmatpush1.msra.mxu0 0.0
    %1703 = vmatprep.subr.mxu0 0.0
    %1704 = vmatpush1.msra.mxu0 0.0
    %1705 = vmatprep.subr.mxu0 0.0
    %1706 = vmatpush1.msra.mxu0 0.0
    %1707 = vmatprep.subr.mxu0 0.0
    %1708 = vmatpush1.msra.mxu0 0.0
    %1709 = vmatprep.subr.mxu0 0.0
    %1710 = vmatpush1.msra.mxu0 0.0
    %1711 = vmatprep.subr.mxu0 0.0
    %1712 = vmatpush1.msra.mxu0 0.0
    %1713 = vmatprep.subr.mxu0 0.0
    %1714 = vmatpush1.msra.mxu0 0.0
    %1715 = vmatprep.subr.mxu0 0.0
    %1716 = vmatpush1.msra.mxu0 0.0
    %1717 = vmatprep.subr.mxu0 0.0
    %1718 = vmatpush1.msra.mxu0 0.0
    %1719 = vmatprep.subr.mxu0 0.0
    %1720 = vmatpush1.msra.mxu0 0.0
    %1721 = vmatprep.subr.mxu0 0.0
    %1722 = vmatpush1.msra.mxu0 0.0
    %1723 = vmatprep.subr.mxu0 0.0
    %1724 = vmatpush1.msra.mxu0 0.0
    %1725 = vmatprep.subr.mxu0 0.0
    %1726 = vmatpush1.msra.mxu0 %v1687
    %1727 = vmatprep.subr.mxu0 0.0
    %1728 = vmatpush1.msra.mxu0 %v1686
    %1729 = vmatprep.subr.mxu0 0.0
    %1730 = vmatpush1.msra.mxu0 %v1685
    %1731 = vmatprep.subr.mxu0 0.0
    %1732 = vmatpush1.msra.mxu0 %v1684
    %1733 = vmatprep.subr.mxu0 0.0
    %1734 = vmatpush2.msra.mxu0 0.0
    %1735 = vmatprep.subr.mxu0 0.0
    %1736 = vmatpush2.msra.mxu0 0.0
    %1737 = vmatprep.subr.mxu0 0.0
    %1738 = vmatpush2.msra.mxu0 0.0
    %1739 = vmatprep.subr.mxu0 0.0
    %1740 = vmatpush2.msra.mxu0 0.0
    %1741 = vmatprep.subr.mxu0 0.0
    %1742 = vmatpush2.msra.mxu0 0.0
    %1743 = vmatprep.subr.mxu0 0.0
    %1744 = vmatpush2.msra.mxu0 0.0
    %1745 = vmatprep.subr.mxu0 0.0
    %1746 = vmatpush2.msra.mxu0 0.0
    %1747 = vmatprep.subr.mxu0 0.0
    %1748 = vmatpush2.msra.mxu0 0.0
    %1749 = vmatprep.subr.mxu0 0.0
    %1750 = vmatpush2.msra.mxu0 0.0
    %1751 = vmatprep.subr.mxu0 0.0
    %1752 = vmatpush2.msra.mxu0 0.0
    %1753 = vmatprep.subr.mxu0 0.0
    %1754 = vmatpush2.msra.mxu0 0.0
    %1755 = vmatprep.subr.mxu0 0.0
    %1756 = vmatpush2.msra.mxu0 0.0
    %1757 = vmatprep.subr.mxu0 0.0
    %1758 = vmatpush2.msra.mxu0 0.0
    %1759 = vmatprep.subr.mxu0 0.0
    %1760 = vmatpush2.msra.mxu0 0.0
    %1761 = vmatprep.subr.mxu0 0.0
    %1762 = vmatpush2.msra.mxu0 0.0
    %1763 = vmatprep.subr.mxu0 0.0
    %1764 = vmatpush2.msra.mxu0 0.0
    %1765 = vmatprep.mubr.f32.mxu0 0.0
    %1766 = vmatmul.mubr.f32.gmra.mxu0 %v1696
    %v1767 = vpop.f32.mrf.mxu0
    %v1768 = vadd.f32 %v1693, %v1767
    %v1769 = vpop.f32.mrf.mxu0
    %1770 = vmatprep.mubr.f32.mxu0 0.0
    %1771 = vmatmul.mubr.f32.gmra.mxu0 %v1699
    %v1772 = vpop.f32.mrf.mxu0
    %v1773 = vadd.f32 %v1693, %v1772
    %v1774 = vpop.f32.mrf.mxu0
    %1775 = vdwg.mxu0
    %v1776 = vmul.f32 %v1768, 0.5
    %v1777 = vmul.f32 %v1773, 0.5
    %v1778 = vmul.f32 %v1768, 0.044715
    %v1779 = vmul.f32 %v1773, 0.044715
    %v1780 = vmul.f32 %v1778, %v1768
    %v1781 = vmul.f32 %v1779, %v1773
    %v1782 = vmul.f32 %v1780, %v1768
    %v1783 = vmul.f32 %v1781, %v1773
    %v1784 = vadd.f32 %v1768, %v1782
    %v1785 = vadd.f32 %v1773, %v1783
    %v1786 = vmul.f32 %v1784, 0.7978846
    %v1787 = vmul.f32 %v1785, 0.7978846
    %v1788 = vtanh.pop %v1786
    %v1789 = vtanh.pop %v1787
    %v1790 = vadd.f32 %v1788, 1.0
    %v1791 = vadd.f32 %v1789, 1.0
    %v1792 = vmul.f32 %v1776, %v1790
    %v1793 = vmul.f32 %v1777, %v1791
    %v1794 = vld [vmem:[%s11] sm:$0xff]
    %v1795 = vld [vmem:[%s11 + $0x8] sm:$0xff]
    %v1796 = vld [vmem:[%s11 + $0x10] sm:$0xff]
    %v1797 = vld [vmem:[%s11 + $0x18] sm:$0xff]
    %v1798 = vld [vmem:[%s11 + $0x20] sm:$0xff]
    %v1799 = vld [vmem:[%s11 + $0x28] sm:$0xff]
    %v1800 = vld [vmem:[%s11 + $0x30] sm:$0xff]
    %v1801 = vld [vmem:[%s11 + $0x38] sm:$0xff]
    %v1802 = vld [vmem:[%s12] sm:$0x1]
    %v1804 = vlaneseq
    %v1805 = vshrl.u32 %v1804, 7
    %v1806 = vsub.s32 0, %v1805
    %v1807 = vrot.slane %v1802, %v1806
    %vm1809 = vcmask 523264
    %v1811 = vsel %vm1809, %v1792, 0
    %v1814 = vsel %vm1809, %v1793, 0
    %1816 = vmatprep.subr.mxu0 0.0
    %1817 = vmatpush1.msra.mxu0 0.0
    %1818 = vmatprep.subr.mxu0 0.0
    %1819 = vmatpush1.msra.mxu0 0.0
    %1820 = vmatprep.subr.mxu0 0.0
    %1821 = vmatpush1.msra.mxu0 0.0
    %1822 = vmatprep.subr.mxu0 0.0
    %1823 = vmatpush1.msra.mxu0 0.0
    %1824 = vmatprep.subr.mxu0 0.0
    %1825 = vmatpush1.msra.mxu0 0.0
    %1826 = vmatprep.subr.mxu0 0.0
    %1827 = vmatpush1.msra.mxu0 0.0
    %1828 = vmatprep.subr.mxu0 0.0
    %1829 = vmatpush1.msra.mxu0 0.0
    %1830 = vmatprep.subr.mxu0 0.0
    %1831 = vmatpush1.msra.mxu0 0.0
    %1832 = vmatprep.subr.mxu0 0.0
    %1833 = vmatpush1.msra.mxu0 %v1801
    %1834 = vmatprep.subr.mxu0 0.0
    %1835 = vmatpush1.msra.mxu0 %v1800
    %1836 = vmatprep.subr.mxu0 0.0
    %1837 = vmatpush1.msra.mxu0 %v1799
    %1838 = vmatprep.subr.mxu0 0.0
    %1839 = vmatpush1.msra.mxu0 %v1798
    %1840 = vmatprep.subr.mxu0 0.0
    %1841 = vmatpush1.msra.mxu0 %v1797
    %1842 = vmatprep.subr.mxu0 0.0
    %1843 = vmatpush1.msra.mxu0 %v1796
    %1844 = vmatprep.subr.mxu0 0.0
    %1845 = vmatpush1.msra.mxu0 %v1795
    %1846 = vmatprep.subr.mxu0 0.0
    %1847 = vmatpush1.msra.mxu0 %v1794
    %1848 = vmatprep.subr.mxu0 0.0
    %1849 = vmatpush2.msra.mxu0 0.0
    %1850 = vmatprep.subr.mxu0 0.0
    %1851 = vmatpush2.msra.mxu0 0.0
    %1852 = vmatprep.subr.mxu0 0.0
    %1853 = vmatpush2.msra.mxu0 0.0
    %1854 = vmatprep.subr.mxu0 0.0
    %1855 = vmatpush2.msra.mxu0 0.0
    %1856 = vmatprep.subr.mxu0 0.0
    %1857 = vmatpush2.msra.mxu0 0.0
    %1858 = vmatprep.subr.mxu0 0.0
    %1859 = vmatpush2.msra.mxu0 0.0
    %1860 = vmatprep.subr.mxu0 0.0
    %1861 = vmatpush2.msra.mxu0 0.0
    %1862 = vmatprep.subr.mxu0 0.0
    %1863 = vmatpush2.msra.mxu0 0.0
    %1864 = vmatprep.subr.mxu0 0.0
    %1865 = vmatpush2.msra.mxu0 0.0
    %1866 = vmatprep.subr.mxu0 0.0
    %1867 = vmatpush2.msra.mxu0 0.0
    %1868 = vmatprep.subr.mxu0 0.0
    %1869 = vmatpush2.msra.mxu0 0.0
    %1870 = vmatprep.subr.mxu0 0.0
    %1871 = vmatpush2.msra.mxu0 0.0
    %1872 = vmatprep.subr.mxu0 0.0
    %1873 = vmatpush2.msra.mxu0 0.0
    %1874 = vmatprep.subr.mxu0 0.0
    %1875 = vmatpush2.msra.mxu0 0.0
    %1876 = vmatprep.subr.mxu0 0.0
    %1877 = vmatpush2.msra.mxu0 0.0
    %1878 = vmatprep.subr.mxu0 0.0
    %1879 = vmatpush2.msra.mxu0 0.0
    %1880 = vmatprep.mubr.f32.mxu0 0.0
    %1881 = vmatmul.mubr.f32.gmra.mxu0 %v1811
    %v1882 = vpop.f32.mrf.mxu0
    %v1883 = vadd.f32 %v1807, %v1882
    %v1884 = vpop.f32.mrf.mxu0
    %1885 = vmatprep.mubr.f32.mxu0 0.0
    %1886 = vmatmul.mubr.f32.gmra.mxu0 %v1814
    %v1887 = vpop.f32.mrf.mxu0
    %v1888 = vadd.f32 %v1807, %v1887
    %v1889 = vpop.f32.mrf.mxu0
    %1890 = vdwg.mxu0
    %v1891 = vadd.f32 %v1883, %v1682
    %v1892 = vadd.f32 %v1888, %v1683
    %v1893 = vld [vmem:[%s13] sm:$0x1]
    %v1894 = vld [vmem:[%s14] sm:$0x1]
    %v1895 = vsel %vm55, %v1891, 0.0
    %1896 = vadd.xlane.f32.xlu0 %v1895
    %v1897 = vpop.xlane.xlu0 %1896
    %v1898 = vsel %vm55, %v1892, 0.0
    %1899 = vadd.xlane.f32.xlu0 %v1898
    %v1900 = vpop.xlane.xlu0 %1899
    %v1901 = vmul.f32 %v1897, %v62
    %v1902 = vmul.f32 %v1900, %v62
    %v1903 = vsub.f32 %v1891, %v1901
    %v1904 = vsub.f32 %v1892, %v1902
    %v1905 = vmul.f32 %v1903, %v1903
    %v1906 = vmul.f32 %v1904, %v1904
    %v1907 = vsel %vm55, %v1905, 0.0
    %1908 = vadd.xlane.f32.xlu0 %v1907
    %v1909 = vpop.xlane.xlu0 %1908
    %v1910 = vsel %vm55, %v1906, 0.0
    %1911 = vadd.xlane.f32.xlu0 %v1910
    %v1912 = vpop.xlane.xlu0 %1911
    %v1913 = vmul.f32 %v1909, %v62
    %v1914 = vmul.f32 %v1912, %v62
    %v1915 = vadd.f32 %v1913, 1e-12
    %v1916 = vadd.f32 %v1914, 1e-12
    %v1917 = vrsqrt.pop %v1915
    %v1918 = vrsqrt.pop %v1916
    %v1919 = vmul.f32 %v1903, %v1917
    %v1920 = vmul.f32 %v1904, %v1918
    %v1922 = vlaneseq
    %v1923 = vshrl.u32 %v1922, 7
    %v1924 = vsub.s32 0, %v1923
    %v1925 = vrot.slane %v1893, %v1924
    %v1927 = vmul.f32 %v1919, %v1925
    %v1928 = vmul.f32 %v1920, %v1925
    %v1930 = vlaneseq
    %v1931 = vshrl.u32 %v1930, 7
    %v1932 = vsub.s32 0, %v1931
    %v1933 = vrot.slane %v1894, %v1932
    %v1935 = vadd.f32 %v1927, %v1933
    %v1936 = vadd.f32 %v1928, %v1933
    %s1937 = scalar_lea.vmem %s3, 32
    %v1938 = vld [vmem:[%s1937] sm:$0xff]
    %v1939 = vld [vmem:[%s1937 + $0x8] sm:$0xff]
    %v1940 = vld [vmem:[%s1937 + $0x10] sm:$0xff]
    %v1941 = vld [vmem:[%s1937 + $0x18] sm:$0xff]
    %s1942 = scalar_lea.vmem %s4, 1
    %v1943 = vld [vmem:[%s1942] sm:$0x1]
    %v1945 = vlaneseq
    %v1946 = vshrl.u32 %v1945, 7
    %v1947 = vsub.s32 0, %v1946
    %v1948 = vrot.slane %v1943, %v1947
    %v1951 = vsel %vm55, %v1935, 0
    %v1954 = vsel %vm55, %v1936, 0
    %1956 = vmatprep.subr.mxu0 0.0
    %1957 = vmatpush1.msra.mxu0 0.0
    %1958 = vmatprep.subr.mxu0 0.0
    %1959 = vmatpush1.msra.mxu0 0.0
    %1960 = vmatprep.subr.mxu0 0.0
    %1961 = vmatpush1.msra.mxu0 0.0
    %1962 = vmatprep.subr.mxu0 0.0
    %1963 = vmatpush1.msra.mxu0 0.0
    %1964 = vmatprep.subr.mxu0 0.0
    %1965 = vmatpush1.msra.mxu0 0.0
    %1966 = vmatprep.subr.mxu0 0.0
    %1967 = vmatpush1.msra.mxu0 0.0
    %1968 = vmatprep.subr.mxu0 0.0
    %1969 = vmatpush1.msra.mxu0 0.0
    %1970 = vmatprep.subr.mxu0 0.0
    %1971 = vmatpush1.msra.mxu0 0.0
    %1972 = vmatprep.subr.mxu0 0.0
    %1973 = vmatpush1.msra.mxu0 0.0
    %1974 = vmatprep.subr.mxu0 0.0
    %1975 = vmatpush1.msra.mxu0 0.0
    %1976 = vmatprep.subr.mxu0 0.0
    %1977 = vmatpush1.msra.mxu0 0.0
    %1978 = vmatprep.subr.mxu0 0.0
    %1979 = vmatpush1.msra.mxu0 0.0
    %1980 = vmatprep.subr.mxu0 0.0
    %1981 = vmatpush1.msra.mxu0 %v1941
    %1982 = vmatprep.subr.mxu0 0.0
    %1983 = vmatpush1.msra.mxu0 %v1940
    %1984 = vmatprep.subr.mxu0 0.0
    %1985 = vmatpush1.msra.mxu0 %v1939
    %1986 = vmatprep.subr.mxu0 0.0
    %1987 = vmatpush1.msra.mxu0 %v1938
    %1988 = vmatprep.subr.mxu0 0.0
    %1989 = vmatpush2.msra.mxu0 0.0
    %1990 = vmatprep.subr.mxu0 0.0
    %1991 = vmatpush2.msra.mxu0 0.0
    %1992 = vmatprep.subr.mxu0 0.0
    %1993 = vmatpush2.msra.mxu0 0.0
    %1994 = vmatprep.subr.mxu0 0.0
    %1995 = vmatpush2.msra.mxu0 0.0
    %1996 = vmatprep.subr.mxu0 0.0
    %1997 = vmatpush2.msra.mxu0 0.0
    %1998 = vmatprep.subr.mxu0 0.0
    %1999 = vmatpush2.msra.mxu0 0.0
    %2000 = vmatprep.subr.mxu0 0.0
    %2001 = vmatpush2.msra.mxu0 0.0
    %2002 = vmatprep.subr.mxu0 0.0
    %2003 = vmatpush2.msra.mxu0 0.0
    %2004 = vmatprep.subr.mxu0 0.0
    %2005 = vmatpush2.msra.mxu0 0.0
    %2006 = vmatprep.subr.mxu0 0.0
    %2007 = vmatpush2.msra.mxu0 0.0
    %2008 = vmatprep.subr.mxu0 0.0
    %2009 = vmatpush2.msra.mxu0 0.0
    %2010 = vmatprep.subr.mxu0 0.0
    %2011 = vmatpush2.msra.mxu0 0.0
    %2012 = vmatprep.subr.mxu0 0.0
    %2013 = vmatpush2.msra.mxu0 0.0
    %2014 = vmatprep.subr.mxu0 0.0
    %2015 = vmatpush2.msra.mxu0 0.0
    %2016 = vmatprep.subr.mxu0 0.0
    %2017 = vmatpush2.msra.mxu0 0.0
    %2018 = vmatprep.subr.mxu0 0.0
    %2019 = vmatpush2.msra.mxu0 0.0
    %2020 = vmatprep.mubr.f32.mxu0 0.0
    %2021 = vmatmul.mubr.f32.gmra.mxu0 %v1951
    %v2022 = vpop.f32.mrf.mxu0
    %v2023 = vadd.f32 %v1948, %v2022
    %v2024 = vpop.f32.mrf.mxu0
    %2025 = vmatprep.mubr.f32.mxu0 0.0
    %2026 = vmatmul.mubr.f32.gmra.mxu0 %v1954
    %v2027 = vpop.f32.mrf.mxu0
    %v2028 = vadd.f32 %v1948, %v2027
    %v2029 = vpop.f32.mrf.mxu0
    %2030 = vdwg.mxu0
    %v2031 = vmul.f32 %v2023, 0.35355338
    %v2032 = vmul.f32 %v2028, 0.35355338
    %2034 = vrot.lane.b32.xlu0 %v2023, 96
    %v2035 = vpop.permute.xlu0 %2034
    %v2037 = vsel %vm196, %v2031, 0
    %v2039 = vsel %vm196, %v2035, 0
    %2041 = vmatprep.subr.mxu0 0.0
    %2042 = vmatpush1.xpose.msra.mxu0 0.0
    %2043 = vmatprep.subr.mxu0 0.0
    %2044 = vmatpush1.xpose.msra.mxu0 0.0
    %2045 = vmatprep.subr.mxu0 0.0
    %2046 = vmatpush1.xpose.msra.mxu0 0.0
    %2047 = vmatprep.subr.mxu0 0.0
    %2048 = vmatpush1.xpose.msra.mxu0 0.0
    %2049 = vmatprep.subr.mxu0 0.0
    %2050 = vmatpush1.xpose.msra.mxu0 0.0
    %2051 = vmatprep.subr.mxu0 0.0
    %2052 = vmatpush1.xpose.msra.mxu0 0.0
    %2053 = vmatprep.subr.mxu0 0.0
    %2054 = vmatpush1.xpose.msra.mxu0 0.0
    %2055 = vmatprep.subr.mxu0 0.0
    %2056 = vmatpush1.xpose.msra.mxu0 0.0
    %2057 = vmatprep.subr.mxu0 0.0
    %2058 = vmatpush1.xpose.msra.mxu0 0.0
    %2059 = vmatprep.subr.mxu0 0.0
    %2060 = vmatpush1.xpose.msra.mxu0 0.0
    %2061 = vmatprep.subr.mxu0 0.0
    %2062 = vmatpush1.xpose.msra.mxu0 0.0
    %2063 = vmatprep.subr.mxu0 0.0
    %2064 = vmatpush1.xpose.msra.mxu0 0.0
    %2065 = vmatprep.subr.mxu0 0.0
    %2066 = vmatpush1.xpose.msra.mxu0 0.0
    %2067 = vmatprep.subr.mxu0 0.0
    %2068 = vmatpush1.xpose.msra.mxu0 0.0
    %2069 = vmatprep.subr.mxu0 0.0
    %2070 = vmatpush1.xpose.msra.mxu0 0.0
    %2071 = vmatprep.subr.mxu0 0.0
    %2072 = vmatpush1.xpose.msra.mxu0 %v2039
    %2073 = vmatprep.subr.mxu0 0.0
    %2074 = vmatpush2.xpose.msra.mxu0 0.0
    %2075 = vmatprep.subr.mxu0 0.0
    %2076 = vmatpush2.xpose.msra.mxu0 0.0
    %2077 = vmatprep.subr.mxu0 0.0
    %2078 = vmatpush2.xpose.msra.mxu0 0.0
    %2079 = vmatprep.subr.mxu0 0.0
    %2080 = vmatpush2.xpose.msra.mxu0 0.0
    %2081 = vmatprep.subr.mxu0 0.0
    %2082 = vmatpush2.xpose.msra.mxu0 0.0
    %2083 = vmatprep.subr.mxu0 0.0
    %2084 = vmatpush2.xpose.msra.mxu0 0.0
    %2085 = vmatprep.subr.mxu0 0.0
    %2086 = vmatpush2.xpose.msra.mxu0 0.0
    %2087 = vmatprep.subr.mxu0 0.0
    %2088 = vmatpush2.xpose.msra.mxu0 0.0
    %2089 = vmatprep.subr.mxu0 0.0
    %2090 = vmatpush2.xpose.msra.mxu0 0.0
    %2091 = vmatprep.subr.mxu0 0.0
    %2092 = vmatpush2.xpose.msra.mxu0 0.0
    %2093 = vmatprep.subr.mxu0 0.0
    %2094 = vmatpush2.xpose.msra.mxu0 0.0
    %2095 = vmatprep.subr.mxu0 0.0
    %2096 = vmatpush2.xpose.msra.mxu0 0.0
    %2097 = vmatprep.subr.mxu0 0.0
    %2098 = vmatpush2.xpose.msra.mxu0 0.0
    %2099 = vmatprep.subr.mxu0 0.0
    %2100 = vmatpush2.xpose.msra.mxu0 0.0
    %2101 = vmatprep.subr.mxu0 0.0
    %2102 = vmatpush2.xpose.msra.mxu0 0.0
    %2103 = vmatprep.subr.mxu0 0.0
    %2104 = vmatpush2.xpose.msra.mxu0 0.0
    %2105 = vmatprep.mubr.f32.mxu0 0.0
    %2106 = vmatmul.mubr.f32.gmra.mxu0 %v2037
    %v2107 = vpop.f32.mrf.mxu0
    %v2108 = vadd.f32 0.0, %v2107
    %v2109 = vpop.f32.mrf.mxu0
    %2110 = vdwg.mxu0
    %2112 = vrot.lane.b32.xlu0 %v2028, 96
    %v2113 = vpop.permute.xlu0 %2112
    %v2115 = vsel %vm196, %v2032, 0
    %v2117 = vsel %vm196, %v2113, 0
    %2119 = vmatprep.subr.mxu0 0.0
    %2120 = vmatpush1.xpose.msra.mxu0 0.0
    %2121 = vmatprep.subr.mxu0 0.0
    %2122 = vmatpush1.xpose.msra.mxu0 0.0
    %2123 = vmatprep.subr.mxu0 0.0
    %2124 = vmatpush1.xpose.msra.mxu0 0.0
    %2125 = vmatprep.subr.mxu0 0.0
    %2126 = vmatpush1.xpose.msra.mxu0 0.0
    %2127 = vmatprep.subr.mxu0 0.0
    %2128 = vmatpush1.xpose.msra.mxu0 0.0
    %2129 = vmatprep.subr.mxu0 0.0
    %2130 = vmatpush1.xpose.msra.mxu0 0.0
    %2131 = vmatprep.subr.mxu0 0.0
    %2132 = vmatpush1.xpose.msra.mxu0 0.0
    %2133 = vmatprep.subr.mxu0 0.0
    %2134 = vmatpush1.xpose.msra.mxu0 0.0
    %2135 = vmatprep.subr.mxu0 0.0
    %2136 = vmatpush1.xpose.msra.mxu0 0.0
    %2137 = vmatprep.subr.mxu0 0.0
    %2138 = vmatpush1.xpose.msra.mxu0 0.0
    %2139 = vmatprep.subr.mxu0 0.0
    %2140 = vmatpush1.xpose.msra.mxu0 0.0
    %2141 = vmatprep.subr.mxu0 0.0
    %2142 = vmatpush1.xpose.msra.mxu0 0.0
    %2143 = vmatprep.subr.mxu0 0.0
    %2144 = vmatpush1.xpose.msra.mxu0 0.0
    %2145 = vmatprep.subr.mxu0 0.0
    %2146 = vmatpush1.xpose.msra.mxu0 0.0
    %2147 = vmatprep.subr.mxu0 0.0
    %2148 = vmatpush1.xpose.msra.mxu0 0.0
    %2149 = vmatprep.subr.mxu0 0.0
    %2150 = vmatpush1.xpose.msra.mxu0 %v2117
    %2151 = vmatprep.subr.mxu0 0.0
    %2152 = vmatpush2.xpose.msra.mxu0 0.0
    %2153 = vmatprep.subr.mxu0 0.0
    %2154 = vmatpush2.xpose.msra.mxu0 0.0
    %2155 = vmatprep.subr.mxu0 0.0
    %2156 = vmatpush2.xpose.msra.mxu0 0.0
    %2157 = vmatprep.subr.mxu0 0.0
    %2158 = vmatpush2.xpose.msra.mxu0 0.0
    %2159 = vmatprep.subr.mxu0 0.0
    %2160 = vmatpush2.xpose.msra.mxu0 0.0
    %2161 = vmatprep.subr.mxu0 0.0
    %2162 = vmatpush2.xpose.msra.mxu0 0.0
    %2163 = vmatprep.subr.mxu0 0.0
    %2164 = vmatpush2.xpose.msra.mxu0 0.0
    %2165 = vmatprep.subr.mxu0 0.0
    %2166 = vmatpush2.xpose.msra.mxu0 0.0
    %2167 = vmatprep.subr.mxu0 0.0
    %2168 = vmatpush2.xpose.msra.mxu0 0.0
    %2169 = vmatprep.subr.mxu0 0.0
    %2170 = vmatpush2.xpose.msra.mxu0 0.0
    %2171 = vmatprep.subr.mxu0 0.0
    %2172 = vmatpush2.xpose.msra.mxu0 0.0
    %2173 = vmatprep.subr.mxu0 0.0
    %2174 = vmatpush2.xpose.msra.mxu0 0.0
    %2175 = vmatprep.subr.mxu0 0.0
    %2176 = vmatpush2.xpose.msra.mxu0 0.0
    %2177 = vmatprep.subr.mxu0 0.0
    %2178 = vmatpush2.xpose.msra.mxu0 0.0
    %2179 = vmatprep.subr.mxu0 0.0
    %2180 = vmatpush2.xpose.msra.mxu0 0.0
    %2181 = vmatprep.subr.mxu0 0.0
    %2182 = vmatpush2.xpose.msra.mxu0 0.0
    %2183 = vmatprep.mubr.f32.mxu0 0.0
    %2184 = vmatmul.mubr.f32.gmra.mxu0 %v2115
    %v2185 = vpop.f32.mrf.mxu0
    %v2186 = vadd.f32 0.0, %v2185
    %v2187 = vpop.f32.mrf.mxu0
    %2188 = vdwg.mxu0
    %v2189 = vsel %vm196, %v2108, -inf
    %2190 = vmax.xlane.f32.xlu0 %v2189
    %v2191 = vpop.xlane.xlu0 %2190
    %v2192 = vsel %vm196, %v2186, -inf
    %2193 = vmax.xlane.f32.xlu0 %v2192
    %v2194 = vpop.xlane.xlu0 %2193
    %v2195 = vsub.f32 %v2108, %v2191
    %v2196 = vsub.f32 %v2186, %v2194
    %v2197 = vmul.f32 %v2195, 1.442695
    %v2198 = vpow.pop %v2197
    %v2199 = vmul.f32 %v2196, 1.442695
    %v2200 = vpow.pop %v2199
    %v2201 = vsel %vm196, %v2198, 0.0
    %2202 = vadd.xlane.f32.xlu0 %v2201
    %v2203 = vpop.xlane.xlu0 %2202
    %v2204 = vsel %vm196, %v2200, 0.0
    %2205 = vadd.xlane.f32.xlu0 %v2204
    %v2206 = vpop.xlane.xlu0 %2205
    %v2207 = vrcp.pop %v2203
    %v2208 = vrcp.pop %v2206
    %v2209 = vmul.f32 %v2198, %v2207
    %v2210 = vmul.f32 %v2200, %v2208
    %2211 = vrot.lane.b32.xlu0 %v2023, 64
    %v2212 = vpop.permute.xlu0 %2211
    %v2215 = vsel %vm196, %v2209, 0
    %2217 = vmatprep.subr.mxu0 0.0
    %2218 = vmatpush1.msra.mxu0 0.0
    %2219 = vmatprep.subr.mxu0 0.0
    %2220 = vmatpush1.msra.mxu0 0.0
    %2221 = vmatprep.subr.mxu0 0.0
    %2222 = vmatpush1.msra.mxu0 0.0
    %2223 = vmatprep.subr.mxu0 0.0
    %2224 = vmatpush1.msra.mxu0 0.0
    %2225 = vmatprep.subr.mxu0 0.0
    %2226 = vmatpush1.msra.mxu0 0.0
    %2227 = vmatprep.subr.mxu0 0.0
    %2228 = vmatpush1.msra.mxu0 0.0
    %2229 = vmatprep.subr.mxu0 0.0
    %2230 = vmatpush1.msra.mxu0 0.0
    %2231 = vmatprep.subr.mxu0 0.0
    %2232 = vmatpush1.msra.mxu0 0.0
    %2233 = vmatprep.subr.mxu0 0.0
    %2234 = vmatpush1.msra.mxu0 0.0
    %2235 = vmatprep.subr.mxu0 0.0
    %2236 = vmatpush1.msra.mxu0 0.0
    %2237 = vmatprep.subr.mxu0 0.0
    %2238 = vmatpush1.msra.mxu0 0.0
    %2239 = vmatprep.subr.mxu0 0.0
    %2240 = vmatpush1.msra.mxu0 0.0
    %2241 = vmatprep.subr.mxu0 0.0
    %2242 = vmatpush1.msra.mxu0 0.0
    %2243 = vmatprep.subr.mxu0 0.0
    %2244 = vmatpush1.msra.mxu0 0.0
    %2245 = vmatprep.subr.mxu0 0.0
    %2246 = vmatpush1.msra.mxu0 0.0
    %2247 = vmatprep.subr.mxu0 0.0
    %2248 = vmatpush1.msra.mxu0 %v2212
    %2249 = vmatprep.subr.mxu0 0.0
    %2250 = vmatpush2.msra.mxu0 0.0
    %2251 = vmatprep.subr.mxu0 0.0
    %2252 = vmatpush2.msra.mxu0 0.0
    %2253 = vmatprep.subr.mxu0 0.0
    %2254 = vmatpush2.msra.mxu0 0.0
    %2255 = vmatprep.subr.mxu0 0.0
    %2256 = vmatpush2.msra.mxu0 0.0
    %2257 = vmatprep.subr.mxu0 0.0
    %2258 = vmatpush2.msra.mxu0 0.0
    %2259 = vmatprep.subr.mxu0 0.0
    %2260 = vmatpush2.msra.mxu0 0.0
    %2261 = vmatprep.subr.mxu0 0.0
    %2262 = vmatpush2.msra.mxu0 0.0
    %2263 = vmatprep.subr.mxu0 0.0
    %2264 = vmatpush2.msra.mxu0 0.0
    %2265 = vmatprep.subr.mxu0 0.0
    %2266 = vmatpush2.msra.mxu0 0.0
    %2267 = vmatprep.subr.mxu0 0.0
    %2268 = vmatpush2.msra.mxu0 0.0
    %2269 = vmatprep.subr.mxu0 0.0
    %2270 = vmatpush2.msra.mxu0 0.0
    %2271 = vmatprep.subr.mxu0 0.0
    %2272 = vmatpush2.msra.mxu0 0.0
    %2273 = vmatprep.subr.mxu0 0.0
    %2274 = vmatpush2.msra.mxu0 0.0
    %2275 = vmatprep.subr.mxu0 0.0
    %2276 = vmatpush2.msra.mxu0 0.0
    %2277 = vmatprep.subr.mxu0 0.0
    %2278 = vmatpush2.msra.mxu0 0.0
    %2279 = vmatprep.subr.mxu0 0.0
    %2280 = vmatpush2.msra.mxu0 0.0
    %2281 = vmatprep.mubr.f32.mxu0 0.0
    %2282 = vmatmul.mubr.f32.gmra.mxu0 %v2215
    %v2283 = vpop.f32.mrf.mxu0
    %v2284 = vadd.f32 0.0, %v2283
    %v2285 = vpop.f32.mrf.mxu0
    %2286 = vdwg.mxu0
    %2287 = vrot.lane.b32.xlu0 %v2028, 64
    %v2288 = vpop.permute.xlu0 %2287
    %v2291 = vsel %vm196, %v2210, 0
    %2293 = vmatprep.subr.mxu0 0.0
    %2294 = vmatpush1.msra.mxu0 0.0
    %2295 = vmatprep.subr.mxu0 0.0
    %2296 = vmatpush1.msra.mxu0 0.0
    %2297 = vmatprep.subr.mxu0 0.0
    %2298 = vmatpush1.msra.mxu0 0.0
    %2299 = vmatprep.subr.mxu0 0.0
    %2300 = vmatpush1.msra.mxu0 0.0
    %2301 = vmatprep.subr.mxu0 0.0
    %2302 = vmatpush1.msra.mxu0 0.0
    %2303 = vmatprep.subr.mxu0 0.0
    %2304 = vmatpush1.msra.mxu0 0.0
    %2305 = vmatprep.subr.mxu0 0.0
    %2306 = vmatpush1.msra.mxu0 0.0
    %2307 = vmatprep.subr.mxu0 0.0
    %2308 = vmatpush1.msra.mxu0 0.0
    %2309 = vmatprep.subr.mxu0 0.0
    %2310 = vmatpush1.msra.mxu0 0.0
    %2311 = vmatprep.subr.mxu0 0.0
    %2312 = vmatpush1.msra.mxu0 0.0
    %2313 = vmatprep.subr.mxu0 0.0
    %2314 = vmatpush1.msra.mxu0 0.0
    %2315 = vmatprep.subr.mxu0 0.0
    %2316 = vmatpush1.msra.mxu0 0.0
    %2317 = vmatprep.subr.mxu0 0.0
    %2318 = vmatpush1.msra.mxu0 0.0
    %2319 = vmatprep.subr.mxu0 0.0
    %2320 = vmatpush1.msra.mxu0 0.0
    %2321 = vmatprep.subr.mxu0 0.0
    %2322 = vmatpush1.msra.mxu0 0.0
    %2323 = vmatprep.subr.mxu0 0.0
    %2324 = vmatpush1.msra.mxu0 %v2288
    %2325 = vmatprep.subr.mxu0 0.0
    %2326 = vmatpush2.msra.mxu0 0.0
    %2327 = vmatprep.subr.mxu0 0.0
    %2328 = vmatpush2.msra.mxu0 0.0
    %2329 = vmatprep.subr.mxu0 0.0
    %2330 = vmatpush2.msra.mxu0 0.0
    %2331 = vmatprep.subr.mxu0 0.0
    %2332 = vmatpush2.msra.mxu0 0.0
    %2333 = vmatprep.subr.mxu0 0.0
    %2334 = vmatpush2.msra.mxu0 0.0
    %2335 = vmatprep.subr.mxu0 0.0
    %2336 = vmatpush2.msra.mxu0 0.0
    %2337 = vmatprep.subr.mxu0 0.0
    %2338 = vmatpush2.msra.mxu0 0.0
    %2339 = vmatprep.subr.mxu0 0.0
    %2340 = vmatpush2.msra.mxu0 0.0
    %2341 = vmatprep.subr.mxu0 0.0
    %2342 = vmatpush2.msra.mxu0 0.0
    %2343 = vmatprep.subr.mxu0 0.0
    %2344 = vmatpush2.msra.mxu0 0.0
    %2345 = vmatprep.subr.mxu0 0.0
    %2346 = vmatpush2.msra.mxu0 0.0
    %2347 = vmatprep.subr.mxu0 0.0
    %2348 = vmatpush2.msra.mxu0 0.0
    %2349 = vmatprep.subr.mxu0 0.0
    %2350 = vmatpush2.msra.mxu0 0.0
    %2351 = vmatprep.subr.mxu0 0.0
    %2352 = vmatpush2.msra.mxu0 0.0
    %2353 = vmatprep.subr.mxu0 0.0
    %2354 = vmatpush2.msra.mxu0 0.0
    %2355 = vmatprep.subr.mxu0 0.0
    %2356 = vmatpush2.msra.mxu0 0.0
    %2357 = vmatprep.mubr.f32.mxu0 0.0
    %2358 = vmatmul.mubr.f32.gmra.mxu0 %v2291
    %v2359 = vpop.f32.mrf.mxu0
    %v2360 = vadd.f32 0.0, %v2359
    %v2361 = vpop.f32.mrf.mxu0
    %2362 = vdwg.mxu0
    %2363 = vrot.lane.b32.xlu0 %v2031, 120
    %v2364 = vpop.permute.xlu0 %2363
    %2365 = vrot.lane.b32.xlu0 %v2023, 88
    %v2366 = vpop.permute.xlu0 %2365
    %v2367 = vsel %vm196, %v2364, 0
    %v2369 = vsel %vm196, %v2366, 0
    %2371 = vmatprep.subr.mxu0 0.0
    %2372 = vmatpush1.xpose.msra.mxu0 0.0
    %2373 = vmatprep.subr.mxu0 0.0
    %2374 = vmatpush1.xpose.msra.mxu0 0.0
    %2375 = vmatprep.subr.mxu0 0.0
    %2376 = vmatpush1.xpose.msra.mxu0 0.0
    %2377 = vmatprep.subr.mxu0 0.0
    %2378 = vmatpush1.xpose.msra.mxu0 0.0
    %2379 = vmatprep.subr.mxu0 0.0
    %2380 = vmatpush1.xpose.msra.mxu0 0.0
    %2381 = vmatprep.subr.mxu0 0.0
    %2382 = vmatpush1.xpose.msra.mxu0 0.0
    %2383 = vmatprep.subr.mxu0 0.0
    %2384 = vmatpush1.xpose.msra.mxu0 0.0
    %2385 = vmatprep.subr.mxu0 0.0
    %2386 = vmatpush1.xpose.msra.mxu0 0.0
    %2387 = vmatprep.subr.mxu0 0.0
    %2388 = vmatpush1.xpose.msra.mxu0 0.0
    %2389 = vmatprep.subr.mxu0 0.0
    %2390 = vmatpush1.xpose.msra.mxu0 0.0
    %2391 = vmatprep.subr.mxu0 0.0
    %2392 = vmatpush1.xpose.msra.mxu0 0.0
    %2393 = vmatprep.subr.mxu0 0.0
    %2394 = vmatpush1.xpose.msra.mxu0 0.0
    %2395 = vmatprep.subr.mxu0 0.0
    %2396 = vmatpush1.xpose.msra.mxu0 0.0
    %2397 = vmatprep.subr.mxu0 0.0
    %2398 = vmatpush1.xpose.msra.mxu0 0.0
    %2399 = vmatprep.subr.mxu0 0.0
    %2400 = vmatpush1.xpose.msra.mxu0 0.0
    %2401 = vmatprep.subr.mxu0 0.0
    %2402 = vmatpush1.xpose.msra.mxu0 %v2369
    %2403 = vmatprep.subr.mxu0 0.0
    %2404 = vmatpush2.xpose.msra.mxu0 0.0
    %2405 = vmatprep.subr.mxu0 0.0
    %2406 = vmatpush2.xpose.msra.mxu0 0.0
    %2407 = vmatprep.subr.mxu0 0.0
    %2408 = vmatpush2.xpose.msra.mxu0 0.0
    %2409 = vmatprep.subr.mxu0 0.0
    %2410 = vmatpush2.xpose.msra.mxu0 0.0
    %2411 = vmatprep.subr.mxu0 0.0
    %2412 = vmatpush2.xpose.msra.mxu0 0.0
    %2413 = vmatprep.subr.mxu0 0.0
    %2414 = vmatpush2.xpose.msra.mxu0 0.0
    %2415 = vmatprep.subr.mxu0 0.0
    %2416 = vmatpush2.xpose.msra.mxu0 0.0
    %2417 = vmatprep.subr.mxu0 0.0
    %2418 = vmatpush2.xpose.msra.mxu0 0.0
    %2419 = vmatprep.subr.mxu0 0.0
    %2420 = vmatpush2.xpose.msra.mxu0 0.0
    %2421 = vmatprep.subr.mxu0 0.0
    %2422 = vmatpush2.xpose.msra.mxu0 0.0
    %2423 = vmatprep.subr.mxu0 0.0
    %2424 = vmatpush2.xpose.msra.mxu0 0.0
    %2425 = vmatprep.subr.mxu0 0.0
    %2426 = vmatpush2.xpose.msra.mxu0 0.0
    %2427 = vmatprep.subr.mxu0 0.0
    %2428 = vmatpush2.xpose.msra.mxu0 0.0
    %2429 = vmatprep.subr.mxu0 0.0
    %2430 = vmatpush2.xpose.msra.mxu0 0.0
    %2431 = vmatprep.subr.mxu0 0.0
    %2432 = vmatpush2.xpose.msra.mxu0 0.0
    %2433 = vmatprep.subr.mxu0 0.0
    %2434 = vmatpush2.xpose.msra.mxu0 0.0
    %2435 = vmatprep.mubr.f32.mxu0 0.0
    %2436 = vmatmul.mubr.f32.gmra.mxu0 %v2367
    %v2437 = vpop.f32.mrf.mxu0
    %v2438 = vadd.f32 0.0, %v2437
    %v2439 = vpop.f32.mrf.mxu0
    %2440 = vdwg.mxu0
    %2441 = vrot.lane.b32.xlu0 %v2032, 120
    %v2442 = vpop.permute.xlu0 %2441
    %2443 = vrot.lane.b32.xlu0 %v2028, 88
    %v2444 = vpop.permute.xlu0 %2443
    %v2445 = vsel %vm196, %v2442, 0
    %v2447 = vsel %vm196, %v2444, 0
    %2449 = vmatprep.subr.mxu0 0.0
    %2450 = vmatpush1.xpose.msra.mxu0 0.0
    %2451 = vmatprep.subr.mxu0 0.0
    %2452 = vmatpush1.xpose.msra.mxu0 0.0
    %2453 = vmatprep.subr.mxu0 0.0
    %2454 = vmatpush1.xpose.msra.mxu0 0.0
    %2455 = vmatprep.subr.mxu0 0.0
    %2456 = vmatpush1.xpose.msra.mxu0 0.0
    %2457 = vmatprep.subr.mxu0 0.0
    %2458 = vmatpush1.xpose.msra.mxu0 0.0
    %2459 = vmatprep.subr.mxu0 0.0
    %2460 = vmatpush1.xpose.msra.mxu0 0.0
    %2461 = vmatprep.subr.mxu0 0.0
    %2462 = vmatpush1.xpose.msra.mxu0 0.0
    %2463 = vmatprep.subr.mxu0 0.0
    %2464 = vmatpush1.xpose.msra.mxu0 0.0
    %2465 = vmatprep.subr.mxu0 0.0
    %2466 = vmatpush1.xpose.msra.mxu0 0.0
    %2467 = vmatprep.subr.mxu0 0.0
    %2468 = vmatpush1.xpose.msra.mxu0 0.0
    %2469 = vmatprep.subr.mxu0 0.0
    %2470 = vmatpush1.xpose.msra.mxu0 0.0
    %2471 = vmatprep.subr.mxu0 0.0
    %2472 = vmatpush1.xpose.msra.mxu0 0.0
    %2473 = vmatprep.subr.mxu0 0.0
    %2474 = vmatpush1.xpose.msra.mxu0 0.0
    %2475 = vmatprep.subr.mxu0 0.0
    %2476 = vmatpush1.xpose.msra.mxu0 0.0
    %2477 = vmatprep.subr.mxu0 0.0
    %2478 = vmatpush1.xpose.msra.mxu0 0.0
    %2479 = vmatprep.subr.mxu0 0.0
    %2480 = vmatpush1.xpose.msra.mxu0 %v2447
    %2481 = vmatprep.subr.mxu0 0.0
    %2482 = vmatpush2.xpose.msra.mxu0 0.0
    %2483 = vmatprep.subr.mxu0 0.0
    %2484 = vmatpush2.xpose.msra.mxu0 0.0
    %2485 = vmatprep.subr.mxu0 0.0
    %2486 = vmatpush2.xpose.msra.mxu0 0.0
    %2487 = vmatprep.subr.mxu0 0.0
    %2488 = vmatpush2.xpose.msra.mxu0 0.0
    %2489 = vmatprep.subr.mxu0 0.0
    %2490 = vmatpush2.xpose.msra.mxu0 0.0
    %2491 = vmatprep.subr.mxu0 0.0
    %2492 = vmatpush2.xpose.msra.mxu0 0.0
    %2493 = vmatprep.subr.mxu0 0.0
    %2494 = vmatpush2.xpose.msra.mxu0 0.0
    %2495 = vmatprep.subr.mxu0 0.0
    %2496 = vmatpush2.xpose.msra.mxu0 0.0
    %2497 = vmatprep.subr.mxu0 0.0
    %2498 = vmatpush2.xpose.msra.mxu0 0.0
    %2499 = vmatprep.subr.mxu0 0.0
    %2500 = vmatpush2.xpose.msra.mxu0 0.0
    %2501 = vmatprep.subr.mxu0 0.0
    %2502 = vmatpush2.xpose.msra.mxu0 0.0
    %2503 = vmatprep.subr.mxu0 0.0
    %2504 = vmatpush2.xpose.msra.mxu0 0.0
    %2505 = vmatprep.subr.mxu0 0.0
    %2506 = vmatpush2.xpose.msra.mxu0 0.0
    %2507 = vmatprep.subr.mxu0 0.0
    %2508 = vmatpush2.xpose.msra.mxu0 0.0
    %2509 = vmatprep.subr.mxu0 0.0
    %2510 = vmatpush2.xpose.msra.mxu0 0.0
    %2511 = vmatprep.subr.mxu0 0.0
    %2512 = vmatpush2.xpose.msra.mxu0 0.0
    %2513 = vmatprep.mubr.f32.mxu0 0.0
    %2514 = vmatmul.mubr.f32.gmra.mxu0 %v2445
    %v2515 = vpop.f32.mrf.mxu0
    %v2516 = vadd.f32 0.0, %v2515
    %v2517 = vpop.f32.mrf.mxu0
    %2518 = vdwg.mxu0
    %v2519 = vsel %vm196, %v2438, -inf
    %2520 = vmax.xlane.f32.xlu0 %v2519
    %v2521 = vpop.xlane.xlu0 %2520
    %v2522 = vsel %vm196, %v2516, -inf
    %2523 = vmax.xlane.f32.xlu0 %v2522
    %v2524 = vpop.xlane.xlu0 %2523
    %v2525 = vsub.f32 %v2438, %v2521
    %v2526 = vsub.f32 %v2516, %v2524
    %v2527 = vmul.f32 %v2525, 1.442695
    %v2528 = vpow.pop %v2527
    %v2529 = vmul.f32 %v2526, 1.442695
    %v2530 = vpow.pop %v2529
    %v2531 = vsel %vm196, %v2528, 0.0
    %2532 = vadd.xlane.f32.xlu0 %v2531
    %v2533 = vpop.xlane.xlu0 %2532
    %v2534 = vsel %vm196, %v2530, 0.0
    %2535 = vadd.xlane.f32.xlu0 %v2534
    %v2536 = vpop.xlane.xlu0 %2535
    %v2537 = vrcp.pop %v2533
    %v2538 = vrcp.pop %v2536
    %v2539 = vmul.f32 %v2528, %v2537
    %v2540 = vmul.f32 %v2530, %v2538
    %2541 = vrot.lane.b32.xlu0 %v2023, 56
    %v2542 = vpop.permute.xlu0 %2541
    %v2545 = vsel %vm196, %v2539, 0
    %2547 = vmatprep.subr.mxu0 0.0
    %2548 = vmatpush1.msra.mxu0 0.0
    %2549 = vmatprep.subr.mxu0 0.0
    %2550 = vmatpush1.msra.mxu0 0.0
    %2551 = vmatprep.subr.mxu0 0.0
    %2552 = vmatpush1.msra.mxu0 0.0
    %2553 = vmatprep.subr.mxu0 0.0
    %2554 = vmatpush1.msra.mxu0 0.0
    %2555 = vmatprep.subr.mxu0 0.0
    %2556 = vmatpush1.msra.mxu0 0.0
    %2557 = vmatprep.subr.mxu0 0.0
    %2558 = vmatpush1.msra.mxu0 0.0
    %2559 = vmatprep.subr.mxu0 0.0
    %2560 = vmatpush1.msra.mxu0 0.0
    %2561 = vmatprep.subr.mxu0 0.0
    %2562 = vmatpush1.msra.mxu0 0.0
    %2563 = vmatprep.subr.mxu0 0.0
    %2564 = vmatpush1.msra.mxu0 0.0
    %2565 = vmatprep.subr.mxu0 0.0
    %2566 = vmatpush1.msra.mxu0 0.0
    %2567 = vmatprep.subr.mxu0 0.0
    %2568 = vmatpush1.msra.mxu0 0.0
    %2569 = vmatprep.subr.mxu0 0.0
    %2570 = vmatpush1.msra.mxu0 0.0
    %2571 = vmatprep.subr.mxu0 0.0
    %2572 = vmatpush1.msra.mxu0 0.0
    %2573 = vmatprep.subr.mxu0 0.0
    %2574 = vmatpush1.msra.mxu0 0.0
    %2575 = vmatprep.subr.mxu0 0.0
    %2576 = vmatpush1.msra.mxu0 0.0
    %2577 = vmatprep.subr.mxu0 0.0
    %2578 = vmatpush1.msra.mxu0 %v2542
    %2579 = vmatprep.subr.mxu0 0.0
    %2580 = vmatpush2.msra.mxu0 0.0
    %2581 = vmatprep.subr.mxu0 0.0
    %2582 = vmatpush2.msra.mxu0 0.0
    %2583 = vmatprep.subr.mxu0 0.0
    %2584 = vmatpush2.msra.mxu0 0.0
    %2585 = vmatprep.subr.mxu0 0.0
    %2586 = vmatpush2.msra.mxu0 0.0
    %2587 = vmatprep.subr.mxu0 0.0
    %2588 = vmatpush2.msra.mxu0 0.0
    %2589 = vmatprep.subr.mxu0 0.0
    %2590 = vmatpush2.msra.mxu0 0.0
    %2591 = vmatprep.subr.mxu0 0.0
    %2592 = vmatpush2.msra.mxu0 0.0
    %2593 = vmatprep.subr.mxu0 0.0
    %2594 = vmatpush2.msra.mxu0 0.0
    %2595 = vmatprep.subr.mxu0 0.0
    %2596 = vmatpush2.msra.mxu0 0.0
    %2597 = vmatprep.subr.mxu0 0.0
    %2598 = vmatpush2.msra.mxu0 0.0
    %2599 = vmatprep.subr.mxu0 0.0
    %2600 = vmatpush2.msra.mxu0 0.0
    %2601 = vmatprep.subr.mxu0 0.0
    %2602 = vmatpush2.msra.mxu0 0.0
    %2603 = vmatprep.subr.mxu0 0.0
    %2604 = vmatpush2.msra.mxu0 0.0
    %2605 = vmatprep.subr.mxu0 0.0
    %2606 = vmatpush2.msra.mxu0 0.0
    %2607 = vmatprep.subr.mxu0 0.0
    %2608 = vmatpush2.msra.mxu0 0.0
    %2609 = vmatprep.subr.mxu0 0.0
    %2610 = vmatpush2.msra.mxu0 0.0
    %2611 = vmatprep.mubr.f32.mxu0 0.0
    %2612 = vmatmul.mubr.f32.gmra.mxu0 %v2545
    %v2613 = vpop.f32.mrf.mxu0
    %v2614 = vadd.f32 0.0, %v2613
    %v2615 = vpop.f32.mrf.mxu0
    %2616 = vdwg.mxu0
    %2617 = vrot.lane.b32.xlu0 %v2028, 56
    %v2618 = vpop.permute.xlu0 %2617
    %v2621 = vsel %vm196, %v2540, 0
    %2623 = vmatprep.subr.mxu0 0.0
    %2624 = vmatpush1.msra.mxu0 0.0
    %2625 = vmatprep.subr.mxu0 0.0
    %2626 = vmatpush1.msra.mxu0 0.0
    %2627 = vmatprep.subr.mxu0 0.0
    %2628 = vmatpush1.msra.mxu0 0.0
    %2629 = vmatprep.subr.mxu0 0.0
    %2630 = vmatpush1.msra.mxu0 0.0
    %2631 = vmatprep.subr.mxu0 0.0
    %2632 = vmatpush1.msra.mxu0 0.0
    %2633 = vmatprep.subr.mxu0 0.0
    %2634 = vmatpush1.msra.mxu0 0.0
    %2635 = vmatprep.subr.mxu0 0.0
    %2636 = vmatpush1.msra.mxu0 0.0
    %2637 = vmatprep.subr.mxu0 0.0
    %2638 = vmatpush1.msra.mxu0 0.0
    %2639 = vmatprep.subr.mxu0 0.0
    %2640 = vmatpush1.msra.mxu0 0.0
    %2641 = vmatprep.subr.mxu0 0.0
    %2642 = vmatpush1.msra.mxu0 0.0
    %2643 = vmatprep.subr.mxu0 0.0
    %2644 = vmatpush1.msra.mxu0 0.0
    %2645 = vmatprep.subr.mxu0 0.0
    %2646 = vmatpush1.msra.mxu0 0.0
    %2647 = vmatprep.subr.mxu0 0.0
    %2648 = vmatpush1.msra.mxu0 0.0
    %2649 = vmatprep.subr.mxu0 0.0
    %2650 = vmatpush1.msra.mxu0 0.0
    %2651 = vmatprep.subr.mxu0 0.0
    %2652 = vmatpush1.msra.mxu0 0.0
    %2653 = vmatprep.subr.mxu0 0.0
    %2654 = vmatpush1.msra.mxu0 %v2618
    %2655 = vmatprep.subr.mxu0 0.0
    %2656 = vmatpush2.msra.mxu0 0.0
    %2657 = vmatprep.subr.mxu0 0.0
    %2658 = vmatpush2.msra.mxu0 0.0
    %2659 = vmatprep.subr.mxu0 0.0
    %2660 = vmatpush2.msra.mxu0 0.0
    %2661 = vmatprep.subr.mxu0 0.0
    %2662 = vmatpush2.msra.mxu0 0.0
    %2663 = vmatprep.subr.mxu0 0.0
    %2664 = vmatpush2.msra.mxu0 0.0
    %2665 = vmatprep.subr.mxu0 0.0
    %2666 = vmatpush2.msra.mxu0 0.0
    %2667 = vmatprep.subr.mxu0 0.0
    %2668 = vmatpush2.msra.mxu0 0.0
    %2669 = vmatprep.subr.mxu0 0.0
    %2670 = vmatpush2.msra.mxu0 0.0
    %2671 = vmatprep.subr.mxu0 0.0
    %2672 = vmatpush2.msra.mxu0 0.0
    %2673 = vmatprep.subr.mxu0 0.0
    %2674 = vmatpush2.msra.mxu0 0.0
    %2675 = vmatprep.subr.mxu0 0.0
    %2676 = vmatpush2.msra.mxu0 0.0
    %2677 = vmatprep.subr.mxu0 0.0
    %2678 = vmatpush2.msra.mxu0 0.0
    %2679 = vmatprep.subr.mxu0 0.0
    %2680 = vmatpush2.msra.mxu0 0.0
    %2681 = vmatprep.subr.mxu0 0.0
    %2682 = vmatpush2.msra.mxu0 0.0
    %2683 = vmatprep.subr.mxu0 0.0
    %2684 = vmatpush2.msra.mxu0 0.0
    %2685 = vmatprep.subr.mxu0 0.0
    %2686 = vmatpush2.msra.mxu0 0.0
    %2687 = vmatprep.mubr.f32.mxu0 0.0
    %2688 = vmatmul.mubr.f32.gmra.mxu0 %v2621
    %v2689 = vpop.f32.mrf.mxu0
    %v2690 = vadd.f32 0.0, %v2689
    %v2691 = vpop.f32.mrf.mxu0
    %2692 = vdwg.mxu0
    %2693 = vrot.lane.b32.xlu0 %v2031, 112
    %v2694 = vpop.permute.xlu0 %2693
    %2695 = vrot.lane.b32.xlu0 %v2023, 80
    %v2696 = vpop.permute.xlu0 %2695
    %v2697 = vsel %vm196, %v2694, 0
    %v2699 = vsel %vm196, %v2696, 0
    %2701 = vmatprep.subr.mxu0 0.0
    %2702 = vmatpush1.xpose.msra.mxu0 0.0
    %2703 = vmatprep.subr.mxu0 0.0
    %2704 = vmatpush1.xpose.msra.mxu0 0.0
    %2705 = vmatprep.subr.mxu0 0.0
    %2706 = vmatpush1.xpose.msra.mxu0 0.0
    %2707 = vmatprep.subr.mxu0 0.0
    %2708 = vmatpush1.xpose.msra.mxu0 0.0
    %2709 = vmatprep.subr.mxu0 0.0
    %2710 = vmatpush1.xpose.msra.mxu0 0.0
    %2711 = vmatprep.subr.mxu0 0.0
    %2712 = vmatpush1.xpose.msra.mxu0 0.0
    %2713 = vmatprep.subr.mxu0 0.0
    %2714 = vmatpush1.xpose.msra.mxu0 0.0
    %2715 = vmatprep.subr.mxu0 0.0
    %2716 = vmatpush1.xpose.msra.mxu0 0.0
    %2717 = vmatprep.subr.mxu0 0.0
    %2718 = vmatpush1.xpose.msra.mxu0 0.0
    %2719 = vmatprep.subr.mxu0 0.0
    %2720 = vmatpush1.xpose.msra.mxu0 0.0
    %2721 = vmatprep.subr.mxu0 0.0
    %2722 = vmatpush1.xpose.msra.mxu0 0.0
    %2723 = vmatprep.subr.mxu0 0.0
    %2724 = vmatpush1.xpose.msra.mxu0 0.0
    %2725 = vmatprep.subr.mxu0 0.0
    %2726 = vmatpush1.xpose.msra.mxu0 0.0
    %2727 = vmatprep.subr.mxu0 0.0
    %2728 = vmatpush1.xpose.msra.mxu0 0.0
    %2729 = vmatprep.subr.mxu0 0.0
    %2730 = vmatpush1.xpose.msra.mxu0 0.0
    %2731 = vmatprep.subr.mxu0 0.0
    %2732 = vmatpush1.xpose.msra.mxu0 %v2699
    %2733 = vmatprep.subr.mxu0 0.0
    %2734 = vmatpush2.xpose.msra.mxu0 0.0
    %2735 = vmatprep.subr.mxu0 0.0
    %2736 = vmatpush2.xpose.msra.mxu0 0.0
    %2737 = vmatprep.subr.mxu0 0.0
    %2738 = vmatpush2.xpose.msra.mxu0 0.0
    %2739 = vmatprep.subr.mxu0 0.0
    %2740 = vmatpush2.xpose.msra.mxu0 0.0
    %2741 = vmatprep.subr.mxu0 0.0
    %2742 = vmatpush2.xpose.msra.mxu0 0.0
    %2743 = vmatprep.subr.mxu0 0.0
    %2744 = vmatpush2.xpose.msra.mxu0 0.0
    %2745 = vmatprep.subr.mxu0 0.0
    %2746 = vmatpush2.xpose.msra.mxu0 0.0
    %2747 = vmatprep.subr.mxu0 0.0
    %2748 = vmatpush2.xpose.msra.mxu0 0.0
    %2749 = vmatprep.subr.mxu0 0.0
    %2750 = vmatpush2.xpose.msra.mxu0 0.0
    %2751 = vmatprep.subr.mxu0 0.0
    %2752 = vmatpush2.xpose.msra.mxu0 0.0
    %2753 = vmatprep.subr.mxu0 0.0
    %2754 = vmatpush2.xpose.msra.mxu0 0.0
    %2755 = vmatprep.subr.mxu0 0.0
    %2756 = vmatpush2.xpose.msra.mxu0 0.0
    %2757 = vmatprep.subr.mxu0 0.0
    %2758 = vmatpush2.xpose.msra.mxu0 0.0
    %2759 = vmatprep.subr.mxu0 0.0
    %2760 = vmatpush2.xpose.msra.mxu0 0.0
    %2761 = vmatprep.subr.mxu0 0.0
    %2762 = vmatpush2.xpose.msra.mxu0 0.0
    %2763 = vmatprep.subr.mxu0 0.0
    %2764 = vmatpush2.xpose.msra.mxu0 0.0
    %2765 = vmatprep.mubr.f32.mxu0 0.0
    %2766 = vmatmul.mubr.f32.gmra.mxu0 %v2697
    %v2767 = vpop.f32.mrf.mxu0
    %v2768 = vadd.f32 0.0, %v2767
    %v2769 = vpop.f32.mrf.mxu0
    %2770 = vdwg.mxu0
    %2771 = vrot.lane.b32.xlu0 %v2032, 112
    %v2772 = vpop.permute.xlu0 %2771
    %2773 = vrot.lane.b32.xlu0 %v2028, 80
    %v2774 = vpop.permute.xlu0 %2773
    %v2775 = vsel %vm196, %v2772, 0
    %v2777 = vsel %vm196, %v2774, 0
    %2779 = vmatprep.subr.mxu0 0.0
    %2780 = vmatpush1.xpose.msra.mxu0 0.0
    %2781 = vmatprep.subr.mxu0 0.0
    %2782 = vmatpush1.xpose.msra.mxu0 0.0
    %2783 = vmatprep.subr.mxu0 0.0
    %2784 = vmatpush1.xpose.msra.mxu0 0.0
    %2785 = vmatprep.subr.mxu0 0.0
    %2786 = vmatpush1.xpose.msra.mxu0 0.0
    %2787 = vmatprep.subr.mxu0 0.0
    %2788 = vmatpush1.xpose.msra.mxu0 0.0
    %2789 = vmatprep.subr.mxu0 0.0
    %2790 = vmatpush1.xpose.msra.mxu0 0.0
    %2791 = vmatprep.subr.mxu0 0.0
    %2792 = vmatpush1.xpose.msra.mxu0 0.0
    %2793 = vmatprep.subr.mxu0 0.0
    %2794 = vmatpush1.xpose.msra.mxu0 0.0
    %2795 = vmatprep.subr.mxu0 0.0
    %2796 = vmatpush1.xpose.msra.mxu0 0.0
    %2797 = vmatprep.subr.mxu0 0.0
    %2798 = vmatpush1.xpose.msra.mxu0 0.0
    %2799 = vmatprep.subr.mxu0 0.0
    %2800 = vmatpush1.xpose.msra.mxu0 0.0
    %2801 = vmatprep.subr.mxu0 0.0
    %2802 = vmatpush1.xpose.msra.mxu0 0.0
    %2803 = vmatprep.subr.mxu0 0.0
    %2804 = vmatpush1.xpose.msra.mxu0 0.0
    %2805 = vmatprep.subr.mxu0 0.0
    %2806 = vmatpush1.xpose.msra.mxu0 0.0
    %2807 = vmatprep.subr.mxu0 0.0
    %2808 = vmatpush1.xpose.msra.mxu0 0.0
    %2809 = vmatprep.subr.mxu0 0.0
    %2810 = vmatpush1.xpose.msra.mxu0 %v2777
    %2811 = vmatprep.subr.mxu0 0.0
    %2812 = vmatpush2.xpose.msra.mxu0 0.0
    %2813 = vmatprep.subr.mxu0 0.0
    %2814 = vmatpush2.xpose.msra.mxu0 0.0
    %2815 = vmatprep.subr.mxu0 0.0
    %2816 = vmatpush2.xpose.msra.mxu0 0.0
    %2817 = vmatprep.subr.mxu0 0.0
    %2818 = vmatpush2.xpose.msra.mxu0 0.0
    %2819 = vmatprep.subr.mxu0 0.0
    %2820 = vmatpush2.xpose.msra.mxu0 0.0
    %2821 = vmatprep.subr.mxu0 0.0
    %2822 = vmatpush2.xpose.msra.mxu0 0.0
    %2823 = vmatprep.subr.mxu0 0.0
    %2824 = vmatpush2.xpose.msra.mxu0 0.0
    %2825 = vmatprep.subr.mxu0 0.0
    %2826 = vmatpush2.xpose.msra.mxu0 0.0
    %2827 = vmatprep.subr.mxu0 0.0
    %2828 = vmatpush2.xpose.msra.mxu0 0.0
    %2829 = vmatprep.subr.mxu0 0.0
    %2830 = vmatpush2.xpose.msra.mxu0 0.0
    %2831 = vmatprep.subr.mxu0 0.0
    %2832 = vmatpush2.xpose.msra.mxu0 0.0
    %2833 = vmatprep.subr.mxu0 0.0
    %2834 = vmatpush2.xpose.msra.mxu0 0.0
    %2835 = vmatprep.subr.mxu0 0.0
    %2836 = vmatpush2.xpose.msra.mxu0 0.0
    %2837 = vmatprep.subr.mxu0 0.0
    %2838 = vmatpush2.xpose.msra.mxu0 0.0
    %2839 = vmatprep.subr.mxu0 0.0
    %2840 = vmatpush2.xpose.msra.mxu0 0.0
    %2841 = vmatprep.subr.mxu0 0.0
    %2842 = vmatpush2.xpose.msra.mxu0 0.0
    %2843 = vmatprep.mubr.f32.mxu0 0.0
    %2844 = vmatmul.mubr.f32.gmra.mxu0 %v2775
    %v2845 = vpop.f32.mrf.mxu0
    %v2846 = vadd.f32 0.0, %v2845
    %v2847 = vpop.f32.mrf.mxu0
    %2848 = vdwg.mxu0
    %v2849 = vsel %vm196, %v2768, -inf
    %2850 = vmax.xlane.f32.xlu0 %v2849
    %v2851 = vpop.xlane.xlu0 %2850
    %v2852 = vsel %vm196, %v2846, -inf
    %2853 = vmax.xlane.f32.xlu0 %v2852
    %v2854 = vpop.xlane.xlu0 %2853
    %v2855 = vsub.f32 %v2768, %v2851
    %v2856 = vsub.f32 %v2846, %v2854
    %v2857 = vmul.f32 %v2855, 1.442695
    %v2858 = vpow.pop %v2857
    %v2859 = vmul.f32 %v2856, 1.442695
    %v2860 = vpow.pop %v2859
    %v2861 = vsel %vm196, %v2858, 0.0
    %2862 = vadd.xlane.f32.xlu0 %v2861
    %v2863 = vpop.xlane.xlu0 %2862
    %v2864 = vsel %vm196, %v2860, 0.0
    %2865 = vadd.xlane.f32.xlu0 %v2864
    %v2866 = vpop.xlane.xlu0 %2865
    %v2867 = vrcp.pop %v2863
    %v2868 = vrcp.pop %v2866
    %v2869 = vmul.f32 %v2858, %v2867
    %v2870 = vmul.f32 %v2860, %v2868
    %2871 = vrot.lane.b32.xlu0 %v2023, 48
    %v2872 = vpop.permute.xlu0 %2871
    %v2875 = vsel %vm196, %v2869, 0
    %2877 = vmatprep.subr.mxu0 0.0
    %2878 = vmatpush1.msra.mxu0 0.0
    %2879 = vmatprep.subr.mxu0 0.0
    %2880 = vmatpush1.msra.mxu0 0.0
    %2881 = vmatprep.subr.mxu0 0.0
    %2882 = vmatpush1.msra.mxu0 0.0
    %2883 = vmatprep.subr.mxu0 0.0
    %2884 = vmatpush1.msra.mxu0 0.0
    %2885 = vmatprep.subr.mxu0 0.0
    %2886 = vmatpush1.msra.mxu0 0.0
    %2887 = vmatprep.subr.mxu0 0.0
    %2888 = vmatpush1.msra.mxu0 0.0
    %2889 = vmatprep.subr.mxu0 0.0
    %2890 = vmatpush1.msra.mxu0 0.0
    %2891 = vmatprep.subr.mxu0 0.0
    %2892 = vmatpush1.msra.mxu0 0.0
    %2893 = vmatprep.subr.mxu0 0.0
    %2894 = vmatpush1.msra.mxu0 0.0
    %2895 = vmatprep.subr.mxu0 0.0
    %2896 = vmatpush1.msra.mxu0 0.0
    %2897 = vmatprep.subr.mxu0 0.0
    %2898 = vmatpush1.msra.mxu0 0.0
    %2899 = vmatprep.subr.mxu0 0.0
    %2900 = vmatpush1.msra.mxu0 0.0
    %2901 = vmatprep.subr.mxu0 0.0
    %2902 = vmatpush1.msra.mxu0 0.0
    %2903 = vmatprep.subr.mxu0 0.0
    %2904 = vmatpush1.msra.mxu0 0.0
    %2905 = vmatprep.subr.mxu0 0.0
    %2906 = vmatpush1.msra.mxu0 0.0
    %2907 = vmatprep.subr.mxu0 0.0
    %2908 = vmatpush1.msra.mxu0 %v2872
    %2909 = vmatprep.subr.mxu0 0.0
    %2910 = vmatpush2.msra.mxu0 0.0
    %2911 = vmatprep.subr.mxu0 0.0
    %2912 = vmatpush2.msra.mxu0 0.0
    %2913 = vmatprep.subr.mxu0 0.0
    %2914 = vmatpush2.msra.mxu0 0.0
    %2915 = vmatprep.subr.mxu0 0.0
    %2916 = vmatpush2.msra.mxu0 0.0
    %2917 = vmatprep.subr.mxu0 0.0
    %2918 = vmatpush2.msra.mxu0 0.0
    %2919 = vmatprep.subr.mxu0 0.0
    %2920 = vmatpush2.msra.mxu0 0.0
    %2921 = vmatprep.subr.mxu0 0.0
    %2922 = vmatpush2.msra.mxu0 0.0
    %2923 = vmatprep.subr.mxu0 0.0
    %2924 = vmatpush2.msra.mxu0 0.0
    %2925 = vmatprep.subr.mxu0 0.0
    %2926 = vmatpush2.msra.mxu0 0.0
    %2927 = vmatprep.subr.mxu0 0.0
    %2928 = vmatpush2.msra.mxu0 0.0
    %2929 = vmatprep.subr.mxu0 0.0
    %2930 = vmatpush2.msra.mxu0 0.0
    %2931 = vmatprep.subr.mxu0 0.0
    %2932 = vmatpush2.msra.mxu0 0.0
    %2933 = vmatprep.subr.mxu0 0.0
    %2934 = vmatpush2.msra.mxu0 0.0
    %2935 = vmatprep.subr.mxu0 0.0
    %2936 = vmatpush2.msra.mxu0 0.0
    %2937 = vmatprep.subr.mxu0 0.0
    %2938 = vmatpush2.msra.mxu0 0.0
    %2939 = vmatprep.subr.mxu0 0.0
    %2940 = vmatpush2.msra.mxu0 0.0
    %2941 = vmatprep.mubr.f32.mxu0 0.0
    %2942 = vmatmul.mubr.f32.gmra.mxu0 %v2875
    %v2943 = vpop.f32.mrf.mxu0
    %v2944 = vadd.f32 0.0, %v2943
    %v2945 = vpop.f32.mrf.mxu0
    %2946 = vdwg.mxu0
    %2947 = vrot.lane.b32.xlu0 %v2028, 48
    %v2948 = vpop.permute.xlu0 %2947
    %v2951 = vsel %vm196, %v2870, 0
    %2953 = vmatprep.subr.mxu0 0.0
    %2954 = vmatpush1.msra.mxu0 0.0
    %2955 = vmatprep.subr.mxu0 0.0
    %2956 = vmatpush1.msra.mxu0 0.0
    %2957 = vmatprep.subr.mxu0 0.0
    %2958 = vmatpush1.msra.mxu0 0.0
    %2959 = vmatprep.subr.mxu0 0.0
    %2960 = vmatpush1.msra.mxu0 0.0
    %2961 = vmatprep.subr.mxu0 0.0
    %2962 = vmatpush1.msra.mxu0 0.0
    %2963 = vmatprep.subr.mxu0 0.0
    %2964 = vmatpush1.msra.mxu0 0.0
    %2965 = vmatprep.subr.mxu0 0.0
    %2966 = vmatpush1.msra.mxu0 0.0
    %2967 = vmatprep.subr.mxu0 0.0
    %2968 = vmatpush1.msra.mxu0 0.0
    %2969 = vmatprep.subr.mxu0 0.0
    %2970 = vmatpush1.msra.mxu0 0.0
    %2971 = vmatprep.subr.mxu0 0.0
    %2972 = vmatpush1.msra.mxu0 0.0
    %2973 = vmatprep.subr.mxu0 0.0
    %2974 = vmatpush1.msra.mxu0 0.0
    %2975 = vmatprep.subr.mxu0 0.0
    %2976 = vmatpush1.msra.mxu0 0.0
    %2977 = vmatprep.subr.mxu0 0.0
    %2978 = vmatpush1.msra.mxu0 0.0
    %2979 = vmatprep.subr.mxu0 0.0
    %2980 = vmatpush1.msra.mxu0 0.0
    %2981 = vmatprep.subr.mxu0 0.0
    %2982 = vmatpush1.msra.mxu0 0.0
    %2983 = vmatprep.subr.mxu0 0.0
    %2984 = vmatpush1.msra.mxu0 %v2948
    %2985 = vmatprep.subr.mxu0 0.0
    %2986 = vmatpush2.msra.mxu0 0.0
    %2987 = vmatprep.subr.mxu0 0.0
    %2988 = vmatpush2.msra.mxu0 0.0
    %2989 = vmatprep.subr.mxu0 0.0
    %2990 = vmatpush2.msra.mxu0 0.0
    %2991 = vmatprep.subr.mxu0 0.0
    %2992 = vmatpush2.msra.mxu0 0.0
    %2993 = vmatprep.subr.mxu0 0.0
    %2994 = vmatpush2.msra.mxu0 0.0
    %2995 = vmatprep.subr.mxu0 0.0
    %2996 = vmatpush2.msra.mxu0 0.0
    %2997 = vmatprep.subr.mxu0 0.0
    %2998 = vmatpush2.msra.mxu0 0.0
    %2999 = vmatprep.subr.mxu0 0.0
    %3000 = vmatpush2.msra.mxu0 0.0
    %3001 = vmatprep.subr.mxu0 0.0
    %3002 = vmatpush2.msra.mxu0 0.0
    %3003 = vmatprep.subr.mxu0 0.0
    %3004 = vmatpush2.msra.mxu0 0.0
    %3005 = vmatprep.subr.mxu0 0.0
    %3006 = vmatpush2.msra.mxu0 0.0
    %3007 = vmatprep.subr.mxu0 0.0
    %3008 = vmatpush2.msra.mxu0 0.0
    %3009 = vmatprep.subr.mxu0 0.0
    %3010 = vmatpush2.msra.mxu0 0.0
    %3011 = vmatprep.subr.mxu0 0.0
    %3012 = vmatpush2.msra.mxu0 0.0
    %3013 = vmatprep.subr.mxu0 0.0
    %3014 = vmatpush2.msra.mxu0 0.0
    %3015 = vmatprep.subr.mxu0 0.0
    %3016 = vmatpush2.msra.mxu0 0.0
    %3017 = vmatprep.mubr.f32.mxu0 0.0
    %3018 = vmatmul.mubr.f32.gmra.mxu0 %v2951
    %v3019 = vpop.f32.mrf.mxu0
    %v3020 = vadd.f32 0.0, %v3019
    %v3021 = vpop.f32.mrf.mxu0
    %3022 = vdwg.mxu0
    %3023 = vrot.lane.b32.xlu0 %v2031, 104
    %v3024 = vpop.permute.xlu0 %3023
    %3025 = vrot.lane.b32.xlu0 %v2023, 72
    %v3026 = vpop.permute.xlu0 %3025
    %v3027 = vsel %vm196, %v3024, 0
    %v3029 = vsel %vm196, %v3026, 0
    %3031 = vmatprep.subr.mxu0 0.0
    %3032 = vmatpush1.xpose.msra.mxu0 0.0
    %3033 = vmatprep.subr.mxu0 0.0
    %3034 = vmatpush1.xpose.msra.mxu0 0.0
    %3035 = vmatprep.subr.mxu0 0.0
    %3036 = vmatpush1.xpose.msra.mxu0 0.0
    %3037 = vmatprep.subr.mxu0 0.0
    %3038 = vmatpush1.xpose.msra.mxu0 0.0
    %3039 = vmatprep.subr.mxu0 0.0
    %3040 = vmatpush1.xpose.msra.mxu0 0.0
    %3041 = vmatprep.subr.mxu0 0.0
    %3042 = vmatpush1.xpose.msra.mxu0 0.0
    %3043 = vmatprep.subr.mxu0 0.0
    %3044 = vmatpush1.xpose.msra.mxu0 0.0
    %3045 = vmatprep.subr.mxu0 0.0
    %3046 = vmatpush1.xpose.msra.mxu0 0.0
    %3047 = vmatprep.subr.mxu0 0.0
    %3048 = vmatpush1.xpose.msra.mxu0 0.0
    %3049 = vmatprep.subr.mxu0 0.0
    %3050 = vmatpush1.xpose.msra.mxu0 0.0
    %3051 = vmatprep.subr.mxu0 0.0
    %3052 = vmatpush1.xpose.msra.mxu0 0.0
    %3053 = vmatprep.subr.mxu0 0.0
    %3054 = vmatpush1.xpose.msra.mxu0 0.0
    %3055 = vmatprep.subr.mxu0 0.0
    %3056 = vmatpush1.xpose.msra.mxu0 0.0
    %3057 = vmatprep.subr.mxu0 0.0
    %3058 = vmatpush1.xpose.msra.mxu0 0.0
    %3059 = vmatprep.subr.mxu0 0.0
    %3060 = vmatpush1.xpose.msra.mxu0 0.0
    %3061 = vmatprep.subr.mxu0 0.0
    %3062 = vmatpush1.xpose.msra.mxu0 %v3029
    %3063 = vmatprep.subr.mxu0 0.0
    %3064 = vmatpush2.xpose.msra.mxu0 0.0
    %3065 = vmatprep.subr.mxu0 0.0
    %3066 = vmatpush2.xpose.msra.mxu0 0.0
    %3067 = vmatprep.subr.mxu0 0.0
    %3068 = vmatpush2.xpose.msra.mxu0 0.0
    %3069 = vmatprep.subr.mxu0 0.0
    %3070 = vmatpush2.xpose.msra.mxu0 0.0
    %3071 = vmatprep.subr.mxu0 0.0
    %3072 = vmatpush2.xpose.msra.mxu0 0.0
    %3073 = vmatprep.subr.mxu0 0.0
    %3074 = vmatpush2.xpose.msra.mxu0 0.0
    %3075 = vmatprep.subr.mxu0 0.0
    %3076 = vmatpush2.xpose.msra.mxu0 0.0
    %3077 = vmatprep.subr.mxu0 0.0
    %3078 = vmatpush2.xpose.msra.mxu0 0.0
    %3079 = vmatprep.subr.mxu0 0.0
    %3080 = vmatpush2.xpose.msra.mxu0 0.0
    %3081 = vmatprep.subr.mxu0 0.0
    %3082 = vmatpush2.xpose.msra.mxu0 0.0
    %3083 = vmatprep.subr.mxu0 0.0
    %3084 = vmatpush2.xpose.msra.mxu0 0.0
    %3085 = vmatprep.subr.mxu0 0.0
    %3086 = vmatpush2.xpose.msra.mxu0 0.0
    %3087 = vmatprep.subr.mxu0 0.0
    %3088 = vmatpush2.xpose.msra.mxu0 0.0
    %3089 = vmatprep.subr.mxu0 0.0
    %3090 = vmatpush2.xpose.msra.mxu0 0.0
    %3091 = vmatprep.subr.mxu0 0.0
    %3092 = vmatpush2.xpose.msra.mxu0 0.0
    %3093 = vmatprep.subr.mxu0 0.0
    %3094 = vmatpush2.xpose.msra.mxu0 0.0
    %3095 = vmatprep.mubr.f32.mxu0 0.0
    %3096 = vmatmul.mubr.f32.gmra.mxu0 %v3027
    %v3097 = vpop.f32.mrf.mxu0
    %v3098 = vadd.f32 0.0, %v3097
    %v3099 = vpop.f32.mrf.mxu0
    %3100 = vdwg.mxu0
    %3101 = vrot.lane.b32.xlu0 %v2032, 104
    %v3102 = vpop.permute.xlu0 %3101
    %3103 = vrot.lane.b32.xlu0 %v2028, 72
    %v3104 = vpop.permute.xlu0 %3103
    %v3105 = vsel %vm196, %v3102, 0
    %v3107 = vsel %vm196, %v3104, 0
    %3109 = vmatprep.subr.mxu0 0.0
    %3110 = vmatpush1.xpose.msra.mxu0 0.0
    %3111 = vmatprep.subr.mxu0 0.0
    %3112 = vmatpush1.xpose.msra.mxu0 0.0
    %3113 = vmatprep.subr.mxu0 0.0
    %3114 = vmatpush1.xpose.msra.mxu0 0.0
    %3115 = vmatprep.subr.mxu0 0.0
    %3116 = vmatpush1.xpose.msra.mxu0 0.0
    %3117 = vmatprep.subr.mxu0 0.0
    %3118 = vmatpush1.xpose.msra.mxu0 0.0
    %3119 = vmatprep.subr.mxu0 0.0
    %3120 = vmatpush1.xpose.msra.mxu0 0.0
    %3121 = vmatprep.subr.mxu0 0.0
    %3122 = vmatpush1.xpose.msra.mxu0 0.0
    %3123 = vmatprep.subr.mxu0 0.0
    %3124 = vmatpush1.xpose.msra.mxu0 0.0
    %3125 = vmatprep.subr.mxu0 0.0
    %3126 = vmatpush1.xpose.msra.mxu0 0.0
    %3127 = vmatprep.subr.mxu0 0.0
    %3128 = vmatpush1.xpose.msra.mxu0 0.0
    %3129 = vmatprep.subr.mxu0 0.0
    %3130 = vmatpush1.xpose.msra.mxu0 0.0
    %3131 = vmatprep.subr.mxu0 0.0
    %3132 = vmatpush1.xpose.msra.mxu0 0.0
    %3133 = vmatprep.subr.mxu0 0.0
    %3134 = vmatpush1.xpose.msra.mxu0 0.0
    %3135 = vmatprep.subr.mxu0 0.0
    %3136 = vmatpush1.xpose.msra.mxu0 0.0
    %3137 = vmatprep.subr.mxu0 0.0
    %3138 = vmatpush1.xpose.msra.mxu0 0.0
    %3139 = vmatprep.subr.mxu0 0.0
    %3140 = vmatpush1.xpose.msra.mxu0 %v3107
    %3141 = vmatprep.subr.mxu0 0.0
    %3142 = vmatpush2.xpose.msra.mxu0 0.0
    %3143 = vmatprep.subr.mxu0 0.0
    %3144 = vmatpush2.xpose.msra.mxu0 0.0
    %3145 = vmatprep.subr.mxu0 0.0
    %3146 = vmatpush2.xpose.msra.mxu0 0.0
    %3147 = vmatprep.subr.mxu0 0.0
    %3148 = vmatpush2.xpose.msra.mxu0 0.0
    %3149 = vmatprep.subr.mxu0 0.0
    %3150 = vmatpush2.xpose.msra.mxu0 0.0
    %3151 = vmatprep.subr.mxu0 0.0
    %3152 = vmatpush2.xpose.msra.mxu0 0.0
    %3153 = vmatprep.subr.mxu0 0.0
    %3154 = vmatpush2.xpose.msra.mxu0 0.0
    %3155 = vmatprep.subr.mxu0 0.0
    %3156 = vmatpush2.xpose.msra.mxu0 0.0
    %3157 = vmatprep.subr.mxu0 0.0
    %3158 = vmatpush2.xpose.msra.mxu0 0.0
    %3159 = vmatprep.subr.mxu0 0.0
    %3160 = vmatpush2.xpose.msra.mxu0 0.0
    %3161 = vmatprep.subr.mxu0 0.0
    %3162 = vmatpush2.xpose.msra.mxu0 0.0
    %3163 = vmatprep.subr.mxu0 0.0
    %3164 = vmatpush2.xpose.msra.mxu0 0.0
    %3165 = vmatprep.subr.mxu0 0.0
    %3166 = vmatpush2.xpose.msra.mxu0 0.0
    %3167 = vmatprep.subr.mxu0 0.0
    %3168 = vmatpush2.xpose.msra.mxu0 0.0
    %3169 = vmatprep.subr.mxu0 0.0
    %3170 = vmatpush2.xpose.msra.mxu0 0.0
    %3171 = vmatprep.subr.mxu0 0.0
    %3172 = vmatpush2.xpose.msra.mxu0 0.0
    %3173 = vmatprep.mubr.f32.mxu0 0.0
    %3174 = vmatmul.mubr.f32.gmra.mxu0 %v3105
    %v3175 = vpop.f32.mrf.mxu0
    %v3176 = vadd.f32 0.0, %v3175
    %v3177 = vpop.f32.mrf.mxu0
    %3178 = vdwg.mxu0
    %v3179 = vsel %vm196, %v3098, -inf
    %3180 = vmax.xlane.f32.xlu0 %v3179
    %v3181 = vpop.xlane.xlu0 %3180
    %v3182 = vsel %vm196, %v3176, -inf
    %3183 = vmax.xlane.f32.xlu0 %v3182
    %v3184 = vpop.xlane.xlu0 %3183
    %v3185 = vsub.f32 %v3098, %v3181
    %v3186 = vsub.f32 %v3176, %v3184
    %v3187 = vmul.f32 %v3185, 1.442695
    %v3188 = vpow.pop %v3187
    %v3189 = vmul.f32 %v3186, 1.442695
    %v3190 = vpow.pop %v3189
    %v3191 = vsel %vm196, %v3188, 0.0
    %3192 = vadd.xlane.f32.xlu0 %v3191
    %v3193 = vpop.xlane.xlu0 %3192
    %v3194 = vsel %vm196, %v3190, 0.0
    %3195 = vadd.xlane.f32.xlu0 %v3194
    %v3196 = vpop.xlane.xlu0 %3195
    %v3197 = vrcp.pop %v3193
    %v3198 = vrcp.pop %v3196
    %v3199 = vmul.f32 %v3188, %v3197
    %v3200 = vmul.f32 %v3190, %v3198
    %3201 = vrot.lane.b32.xlu0 %v2023, 40
    %v3202 = vpop.permute.xlu0 %3201
    %v3205 = vsel %vm196, %v3199, 0
    %3207 = vmatprep.subr.mxu0 0.0
    %3208 = vmatpush1.msra.mxu0 0.0
    %3209 = vmatprep.subr.mxu0 0.0
    %3210 = vmatpush1.msra.mxu0 0.0
    %3211 = vmatprep.subr.mxu0 0.0
    %3212 = vmatpush1.msra.mxu0 0.0
    %3213 = vmatprep.subr.mxu0 0.0
    %3214 = vmatpush1.msra.mxu0 0.0
    %3215 = vmatprep.subr.mxu0 0.0
    %3216 = vmatpush1.msra.mxu0 0.0
    %3217 = vmatprep.subr.mxu0 0.0
    %3218 = vmatpush1.msra.mxu0 0.0
    %3219 = vmatprep.subr.mxu0 0.0
    %3220 = vmatpush1.msra.mxu0 0.0
    %3221 = vmatprep.subr.mxu0 0.0
    %3222 = vmatpush1.msra.mxu0 0.0
    %3223 = vmatprep.subr.mxu0 0.0
    %3224 = vmatpush1.msra.mxu0 0.0
    %3225 = vmatprep.subr.mxu0 0.0
    %3226 = vmatpush1.msra.mxu0 0.0
    %3227 = vmatprep.subr.mxu0 0.0
    %3228 = vmatpush1.msra.mxu0 0.0
    %3229 = vmatprep.subr.mxu0 0.0
    %3230 = vmatpush1.msra.mxu0 0.0
    %3231 = vmatprep.subr.mxu0 0.0
    %3232 = vmatpush1.msra.mxu0 0.0
    %3233 = vmatprep.subr.mxu0 0.0
    %3234 = vmatpush1.msra.mxu0 0.0
    %3235 = vmatprep.subr.mxu0 0.0
    %3236 = vmatpush1.msra.mxu0 0.0
    %3237 = vmatprep.subr.mxu0 0.0
    %3238 = vmatpush1.msra.mxu0 %v3202
    %3239 = vmatprep.subr.mxu0 0.0
    %3240 = vmatpush2.msra.mxu0 0.0
    %3241 = vmatprep.subr.mxu0 0.0
    %3242 = vmatpush2.msra.mxu0 0.0
    %3243 = vmatprep.subr.mxu0 0.0
    %3244 = vmatpush2.msra.mxu0 0.0
    %3245 = vmatprep.subr.mxu0 0.0
    %3246 = vmatpush2.msra.mxu0 0.0
    %3247 = vmatprep.subr.mxu0 0.0
    %3248 = vmatpush2.msra.mxu0 0.0
    %3249 = vmatprep.subr.mxu0 0.0
    %3250 = vmatpush2.msra.mxu0 0.0
    %3251 = vmatprep.subr.mxu0 0.0
    %3252 = vmatpush2.msra.mxu0 0.0
    %3253 = vmatprep.subr.mxu0 0.0
    %3254 = vmatpush2.msra.mxu0 0.0
    %3255 = vmatprep.subr.mxu0 0.0
    %3256 = vmatpush2.msra.mxu0 0.0
    %3257 = vmatprep.subr.mxu0 0.0
    %3258 = vmatpush2.msra.mxu0 0.0
    %3259 = vmatprep.subr.mxu0 0.0
    %3260 = vmatpush2.msra.mxu0 0.0
    %3261 = vmatprep.subr.mxu0 0.0
    %3262 = vmatpush2.msra.mxu0 0.0
    %3263 = vmatprep.subr.mxu0 0.0
    %3264 = vmatpush2.msra.mxu0 0.0
    %3265 = vmatprep.subr.mxu0 0.0
    %3266 = vmatpush2.msra.mxu0 0.0
    %3267 = vmatprep.subr.mxu0 0.0
    %3268 = vmatpush2.msra.mxu0 0.0
    %3269 = vmatprep.subr.mxu0 0.0
    %3270 = vmatpush2.msra.mxu0 0.0
    %3271 = vmatprep.mubr.f32.mxu0 0.0
    %3272 = vmatmul.mubr.f32.gmra.mxu0 %v3205
    %v3273 = vpop.f32.mrf.mxu0
    %v3274 = vadd.f32 0.0, %v3273
    %v3275 = vpop.f32.mrf.mxu0
    %3276 = vdwg.mxu0
    %3277 = vrot.lane.b32.xlu0 %v2028, 40
    %v3278 = vpop.permute.xlu0 %3277
    %v3281 = vsel %vm196, %v3200, 0
    %3283 = vmatprep.subr.mxu0 0.0
    %3284 = vmatpush1.msra.mxu0 0.0
    %3285 = vmatprep.subr.mxu0 0.0
    %3286 = vmatpush1.msra.mxu0 0.0
    %3287 = vmatprep.subr.mxu0 0.0
    %3288 = vmatpush1.msra.mxu0 0.0
    %3289 = vmatprep.subr.mxu0 0.0
    %3290 = vmatpush1.msra.mxu0 0.0
    %3291 = vmatprep.subr.mxu0 0.0
    %3292 = vmatpush1.msra.mxu0 0.0
    %3293 = vmatprep.subr.mxu0 0.0
    %3294 = vmatpush1.msra.mxu0 0.0
    %3295 = vmatprep.subr.mxu0 0.0
    %3296 = vmatpush1.msra.mxu0 0.0
    %3297 = vmatprep.subr.mxu0 0.0
    %3298 = vmatpush1.msra.mxu0 0.0
    %3299 = vmatprep.subr.mxu0 0.0
    %3300 = vmatpush1.msra.mxu0 0.0
    %3301 = vmatprep.subr.mxu0 0.0
    %3302 = vmatpush1.msra.mxu0 0.0
    %3303 = vmatprep.subr.mxu0 0.0
    %3304 = vmatpush1.msra.mxu0 0.0
    %3305 = vmatprep.subr.mxu0 0.0
    %3306 = vmatpush1.msra.mxu0 0.0
    %3307 = vmatprep.subr.mxu0 0.0
    %3308 = vmatpush1.msra.mxu0 0.0
    %3309 = vmatprep.subr.mxu0 0.0
    %3310 = vmatpush1.msra.mxu0 0.0
    %3311 = vmatprep.subr.mxu0 0.0
    %3312 = vmatpush1.msra.mxu0 0.0
    %3313 = vmatprep.subr.mxu0 0.0
    %3314 = vmatpush1.msra.mxu0 %v3278
    %3315 = vmatprep.subr.mxu0 0.0
    %3316 = vmatpush2.msra.mxu0 0.0
    %3317 = vmatprep.subr.mxu0 0.0
    %3318 = vmatpush2.msra.mxu0 0.0
    %3319 = vmatprep.subr.mxu0 0.0
    %3320 = vmatpush2.msra.mxu0 0.0
    %3321 = vmatprep.subr.mxu0 0.0
    %3322 = vmatpush2.msra.mxu0 0.0
    %3323 = vmatprep.subr.mxu0 0.0
    %3324 = vmatpush2.msra.mxu0 0.0
    %3325 = vmatprep.subr.mxu0 0.0
    %3326 = vmatpush2.msra.mxu0 0.0
    %3327 = vmatprep.subr.mxu0 0.0
    %3328 = vmatpush2.msra.mxu0 0.0
    %3329 = vmatprep.subr.mxu0 0.0
    %3330 = vmatpush2.msra.mxu0 0.0
    %3331 = vmatprep.subr.mxu0 0.0
    %3332 = vmatpush2.msra.mxu0 0.0
    %3333 = vmatprep.subr.mxu0 0.0
    %3334 = vmatpush2.msra.mxu0 0.0
    %3335 = vmatprep.subr.mxu0 0.0
    %3336 = vmatpush2.msra.mxu0 0.0
    %3337 = vmatprep.subr.mxu0 0.0
    %3338 = vmatpush2.msra.mxu0 0.0
    %3339 = vmatprep.subr.mxu0 0.0
    %3340 = vmatpush2.msra.mxu0 0.0
    %3341 = vmatprep.subr.mxu0 0.0
    %3342 = vmatpush2.msra.mxu0 0.0
    %3343 = vmatprep.subr.mxu0 0.0
    %3344 = vmatpush2.msra.mxu0 0.0
    %3345 = vmatprep.subr.mxu0 0.0
    %3346 = vmatpush2.msra.mxu0 0.0
    %3347 = vmatprep.mubr.f32.mxu0 0.0
    %3348 = vmatmul.mubr.f32.gmra.mxu0 %v3281
    %v3349 = vpop.f32.mrf.mxu0
    %v3350 = vadd.f32 0.0, %v3349
    %v3351 = vpop.f32.mrf.mxu0
    %3352 = vdwg.mxu0
    %3355 = vrot.lane.b32.xlu0 %v2614, 8
    %v3356 = vpop.permute.xlu0 %3355
    %3357 = vrot.lane.b32.xlu0 %v2690, 8
    %v3358 = vpop.permute.xlu0 %3357
    %3363 = vrot.lane.b32.xlu0 %v2944, 16
    %v3364 = vpop.permute.xlu0 %3363
    %3365 = vrot.lane.b32.xlu0 %v3020, 16
    %v3366 = vpop.permute.xlu0 %3365
    %3371 = vrot.lane.b32.xlu0 %v3274, 24
    %v3372 = vpop.permute.xlu0 %3371
    %3373 = vrot.lane.b32.xlu0 %v3350, 24
    %v3374 = vpop.permute.xlu0 %3373
    %v3377 = vsel %vm196, %v2284, %v3356
    %v3378 = vsel %vm196, %v2360, %v3358
    %v3379 = vsel %vm1540, %v3377, %v3364
    %v3380 = vsel %vm1540, %v3378, %v3366
    %v3381 = vsel %vm1543, %v3379, %v3372
    %v3382 = vsel %vm1543, %v3380, %v3374
    %s3383 = scalar_lea.vmem %s5, 32
    %v3384 = vld [vmem:[%s3383] sm:$0xff]
    %v3385 = vld [vmem:[%s3383 + $0x8] sm:$0xff]
    %v3386 = vld [vmem:[%s3383 + $0x10] sm:$0xff]
    %v3387 = vld [vmem:[%s3383 + $0x18] sm:$0xff]
    %s3388 = scalar_lea.vmem %s6, 1
    %v3389 = vld [vmem:[%s3388] sm:$0x1]
    %v3391 = vlaneseq
    %v3392 = vshrl.u32 %v3391, 7
    %v3393 = vsub.s32 0, %v3392
    %v3394 = vrot.slane %v3389, %v3393
    %v3397 = vsel %vm55, %v3381, 0
    %v3400 = vsel %vm55, %v3382, 0
    %3402 = vmatprep.subr.mxu0 0.0
    %3403 = vmatpush1.msra.mxu0 0.0
    %3404 = vmatprep.subr.mxu0 0.0
    %3405 = vmatpush1.msra.mxu0 0.0
    %3406 = vmatprep.subr.mxu0 0.0
    %3407 = vmatpush1.msra.mxu0 0.0
    %3408 = vmatprep.subr.mxu0 0.0
    %3409 = vmatpush1.msra.mxu0 0.0
    %3410 = vmatprep.subr.mxu0 0.0
    %3411 = vmatpush1.msra.mxu0 0.0
    %3412 = vmatprep.subr.mxu0 0.0
    %3413 = vmatpush1.msra.mxu0 0.0
    %3414 = vmatprep.subr.mxu0 0.0
    %3415 = vmatpush1.msra.mxu0 0.0
    %3416 = vmatprep.subr.mxu0 0.0
    %3417 = vmatpush1.msra.mxu0 0.0
    %3418 = vmatprep.subr.mxu0 0.0
    %3419 = vmatpush1.msra.mxu0 0.0
    %3420 = vmatprep.subr.mxu0 0.0
    %3421 = vmatpush1.msra.mxu0 0.0
    %3422 = vmatprep.subr.mxu0 0.0
    %3423 = vmatpush1.msra.mxu0 0.0
    %3424 = vmatprep.subr.mxu0 0.0
    %3425 = vmatpush1.msra.mxu0 0.0
    %3426 = vmatprep.subr.mxu0 0.0
    %3427 = vmatpush1.msra.mxu0 %v3387
    %3428 = vmatprep.subr.mxu0 0.0
    %3429 = vmatpush1.msra.mxu0 %v3386
    %3430 = vmatprep.subr.mxu0 0.0
    %3431 = vmatpush1.msra.mxu0 %v3385
    %3432 = vmatprep.subr.mxu0 0.0
    %3433 = vmatpush1.msra.mxu0 %v3384
    %3434 = vmatprep.subr.mxu0 0.0
    %3435 = vmatpush2.msra.mxu0 0.0
    %3436 = vmatprep.subr.mxu0 0.0
    %3437 = vmatpush2.msra.mxu0 0.0
    %3438 = vmatprep.subr.mxu0 0.0
    %3439 = vmatpush2.msra.mxu0 0.0
    %3440 = vmatprep.subr.mxu0 0.0
    %3441 = vmatpush2.msra.mxu0 0.0
    %3442 = vmatprep.subr.mxu0 0.0
    %3443 = vmatpush2.msra.mxu0 0.0
    %3444 = vmatprep.subr.mxu0 0.0
    %3445 = vmatpush2.msra.mxu0 0.0
    %3446 = vmatprep.subr.mxu0 0.0
    %3447 = vmatpush2.msra.mxu0 0.0
    %3448 = vmatprep.subr.mxu0 0.0
    %3449 = vmatpush2.msra.mxu0 0.0
    %3450 = vmatprep.subr.mxu0 0.0
    %3451 = vmatpush2.msra.mxu0 0.0
    %3452 = vmatprep.subr.mxu0 0.0
    %3453 = vmatpush2.msra.mxu0 0.0
    %3454 = vmatprep.subr.mxu0 0.0
    %3455 = vmatpush2.msra.mxu0 0.0
    %3456 = vmatprep.subr.mxu0 0.0
    %3457 = vmatpush2.msra.mxu0 0.0
    %3458 = vmatprep.subr.mxu0 0.0
    %3459 = vmatpush2.msra.mxu0 0.0
    %3460 = vmatprep.subr.mxu0 0.0
    %3461 = vmatpush2.msra.mxu0 0.0
    %3462 = vmatprep.subr.mxu0 0.0
    %3463 = vmatpush2.msra.mxu0 0.0
    %3464 = vmatprep.subr.mxu0 0.0
    %3465 = vmatpush2.msra.mxu0 0.0
    %3466 = vmatprep.mubr.f32.mxu0 0.0
    %3467 = vmatmul.mubr.f32.gmra.mxu0 %v3397
    %v3468 = vpop.f32.mrf.mxu0
    %v3469 = vadd.f32 %v3394, %v3468
    %v3470 = vpop.f32.mrf.mxu0
    %3471 = vmatprep.mubr.f32.mxu0 0.0
    %3472 = vmatmul.mubr.f32.gmra.mxu0 %v3400
    %v3473 = vpop.f32.mrf.mxu0
    %v3474 = vadd.f32 %v3394, %v3473
    %v3475 = vpop.f32.mrf.mxu0
    %3476 = vdwg.mxu0
    %v3477 = vadd.f32 %v3469, %v1935
    %v3478 = vadd.f32 %v3474, %v1936
    %s3479 = scalar_lea.vmem %s7, 1
    %v3480 = vld [vmem:[%s3479] sm:$0x1]
    %s3481 = scalar_lea.vmem %s8, 1
    %v3482 = vld [vmem:[%s3481] sm:$0x1]
    %v3483 = vsel %vm55, %v3477, 0.0
    %3484 = vadd.xlane.f32.xlu0 %v3483
    %v3485 = vpop.xlane.xlu0 %3484
    %v3486 = vsel %vm55, %v3478, 0.0
    %3487 = vadd.xlane.f32.xlu0 %v3486
    %v3488 = vpop.xlane.xlu0 %3487
    %v3489 = vmul.f32 %v3485, %v62
    %v3490 = vmul.f32 %v3488, %v62
    %v3491 = vsub.f32 %v3477, %v3489
    %v3492 = vsub.f32 %v3478, %v3490
    %v3493 = vmul.f32 %v3491, %v3491
    %v3494 = vmul.f32 %v3492, %v3492
    %v3495 = vsel %vm55, %v3493, 0.0
    %3496 = vadd.xlane.f32.xlu0 %v3495
    %v3497 = vpop.xlane.xlu0 %3496
    %v3498 = vsel %vm55, %v3494, 0.0
    %3499 = vadd.xlane.f32.xlu0 %v3498
    %v3500 = vpop.xlane.xlu0 %3499
    %v3501 = vmul.f32 %v3497, %v62
    %v3502 = vmul.f32 %v3500, %v62
    %v3503 = vadd.f32 %v3501, 1e-12
    %v3504 = vadd.f32 %v3502, 1e-12
    %v3505 = vrsqrt.pop %v3503
    %v3506 = vrsqrt.pop %v3504
    %v3507 = vmul.f32 %v3491, %v3505
    %v3508 = vmul.f32 %v3492, %v3506
    %v3510 = vlaneseq
    %v3511 = vshrl.u32 %v3510, 7
    %v3512 = vsub.s32 0, %v3511
    %v3513 = vrot.slane %v3480, %v3512
    %v3515 = vmul.f32 %v3507, %v3513
    %v3516 = vmul.f32 %v3508, %v3513
    %v3518 = vlaneseq
    %v3519 = vshrl.u32 %v3518, 7
    %v3520 = vsub.s32 0, %v3519
    %v3521 = vrot.slane %v3482, %v3520
    %v3523 = vadd.f32 %v3515, %v3521
    %v3524 = vadd.f32 %v3516, %v3521
    %s3525 = scalar_lea.vmem %s9, 32
    %v3526 = vld [vmem:[%s3525] sm:$0xff]
    %v3527 = vld [vmem:[%s3525 + $0x8] sm:$0xff]
    %v3528 = vld [vmem:[%s3525 + $0x10] sm:$0xff]
    %v3529 = vld [vmem:[%s3525 + $0x18] sm:$0xff]
    %s3530 = scalar_lea.vmem %s10, 1
    %v3531 = vld [vmem:[%s3530] sm:$0x1]
    %v3533 = vlaneseq
    %v3534 = vshrl.u32 %v3533, 7
    %v3535 = vsub.s32 0, %v3534
    %v3536 = vrot.slane %v3531, %v3535
    %v3539 = vsel %vm55, %v3523, 0
    %v3542 = vsel %vm55, %v3524, 0
    %3544 = vmatprep.subr.mxu0 0.0
    %3545 = vmatpush1.msra.mxu0 0.0
    %3546 = vmatprep.subr.mxu0 0.0
    %3547 = vmatpush1.msra.mxu0 0.0
    %3548 = vmatprep.subr.mxu0 0.0
    %3549 = vmatpush1.msra.mxu0 0.0
    %3550 = vmatprep.subr.mxu0 0.0
    %3551 = vmatpush1.msra.mxu0 0.0
    %3552 = vmatprep.subr.mxu0 0.0
    %3553 = vmatpush1.msra.mxu0 0.0
    %3554 = vmatprep.subr.mxu0 0.0
    %3555 = vmatpush1.msra.mxu0 0.0
    %3556 = vmatprep.subr.mxu0 0.0
    %3557 = vmatpush1.msra.mxu0 0.0
    %3558 = vmatprep.subr.mxu0 0.0
    %3559 = vmatpush1.msra.mxu0 0.0
    %3560 = vmatprep.subr.mxu0 0.0
    %3561 = vmatpush1.msra.mxu0 0.0
    %3562 = vmatprep.subr.mxu0 0.0
    %3563 = vmatpush1.msra.mxu0 0.0
    %3564 = vmatprep.subr.mxu0 0.0
    %3565 = vmatpush1.msra.mxu0 0.0
    %3566 = vmatprep.subr.mxu0 0.0
    %3567 = vmatpush1.msra.mxu0 0.0
    %3568 = vmatprep.subr.mxu0 0.0
    %3569 = vmatpush1.msra.mxu0 %v3529
    %3570 = vmatprep.subr.mxu0 0.0
    %3571 = vmatpush1.msra.mxu0 %v3528
    %3572 = vmatprep.subr.mxu0 0.0
    %3573 = vmatpush1.msra.mxu0 %v3527
    %3574 = vmatprep.subr.mxu0 0.0
    %3575 = vmatpush1.msra.mxu0 %v3526
    %3576 = vmatprep.subr.mxu0 0.0
    %3577 = vmatpush2.msra.mxu0 0.0
    %3578 = vmatprep.subr.mxu0 0.0
    %3579 = vmatpush2.msra.mxu0 0.0
    %3580 = vmatprep.subr.mxu0 0.0
    %3581 = vmatpush2.msra.mxu0 0.0
    %3582 = vmatprep.subr.mxu0 0.0
    %3583 = vmatpush2.msra.mxu0 0.0
    %3584 = vmatprep.subr.mxu0 0.0
    %3585 = vmatpush2.msra.mxu0 0.0
    %3586 = vmatprep.subr.mxu0 0.0
    %3587 = vmatpush2.msra.mxu0 0.0
    %3588 = vmatprep.subr.mxu0 0.0
    %3589 = vmatpush2.msra.mxu0 0.0
    %3590 = vmatprep.subr.mxu0 0.0
    %3591 = vmatpush2.msra.mxu0 0.0
    %3592 = vmatprep.subr.mxu0 0.0
    %3593 = vmatpush2.msra.mxu0 0.0
    %3594 = vmatprep.subr.mxu0 0.0
    %3595 = vmatpush2.msra.mxu0 0.0
    %3596 = vmatprep.subr.mxu0 0.0
    %3597 = vmatpush2.msra.mxu0 0.0
    %3598 = vmatprep.subr.mxu0 0.0
    %3599 = vmatpush2.msra.mxu0 0.0
    %3600 = vmatprep.subr.mxu0 0.0
    %3601 = vmatpush2.msra.mxu0 0.0
    %3602 = vmatprep.subr.mxu0 0.0
    %3603 = vmatpush2.msra.mxu0 0.0
    %3604 = vmatprep.subr.mxu0 0.0
    %3605 = vmatpush2.msra.mxu0 0.0
    %3606 = vmatprep.subr.mxu0 0.0
    %3607 = vmatpush2.msra.mxu0 0.0
    %3608 = vmatprep.mubr.f32.mxu0 0.0
    %3609 = vmatmul.mubr.f32.gmra.mxu0 %v3539
    %v3610 = vpop.f32.mrf.mxu0
    %v3611 = vadd.f32 %v3536, %v3610
    %v3612 = vpop.f32.mrf.mxu0
    %3613 = vmatprep.mubr.f32.mxu0 0.0
    %3614 = vmatmul.mubr.f32.gmra.mxu0 %v3542
    %v3615 = vpop.f32.mrf.mxu0
    %v3616 = vadd.f32 %v3536, %v3615
    %v3617 = vpop.f32.mrf.mxu0
    %3618 = vdwg.mxu0
    %v3619 = vmul.f32 %v3611, 0.5
    %v3620 = vmul.f32 %v3616, 0.5
    %v3621 = vmul.f32 %v3611, 0.044715
    %v3622 = vmul.f32 %v3616, 0.044715
    %v3623 = vmul.f32 %v3621, %v3611
    %v3624 = vmul.f32 %v3622, %v3616
    %v3625 = vmul.f32 %v3623, %v3611
    %v3626 = vmul.f32 %v3624, %v3616
    %v3627 = vadd.f32 %v3611, %v3625
    %v3628 = vadd.f32 %v3616, %v3626
    %v3629 = vmul.f32 %v3627, 0.7978846
    %v3630 = vmul.f32 %v3628, 0.7978846
    %v3631 = vtanh.pop %v3629
    %v3632 = vtanh.pop %v3630
    %v3633 = vadd.f32 %v3631, 1.0
    %v3634 = vadd.f32 %v3632, 1.0
    %v3635 = vmul.f32 %v3619, %v3633
    %v3636 = vmul.f32 %v3620, %v3634
    %s3637 = scalar_lea.vmem %s11, 64
    %v3638 = vld [vmem:[%s3637] sm:$0xff]
    %v3639 = vld [vmem:[%s3637 + $0x8] sm:$0xff]
    %v3640 = vld [vmem:[%s3637 + $0x10] sm:$0xff]
    %v3641 = vld [vmem:[%s3637 + $0x18] sm:$0xff]
    %v3642 = vld [vmem:[%s3637 + $0x20] sm:$0xff]
    %v3643 = vld [vmem:[%s3637 + $0x28] sm:$0xff]
    %v3644 = vld [vmem:[%s3637 + $0x30] sm:$0xff]
    %v3645 = vld [vmem:[%s3637 + $0x38] sm:$0xff]
    %s3646 = scalar_lea.vmem %s12, 1
    %v3647 = vld [vmem:[%s3646] sm:$0x1]
    %v3649 = vlaneseq
    %v3650 = vshrl.u32 %v3649, 7
    %v3651 = vsub.s32 0, %v3650
    %v3652 = vrot.slane %v3647, %v3651
    %v3655 = vsel %vm1809, %v3635, 0
    %v3658 = vsel %vm1809, %v3636, 0
    %3660 = vmatprep.subr.mxu0 0.0
    %3661 = vmatpush1.msra.mxu0 0.0
    %3662 = vmatprep.subr.mxu0 0.0
    %3663 = vmatpush1.msra.mxu0 0.0
    %3664 = vmatprep.subr.mxu0 0.0
    %3665 = vmatpush1.msra.mxu0 0.0
    %3666 = vmatprep.subr.mxu0 0.0
    %3667 = vmatpush1.msra.mxu0 0.0
    %3668 = vmatprep.subr.mxu0 0.0
    %3669 = vmatpush1.msra.mxu0 0.0
    %3670 = vmatprep.subr.mxu0 0.0
    %3671 = vmatpush1.msra.mxu0 0.0
    %3672 = vmatprep.subr.mxu0 0.0
    %3673 = vmatpush1.msra.mxu0 0.0
    %3674 = vmatprep.subr.mxu0 0.0
    %3675 = vmatpush1.msra.mxu0 0.0
    %3676 = vmatprep.subr.mxu0 0.0
    %3677 = vmatpush1.msra.mxu0 %v3645
    %3678 = vmatprep.subr.mxu0 0.0
    %3679 = vmatpush1.msra.mxu0 %v3644
    %3680 = vmatprep.subr.mxu0 0.0
    %3681 = vmatpush1.msra.mxu0 %v3643
    %3682 = vmatprep.subr.mxu0 0.0
    %3683 = vmatpush1.msra.mxu0 %v3642
    %3684 = vmatprep.subr.mxu0 0.0
    %3685 = vmatpush1.msra.mxu0 %v3641
    %3686 = vmatprep.subr.mxu0 0.0
    %3687 = vmatpush1.msra.mxu0 %v3640
    %3688 = vmatprep.subr.mxu0 0.0
    %3689 = vmatpush1.msra.mxu0 %v3639
    %3690 = vmatprep.subr.mxu0 0.0
    %3691 = vmatpush1.msra.mxu0 %v3638
    %3692 = vmatprep.subr.mxu0 0.0
    %3693 = vmatpush2.msra.mxu0 0.0
    %3694 = vmatprep.subr.mxu0 0.0
    %3695 = vmatpush2.msra.mxu0 0.0
    %3696 = vmatprep.subr.mxu0 0.0
    %3697 = vmatpush2.msra.mxu0 0.0
    %3698 = vmatprep.subr.mxu0 0.0
    %3699 = vmatpush2.msra.mxu0 0.0
    %3700 = vmatprep.subr.mxu0 0.0
    %3701 = vmatpush2.msra.mxu0 0.0
    %3702 = vmatprep.subr.mxu0 0.0
    %3703 = vmatpush2.msra.mxu0 0.0
    %3704 = vmatprep.subr.mxu0 0.0
    %3705 = vmatpush2.msra.mxu0 0.0
    %3706 = vmatprep.subr.mxu0 0.0
    %3707 = vmatpush2.msra.mxu0 0.0
    %3708 = vmatprep.subr.mxu0 0.0
    %3709 = vmatpush2.msra.mxu0 0.0
    %3710 = vmatprep.subr.mxu0 0.0
    %3711 = vmatpush2.msra.mxu0 0.0
    %3712 = vmatprep.subr.mxu0 0.0
    %3713 = vmatpush2.msra.mxu0 0.0
    %3714 = vmatprep.subr.mxu0 0.0
    %3715 = vmatpush2.msra.mxu0 0.0
    %3716 = vmatprep.subr.mxu0 0.0
    %3717 = vmatpush2.msra.mxu0 0.0
    %3718 = vmatprep.subr.mxu0 0.0
    %3719 = vmatpush2.msra.mxu0 0.0
    %3720 = vmatprep.subr.mxu0 0.0
    %3721 = vmatpush2.msra.mxu0 0.0
    %3722 = vmatprep.subr.mxu0 0.0
    %3723 = vmatpush2.msra.mxu0 0.0
    %3724 = vmatprep.mubr.f32.mxu0 0.0
    %3725 = vmatmul.mubr.f32.gmra.mxu0 %v3655
    %v3726 = vpop.f32.mrf.mxu0
    %v3727 = vadd.f32 %v3652, %v3726
    %v3728 = vpop.f32.mrf.mxu0
    %3729 = vmatprep.mubr.f32.mxu0 0.0
    %3730 = vmatmul.mubr.f32.gmra.mxu0 %v3658
    %v3731 = vpop.f32.mrf.mxu0
    %v3732 = vadd.f32 %v3652, %v3731
    %v3733 = vpop.f32.mrf.mxu0
    %3734 = vdwg.mxu0
    %v3735 = vadd.f32 %v3727, %v3523
    %v3736 = vadd.f32 %v3732, %v3524
    %s3737 = scalar_lea.vmem %s13, 1
    %v3738 = vld [vmem:[%s3737] sm:$0x1]
    %s3739 = scalar_lea.vmem %s14, 1
    %v3740 = vld [vmem:[%s3739] sm:$0x1]
    %v3741 = vsel %vm55, %v3735, 0.0
    %3742 = vadd.xlane.f32.xlu0 %v3741
    %v3743 = vpop.xlane.xlu0 %3742
    %v3744 = vsel %vm55, %v3736, 0.0
    %3745 = vadd.xlane.f32.xlu0 %v3744
    %v3746 = vpop.xlane.xlu0 %3745
    %v3747 = vmul.f32 %v3743, %v62
    %v3748 = vmul.f32 %v3746, %v62
    %v3749 = vsub.f32 %v3735, %v3747
    %v3750 = vsub.f32 %v3736, %v3748
    %v3751 = vmul.f32 %v3749, %v3749
    %v3752 = vmul.f32 %v3750, %v3750
    %v3753 = vsel %vm55, %v3751, 0.0
    %3754 = vadd.xlane.f32.xlu0 %v3753
    %v3755 = vpop.xlane.xlu0 %3754
    %v3756 = vsel %vm55, %v3752, 0.0
    %3757 = vadd.xlane.f32.xlu0 %v3756
    %v3758 = vpop.xlane.xlu0 %3757
    %v3759 = vmul.f32 %v3755, %v62
    %v3760 = vmul.f32 %v3758, %v62
    %v3761 = vadd.f32 %v3759, 1e-12
    %v3762 = vadd.f32 %v3760, 1e-12
    %v3763 = vrsqrt.pop %v3761
    %v3764 = vrsqrt.pop %v3762
    %v3765 = vmul.f32 %v3749, %v3763
    %v3766 = vmul.f32 %v3750, %v3764
    %v3768 = vlaneseq
    %v3769 = vshrl.u32 %v3768, 7
    %v3770 = vsub.s32 0, %v3769
    %v3771 = vrot.slane %v3738, %v3770
    %v3773 = vmul.f32 %v3765, %v3771
    %v3774 = vmul.f32 %v3766, %v3771
    %v3776 = vlaneseq
    %v3777 = vshrl.u32 %v3776, 7
    %v3778 = vsub.s32 0, %v3777
    %v3779 = vrot.slane %v3740, %v3778
    %v3781 = vadd.f32 %v3773, %v3779
    %v3782 = vadd.f32 %v3774, %v3779
    %v3783 = vsel %vm55, %v3781, 0.0
    %v3784 = vrot.slane %v3783, 4
    %v3785 = vadd.f32 %v3783, %v3784
    %v3786 = vrot.slane %v3785, 2
    %v3787 = vadd.f32 %v3785, %v3786
    %v3788 = vrot.slane %v3787, 1
    %v3789 = vadd.f32 %v3787, %v3788
    %v3790 = vsel %vm55, %v3782, 0.0
    %v3791 = vrot.slane %v3790, 4
    %v3792 = vadd.f32 %v3790, %v3791
    %v3793 = vrot.slane %v3792, 2
    %v3794 = vadd.f32 %v3792, %v3793
    %v3795 = vrot.slane %v3794, 1
    %v3796 = vadd.f32 %v3794, %v3795
    %v3797 = vrcp.pop 8.0
    %v3798 = vmul.f32 %v3789, %v3797
    %v3799 = vmul.f32 %v3796, %v3797
    %vm3802 = vcmask 1041409
    %v3803 = vsel %vm3802, %v3799, %v3798
    %vm3805 = vcmask 254976
    %3806 = vst.msk [vmem:[#allocation2] sm:$0x3] %vm3805, %v3803
    // Predicated region
    $region62: #{encoder_bert_forward.1} parent=1 // pred_check
      _
    $region63: #{encoder_bert_forward.1} parent=1 // pred_check_branch
      %3808 = sbr.rel (0) target = $region65
    $region64: #{encoder_bert_forward.1} parent=1 // pred_region
      %s3810 = ssub.s32 32, 32
      %3811 = vsyncadd [#allocation3], %s3810
      %s3813 = sshll.u32 [#allocation2], 4
      %s3814 = int_to_ptr.vmem [resolvable:$true] %s3813
      %3816 = dma.vmem_to_hbm [thread:$0]  %s3814, 32, %s15, [#allocation3]
    $region65: #{encoder_bert_forward.1} parent=1 // pred_fallthru
      _
    // Predicated region
    $region66: #{encoder_bert_forward.1} parent=1 // pred_check
      _
    $region67: #{encoder_bert_forward.1} parent=1 // pred_check_branch
      %3818 = sbr.rel (0) target = $region69
    $region68: #{encoder_bert_forward.1} parent=1 // pred_region
      %3819 = dma.done [#allocation3], 32
    $region69: #{encoder_bert_forward.1} parent=1 // pred_fallthru
      _
    %3820 = vsyncpa [#allocation3], 1

</llo_original>
